<compile_context>
chip_gen: v6e
topology: v6e:2x2x1
jax: 0.10.0
libtpu: 0.0.40
codegen_flags: <defaults>
</compile_context>

<pallas_src>
import jax
import jax.numpy as jnp
from jax import lax
from jax.experimental import pallas as pl
from jax.experimental.pallas import tpu as pltpu

N_EMBD = 128
N_HEADS = 8
HEAD_SIZE = N_EMBD // N_HEADS  # 16
FF_HIDDEN = 4 * N_EMBD         # 512
LN_EPS = 1e-5                  # torch.nn.LayerNorm default

_TARGET_ROWS = 1024                    # flattened rows (bb*T) per grid step
_VMEM_LIMIT_BYTES = 40 * 1024 * 1024   # < v7x 64 MiB physical; raises v5e/v6e defaults


def _cdiv(a, b):
    return -(-a // b)


def _layer_norm(z, g, b):
    mu = jnp.mean(z, axis=-1, keepdims=True)
    var = jnp.mean((z - mu) ** 2, axis=-1, keepdims=True)
    return (z - mu) * lax.rsqrt(var + LN_EPS) * g + b


def _block_kernel(x_ref,
                  wqkv_ref, bqkv_ref,
                  wp_ref, bp_ref,
                  g1_ref, be1_ref,
                  w1_ref, b1_ref, w2_ref, b2_ref,
                  g2_ref, be2_ref,
                  o_ref):
    Bb, T, D = x_ref.shape
    M = Bb * T

    # Flatten the batch block into M rows so every dense matmul is (M, 128) @ (128, N).
    x = x_ref[...].reshape(M, D).astype(jnp.float32)
    x_bf = x.astype(jnp.bfloat16)

    # ---- fused QKV projection: one (M,128)@(128,384) matmul, f32 accumulation ----
    qkv = jnp.dot(x_bf, wqkv_ref[...], preferred_element_type=jnp.float32) + bqkv_ref[...]
    q = qkv[:, :D] * (1.0 / (HEAD_SIZE ** 0.5))   # pre-scale once
    k = qkv[:, D:2 * D]
    v = qkv[:, 2 * D:]

    q3 = q.reshape(Bb, T, D)
    k3 = k.reshape(Bb, T, D)
    v3 = v.reshape(Bb, T, D)

    row = lax.broadcasted_iota(jnp.int32, (T, T), 0)
    col = lax.broadcasted_iota(jnp.int32, (T, T), 1)
    causal = row >= col                            # built once, shared by all heads

    # ---- per-head attention (K=16 contraction is inherent to head_size=16) ----
    # TODO(synk): batching all heads as a dot_general batch dim would remove the
    # 16-lane slices below, but Mosaic batched-dot support is limited to a single
    # leading batch dim, so keep the static 8-head loop with 3-D einsums.
    head_outs = []
    for h in range(N_HEADS):
        lo = h * HEAD_SIZE
        hi = lo + HEAD_SIZE
        qh = q3[:, :, lo:hi].astype(jnp.bfloat16)   # (Bb, T, 16)
        kh = k3[:, :, lo:hi].astype(jnp.bfloat16)
        vh = v3[:, :, lo:hi].astype(jnp.bfloat16)

        s = jnp.einsum('btd,bsd->bts', qh, kh,
                       preferred_element_type=jnp.float32)        # (Bb, T, T)
        s = jnp.where(causal, s, -1e12)            # masked positions = -1e12 (PyTorch semantics)
        s = s - jnp.max(s, axis=-1, keepdims=True)
        p = jnp.exp(s)
        inv_den = pl.reciprocal(jnp.sum(p, axis=-1, keepdims=True), approx=True)
        attn = (p * inv_den).astype(jnp.bfloat16)

        head_outs.append(jnp.einsum('bts,bsd->btd', attn, vh,
                                    preferred_element_type=jnp.float32))  # (Bb, T, 16)

    # Concatenate heads (cheap lane shuffles) -> lane-dense (M,128), then ONE
    # K=128 output projection instead of 8 padded K=16 matmuls.
    concat = jnp.concatenate(head_outs, axis=-1).reshape(M, D)
    attn_out = jnp.dot(concat.astype(jnp.bfloat16), wp_ref[...],
                       preferred_element_type=jnp.float32) + bp_ref[...]

    # ---- residual + LayerNorm 1 (f32) ----
    x1 = attn_out + x
    x1n = _layer_norm(x1, g1_ref[...], be1_ref[...])

    # ---- FeedForward: Linear -> GELU (tanh, EUP) -> Linear ----
    h1 = jnp.dot(x1n.astype(jnp.bfloat16), w1_ref[...],
                 preferred_element_type=jnp.float32) + b1_ref[...]
    h1 = jax.nn.gelu(h1, approximate=True)   # tanh GELU; tiny deviation from torch's erf GELU
    ff = jnp.dot(h1.astype(jnp.bfloat16), w2_ref[...],
                 preferred_element_type=jnp.float32) + b2_ref[...]

    # ---- residual + LayerNorm 2 (f32) ----
    x2 = ff + x1n
    out = _layer_norm(x2, g2_ref[...], be2_ref[...])

    o_ref[...] = out.reshape(Bb, T, D).astype(o_ref.dtype)


def _choose_block_batch(B, T):
    """Batch elements per grid step: target >= _TARGET_ROWS flattened rows,
    but prefer >= 4 grid steps (2 per v7x TensorCore) when that still leaves
    >= 512 rows/step. Non-divisor B is handled by padding in the wrapper."""
    bb = max(1, _cdiv(_TARGET_ROWS, max(T, 1)))
    bb = min(bb, B)
    if _cdiv(B, bb) < 4:
        alt = max(1, _cdiv(B, 4))
        if alt * T >= 512:
            bb = min(bb, alt)
    return bb


def block_forward(x, params):
    """x: (B, T, D) float32; params: list of f32 arrays in PyTorch-module order."""
    B, T, D = x.shape
    assert D == N_EMBD
    (wq, bq, wk, bk, wv, bv, wp, bp, g1, be1, w1, b1, w2, b2, g2, be2) = params

    # Fuse Q/K/V weights into one (128, 384) bf16 matrix (and (1,384) f32 bias).
    # Matmul weights in bf16 (MXU rate + half the DMA bytes); biases / LN in f32.
    wqkv = jnp.concatenate([wq, wk, wv], axis=1).astype(jnp.bfloat16)
    bqkv = jnp.concatenate([bq, bk, bv], axis=1).astype(jnp.float32)
    kparams = [
        wqkv, bqkv,
        wp.astype(jnp.bfloat16), bp.astype(jnp.float32),
        g1.astype(jnp.float32), be1.astype(jnp.float32),
        w1.astype(jnp.bfloat16), b1.astype(jnp.float32),
        w2.astype(jnp.bfloat16), b2.astype(jnp.float32),
        g2.astype(jnp.float32), be2.astype(jnp.float32),
    ]

    bb = _choose_block_batch(B, T)
    n_steps = _cdiv(B, bb)
    b_pad = n_steps * bb
    xp = x if b_pad == B else jnp.pad(x, ((0, b_pad - B), (0, 0), (0, 0)))

    in_specs = [pl.BlockSpec((bb, T, D), lambda b: (b, 0, 0))]
    for p in kparams:
        # Grid-invariant params: constant index_map -> DMA'd once across the grid.
        in_specs.append(pl.BlockSpec(p.shape, (lambda b, nd=p.ndim: (0,) * nd)))

    out = pl.pallas_call(
        _block_kernel,
        out_shape=jax.ShapeDtypeStruct((b_pad, T, D), x.dtype),
        grid_spec=pltpu.PrefetchScalarGridSpec(
            num_scalar_prefetch=0,
            grid=(n_steps,),
            in_specs=in_specs,
            out_specs=pl.BlockSpec((bb, T, D), lambda b: (b, 0, 0)),
        ),
        compiler_params=pltpu.CompilerParams(
            dimension_semantics=("parallel",),
            vmem_limit_bytes=_VMEM_LIMIT_BYTES,
        ),
    )(xp, *kparams)
    return out if b_pad == B else out[:B]


def init_params(key):
    """Deterministic synthetic parameters (shapes from the module __init__).
    Linear weights stored as (in, out) so the kernel does x @ W + b (== PyTorch x @ W.T + b)."""
    ks = jax.random.split(key, 16)
    s = 0.02
    wq = s * jax.random.normal(ks[0], (N_EMBD, N_EMBD), jnp.float32)
    bq = s * jax.random.normal(ks[1], (1, N_EMBD), jnp.float32)
    wk = s * jax.random.normal(ks[2], (N_EMBD, N_EMBD), jnp.float32)
    bk = s * jax.random.normal(ks[3], (1, N_EMBD), jnp.float32)
    wv = s * jax.random.normal(ks[4], (N_EMBD, N_EMBD), jnp.float32)
    bv = s * jax.random.normal(ks[5], (1, N_EMBD), jnp.float32)
    wp = s * jax.random.normal(ks[6], (N_EMBD, N_EMBD), jnp.float32)
    bp = s * jax.random.normal(ks[7], (1, N_EMBD), jnp.float32)
    g1 = 1.0 + 0.01 * jax.random.normal(ks[8], (1, N_EMBD), jnp.float32)
    be1 = 0.01 * jax.random.normal(ks[9], (1, N_EMBD), jnp.float32)
    w1 = s * jax.random.normal(ks[10], (N_EMBD, FF_HIDDEN), jnp.float32)
    b1 = s * jax.random.normal(ks[11], (1, FF_HIDDEN), jnp.float32)
    w2 = s * jax.random.normal(ks[12], (FF_HIDDEN, N_EMBD), jnp.float32)
    b2 = s * jax.random.normal(ks[13], (1, N_EMBD), jnp.float32)
    g2 = 1.0 + 0.01 * jax.random.normal(ks[14], (1, N_EMBD), jnp.float32)
    be2 = 0.01 * jax.random.normal(ks[15], (1, N_EMBD), jnp.float32)
    return [wq, bq, wk, bk, wv, bv, wp, bp, g1, be1, w1, b1, w2, b2, g2, be2]


def block_ref(x, params):
    """Pure-JAX f32 reference of the PyTorch forward (for correctness check)."""
    (wq, bq, wk, bk, wv, bv, wp, bp, g1, be1, w1, b1, w2, b2, g2, be2) = params
    B, T, D = x.shape
    q = x @ wq + bq
    k = x @ wk + bk
    v = x @ wv + bv
    tril = jnp.tril(jnp.ones((T, T), jnp.float32))
    outs = []
    for h in range(N_HEADS):
        lo, hi = h * HEAD_SIZE, (h + 1) * HEAD_SIZE
        sc = jnp.einsum('btd,bsd->bts', q[..., lo:hi], k[..., lo:hi]) / (HEAD_SIZE ** 0.5)
        sc = sc * tril - 1e12 * (1.0 - tril)
        aw = jax.nn.softmax(sc, axis=-1)
        outs.append(jnp.einsum('bts,bsd->btd', aw, v[..., lo:hi]))
    a = jnp.concatenate(outs, axis=-1) @ wp + bp

    def ln(z, g, b):
        mu = z.mean(-1, keepdims=True)
        var = ((z - mu) ** 2).mean(-1, keepdims=True)
        return (z - mu) * jax.lax.rsqrt(var + LN_EPS) * g + b

    x1 = ln(a + x, g1, be1)
    ff = jax.nn.gelu(x1 @ w1 + b1, approximate=False) @ w2 + b2
    return ln(ff + x1, g2, be2)


if __name__ == "__main__":
    key = jax.random.PRNGKey(0)
    kx, kp = jax.random.split(key)
    B, T = 2, 8
    x = jax.random.normal(kx, (B, T, N_EMBD), jnp.float32)
    params = init_params(kp)

    out = block_forward(x, params)
    out = jax.block_until_ready(out)

    ref = block_ref(x, params)
    assert out.shape == (B, T, N_EMBD)
    assert bool(jnp.all(jnp.isfinite(out)))
    assert bool(jnp.allclose(out, ref, atol=2e-2, rtol=2e-2))
    print("KERNEL_OK")
</pallas_src>

<mosaic_0001>
module attributes {stable_mosaic.version = 11 : i64} {
  func.func @_block_kernel(%arg0: i32, %arg1: memref<2x8x128xf32, #tpu.memory_space<vmem>>, %arg2: memref<128x384xbf16, #tpu.memory_space<vmem>>, %arg3: memref<1x384xf32, #tpu.memory_space<vmem>>, %arg4: memref<128x128xbf16, #tpu.memory_space<vmem>>, %arg5: memref<1x128xf32, #tpu.memory_space<vmem>>, %arg6: memref<1x128xf32, #tpu.memory_space<vmem>>, %arg7: memref<1x128xf32, #tpu.memory_space<vmem>>, %arg8: memref<128x512xbf16, #tpu.memory_space<vmem>>, %arg9: memref<1x512xf32, #tpu.memory_space<vmem>>, %arg10: memref<512x128xbf16, #tpu.memory_space<vmem>>, %arg11: memref<1x128xf32, #tpu.memory_space<vmem>>, %arg12: memref<1x128xf32, #tpu.memory_space<vmem>>, %arg13: memref<1x128xf32, #tpu.memory_space<vmem>>, %arg14: memref<2x8x128xf32, #tpu.memory_space<vmem>>) attributes {dimension_semantics = [#tpu.dimension_semantics<parallel>], iteration_bounds = array<i64: 1>, scalar_prefetch = 0 : i64, scratch_operands = 0 : i64, tpu.core_type = #tpu.core_type<tc>, window_params = [{transform_indices = @transform_0, window_bounds = array<i64: 2, 8, 128>}, {pipeline_mode = #tpu.pipeline_mode<synchronous>, transform_indices = @transform_1, window_bounds = array<i64: 128, 384>}, {pipeline_mode = #tpu.pipeline_mode<synchronous>, transform_indices = @transform_2, window_bounds = array<i64: 1, 384>}, {pipeline_mode = #tpu.pipeline_mode<synchronous>, transform_indices = @transform_3, window_bounds = array<i64: 128, 128>}, {pipeline_mode = #tpu.pipeline_mode<synchronous>, transform_indices = @transform_4, window_bounds = array<i64: 1, 128>}, {pipeline_mode = #tpu.pipeline_mode<synchronous>, transform_indices = @transform_5, window_bounds = array<i64: 1, 128>}, {pipeline_mode = #tpu.pipeline_mode<synchronous>, transform_indices = @transform_6, window_bounds = array<i64: 1, 128>}, {pipeline_mode = #tpu.pipeline_mode<synchronous>, transform_indices = @transform_7, window_bounds = array<i64: 128, 512>}, {pipeline_mode = #tpu.pipeline_mode<synchronous>, transform_indices = @transform_8, window_bounds = array<i64: 1, 512>}, {pipeline_mode = #tpu.pipeline_mode<synchronous>, transform_indices = @transform_9, window_bounds = array<i64: 512, 128>}, {pipeline_mode = #tpu.pipeline_mode<synchronous>, transform_indices = @transform_10, window_bounds = array<i64: 1, 128>}, {pipeline_mode = #tpu.pipeline_mode<synchronous>, transform_indices = @transform_11, window_bounds = array<i64: 1, 128>}, {pipeline_mode = #tpu.pipeline_mode<synchronous>, transform_indices = @transform_12, window_bounds = array<i64: 1, 128>}, {transform_indices = @transform_13, window_bounds = array<i64: 2, 8, 128>}]} {
    %c0 = arith.constant 0 : index
    %c0_0 = arith.constant 0 : index
    %c0_1 = arith.constant 0 : index
    %0 = vector.load %arg1[%c0, %c0_0, %c0_1] : memref<2x8x128xf32, #tpu.memory_space<vmem>>, vector<2x8x128xf32>
    %1 = vector.shape_cast %0 : vector<2x8x128xf32> to vector<16x128xf32>
    %2 = arith.truncf %1 : vector<16x128xf32> to vector<16x128xbf16>
    %c0_2 = arith.constant 0 : index
    %c0_3 = arith.constant 0 : index
    %3 = vector.load %arg2[%c0_2, %c0_3] : memref<128x384xbf16, #tpu.memory_space<vmem>>, vector<128x384xbf16>
    %cst = arith.constant dense<0.000000e+00> : vector<16x384xf32>
    %4 = tpu.matmul %2, %3, %cst {dimension_numbers = #tpu.dot_dimension_numbers<[1], [0], [0], [1], [0, 0, 1, 1], [], []>} : vector<16x128xbf16>, vector<128x384xbf16>, vector<16x384xf32> -> vector<16x384xf32>
    %c0_4 = arith.constant 0 : index
    %c0_5 = arith.constant 0 : index
    %5 = vector.load %arg3[%c0_4, %c0_5] : memref<1x384xf32, #tpu.memory_space<vmem>>, vector<1x384xf32>
    %6 = vector.broadcast %5 : vector<1x384xf32> to vector<16x384xf32>
    %7 = arith.addf %4, %6 : vector<16x384xf32>
    %8 = vector.extract_strided_slice %7 {offsets = [0, 0], sizes = [16, 128], strides = [1, 1]} : vector<16x384xf32> to vector<16x128xf32>
    %cst_6 = arith.constant 2.500000e-01 : f32
    %9 = vector.broadcast %cst_6 : f32 to vector<16x128xf32>
    %10 = arith.mulf %8, %9 : vector<16x128xf32>
    %11 = vector.extract_strided_slice %7 {offsets = [0, 128], sizes = [16, 128], strides = [1, 1]} : vector<16x384xf32> to vector<16x128xf32>
    %12 = vector.extract_strided_slice %7 {offsets = [0, 256], sizes = [16, 128], strides = [1, 1]} : vector<16x384xf32> to vector<16x128xf32>
    %13 = vector.shape_cast %10 : vector<16x128xf32> to vector<2x8x128xf32>
    %14 = vector.shape_cast %11 : vector<16x128xf32> to vector<2x8x128xf32>
    %15 = vector.shape_cast %12 : vector<16x128xf32> to vector<2x8x128xf32>
    %16 = tpu.iota {dimensions = array<i32: 0>} : vector<8x8xi32>
    %17 = tpu.iota {dimensions = array<i32: 1>} : vector<8x8xi32>
    %18 = arith.cmpi sge, %16, %17 : vector<8x8xi32>
    %19 = vector.extract_strided_slice %13 {offsets = [0, 0, 0], sizes = [2, 8, 16], strides = [1, 1, 1]} : vector<2x8x128xf32> to vector<2x8x16xf32>
    %20 = arith.truncf %19 : vector<2x8x16xf32> to vector<2x8x16xbf16>
    %21 = vector.extract_strided_slice %14 {offsets = [0, 0, 0], sizes = [2, 8, 16], strides = [1, 1, 1]} : vector<2x8x128xf32> to vector<2x8x16xf32>
    %22 = arith.truncf %21 : vector<2x8x16xf32> to vector<2x8x16xbf16>
    %23 = vector.extract_strided_slice %15 {offsets = [0, 0, 0], sizes = [2, 8, 16], strides = [1, 1, 1]} : vector<2x8x128xf32> to vector<2x8x16xf32>
    %24 = arith.truncf %23 : vector<2x8x16xf32> to vector<2x8x16xbf16>
    "tpu.trace_start"() <{level = 10 : i32, message = "btd,bsd->bts"}> : () -> ()
    %cst_7 = arith.constant dense<0.000000e+00> : vector<2x8x8xf32>
    %25 = tpu.matmul %20, %22, %cst_7 {dimension_numbers = #tpu.dot_dimension_numbers<[2], [2], [1], [1], [0, 0, 0, 1, 1, 1], [0], [0]>} : vector<2x8x16xbf16>, vector<2x8x16xbf16>, vector<2x8x8xf32> -> vector<2x8x8xf32>
    %cst_8 = arith.constant -9.99999995E+11 : f32
    "tpu.trace_stop"() : () -> ()
    %26 = vector.shape_cast %18 : vector<8x8xi1> to vector<1x8x8xi1>
    %27 = vector.broadcast %26 : vector<1x8x8xi1> to vector<2x8x8xi1>
    %28 = vector.broadcast %cst_8 : f32 to vector<2x8x8xf32>
    %29 = arith.select %27, %25, %28 : vector<2x8x8xi1>, vector<2x8x8xf32>
    %cst_9 = arith.constant dense<0xFF800000> : vector<2x8xf32>
    %30 = vector.multi_reduction <maximumf>, %29, %cst_9 [2] : vector<2x8x8xf32> to vector<2x8xf32>
    %31 = vector.shape_cast %30 : vector<2x8xf32> to vector<2x8x1xf32>
    %32 = vector.broadcast %31 : vector<2x8x1xf32> to vector<2x8x8xf32>
    %33 = arith.subf %29, %32 : vector<2x8x8xf32>
    %34 = math.exp %33 : vector<2x8x8xf32>
    %cst_10 = arith.constant dense<0.000000e+00> : vector<2x8xf32>
    %35 = vector.multi_reduction <add>, %34, %cst_10 [2] : vector<2x8x8xf32> to vector<2x8xf32>
    %36 = vector.shape_cast %35 : vector<2x8xf32> to vector<2x8x1xf32>
    %37 = tpu.reciprocal %36 {approx = true} : vector<2x8x1xf32> -> vector<2x8x1xf32>
    %38 = vector.broadcast %37 : vector<2x8x1xf32> to vector<2x8x8xf32>
    %39 = arith.mulf %34, %38 : vector<2x8x8xf32>
    %40 = arith.truncf %39 : vector<2x8x8xf32> to vector<2x8x8xbf16>
    "tpu.trace_start"() <{level = 10 : i32, message = "bts,bsd->btd"}> : () -> ()
    %cst_11 = arith.constant dense<0.000000e+00> : vector<2x8x16xf32>
    %41 = tpu.matmul %40, %24, %cst_11 {dimension_numbers = #tpu.dot_dimension_numbers<[2], [1], [1], [2], [0, 0, 0, 1, 1, 2], [0], [0]>} : vector<2x8x8xbf16>, vector<2x8x16xbf16>, vector<2x8x16xf32> -> vector<2x8x16xf32>
    "tpu.trace_stop"() : () -> ()
    %42 = vector.extract_strided_slice %13 {offsets = [0, 0, 16], sizes = [2, 8, 16], strides = [1, 1, 1]} : vector<2x8x128xf32> to vector<2x8x16xf32>
    %43 = arith.truncf %42 : vector<2x8x16xf32> to vector<2x8x16xbf16>
    %44 = vector.extract_strided_slice %14 {offsets = [0, 0, 16], sizes = [2, 8, 16], strides = [1, 1, 1]} : vector<2x8x128xf32> to vector<2x8x16xf32>
    %45 = arith.truncf %44 : vector<2x8x16xf32> to vector<2x8x16xbf16>
    %46 = vector.extract_strided_slice %15 {offsets = [0, 0, 16], sizes = [2, 8, 16], strides = [1, 1, 1]} : vector<2x8x128xf32> to vector<2x8x16xf32>
    %47 = arith.truncf %46 : vector<2x8x16xf32> to vector<2x8x16xbf16>
    "tpu.trace_start"() <{level = 10 : i32, message = "btd,bsd->bts"}> : () -> ()
    %cst_12 = arith.constant dense<0.000000e+00> : vector<2x8x8xf32>
    %48 = tpu.matmul %43, %45, %cst_12 {dimension_numbers = #tpu.dot_dimension_numbers<[2], [2], [1], [1], [0, 0, 0, 1, 1, 1], [0], [0]>} : vector<2x8x16xbf16>, vector<2x8x16xbf16>, vector<2x8x8xf32> -> vector<2x8x8xf32>
    %cst_13 = arith.constant -9.99999995E+11 : f32
    "tpu.trace_stop"() : () -> ()
    %49 = vector.shape_cast %18 : vector<8x8xi1> to vector<1x8x8xi1>
    %50 = vector.broadcast %49 : vector<1x8x8xi1> to vector<2x8x8xi1>
    %51 = vector.broadcast %cst_13 : f32 to vector<2x8x8xf32>
    %52 = arith.select %50, %48, %51 : vector<2x8x8xi1>, vector<2x8x8xf32>
    %cst_14 = arith.constant dense<0xFF800000> : vector<2x8xf32>
    %53 = vector.multi_reduction <maximumf>, %52, %cst_14 [2] : vector<2x8x8xf32> to vector<2x8xf32>
    %54 = vector.shape_cast %53 : vector<2x8xf32> to vector<2x8x1xf32>
    %55 = vector.broadcast %54 : vector<2x8x1xf32> to vector<2x8x8xf32>
    %56 = arith.subf %52, %55 : vector<2x8x8xf32>
    %57 = math.exp %56 : vector<2x8x8xf32>
    %cst_15 = arith.constant dense<0.000000e+00> : vector<2x8xf32>
    %58 = vector.multi_reduction <add>, %57, %cst_15 [2] : vector<2x8x8xf32> to vector<2x8xf32>
    %59 = vector.shape_cast %58 : vector<2x8xf32> to vector<2x8x1xf32>
    %60 = tpu.reciprocal %59 {approx = true} : vector<2x8x1xf32> -> vector<2x8x1xf32>
    %61 = vector.broadcast %60 : vector<2x8x1xf32> to vector<2x8x8xf32>
    %62 = arith.mulf %57, %61 : vector<2x8x8xf32>
    %63 = arith.truncf %62 : vector<2x8x8xf32> to vector<2x8x8xbf16>
    "tpu.trace_start"() <{level = 10 : i32, message = "bts,bsd->btd"}> : () -> ()
    %cst_16 = arith.constant dense<0.000000e+00> : vector<2x8x16xf32>
    %64 = tpu.matmul %63, %47, %cst_16 {dimension_numbers = #tpu.dot_dimension_numbers<[2], [1], [1], [2], [0, 0, 0, 1, 1, 2], [0], [0]>} : vector<2x8x8xbf16>, vector<2x8x16xbf16>, vector<2x8x16xf32> -> vector<2x8x16xf32>
    "tpu.trace_stop"() : () -> ()
    %65 = vector.extract_strided_slice %13 {offsets = [0, 0, 32], sizes = [2, 8, 16], strides = [1, 1, 1]} : vector<2x8x128xf32> to vector<2x8x16xf32>
    %66 = arith.truncf %65 : vector<2x8x16xf32> to vector<2x8x16xbf16>
    %67 = vector.extract_strided_slice %14 {offsets = [0, 0, 32], sizes = [2, 8, 16], strides = [1, 1, 1]} : vector<2x8x128xf32> to vector<2x8x16xf32>
    %68 = arith.truncf %67 : vector<2x8x16xf32> to vector<2x8x16xbf16>
    %69 = vector.extract_strided_slice %15 {offsets = [0, 0, 32], sizes = [2, 8, 16], strides = [1, 1, 1]} : vector<2x8x128xf32> to vector<2x8x16xf32>
    %70 = arith.truncf %69 : vector<2x8x16xf32> to vector<2x8x16xbf16>
    "tpu.trace_start"() <{level = 10 : i32, message = "btd,bsd->bts"}> : () -> ()
    %cst_17 = arith.constant dense<0.000000e+00> : vector<2x8x8xf32>
    %71 = tpu.matmul %66, %68, %cst_17 {dimension_numbers = #tpu.dot_dimension_numbers<[2], [2], [1], [1], [0, 0, 0, 1, 1, 1], [0], [0]>} : vector<2x8x16xbf16>, vector<2x8x16xbf16>, vector<2x8x8xf32> -> vector<2x8x8xf32>
    %cst_18 = arith.constant -9.99999995E+11 : f32
    "tpu.trace_stop"() : () -> ()
    %72 = vector.shape_cast %18 : vector<8x8xi1> to vector<1x8x8xi1>
    %73 = vector.broadcast %72 : vector<1x8x8xi1> to vector<2x8x8xi1>
    %74 = vector.broadcast %cst_18 : f32 to vector<2x8x8xf32>
    %75 = arith.select %73, %71, %74 : vector<2x8x8xi1>, vector<2x8x8xf32>
    %cst_19 = arith.constant dense<0xFF800000> : vector<2x8xf32>
    %76 = vector.multi_reduction <maximumf>, %75, %cst_19 [2] : vector<2x8x8xf32> to vector<2x8xf32>
    %77 = vector.shape_cast %76 : vector<2x8xf32> to vector<2x8x1xf32>
    %78 = vector.broadcast %77 : vector<2x8x1xf32> to vector<2x8x8xf32>
    %79 = arith.subf %75, %78 : vector<2x8x8xf32>
    %80 = math.exp %79 : vector<2x8x8xf32>
    %cst_20 = arith.constant dense<0.000000e+00> : vector<2x8xf32>
    %81 = vector.multi_reduction <add>, %80, %cst_20 [2] : vector<2x8x8xf32> to vector<2x8xf32>
    %82 = vector.shape_cast %81 : vector<2x8xf32> to vector<2x8x1xf32>
    %83 = tpu.reciprocal %82 {approx = true} : vector<2x8x1xf32> -> vector<2x8x1xf32>
    %84 = vector.broadcast %83 : vector<2x8x1xf32> to vector<2x8x8xf32>
    %85 = arith.mulf %80, %84 : vector<2x8x8xf32>
    %86 = arith.truncf %85 : vector<2x8x8xf32> to vector<2x8x8xbf16>
    "tpu.trace_start"() <{level = 10 : i32, message = "bts,bsd->btd"}> : () -> ()
    %cst_21 = arith.constant dense<0.000000e+00> : vector<2x8x16xf32>
    %87 = tpu.matmul %86, %70, %cst_21 {dimension_numbers = #tpu.dot_dimension_numbers<[2], [1], [1], [2], [0, 0, 0, 1, 1, 2], [0], [0]>} : vector<2x8x8xbf16>, vector<2x8x16xbf16>, vector<2x8x16xf32> -> vector<2x8x16xf32>
    "tpu.trace_stop"() : () -> ()
    %88 = vector.extract_strided_slice %13 {offsets = [0, 0, 48], sizes = [2, 8, 16], strides = [1, 1, 1]} : vector<2x8x128xf32> to vector<2x8x16xf32>
    %89 = arith.truncf %88 : vector<2x8x16xf32> to vector<2x8x16xbf16>
    %90 = vector.extract_strided_slice %14 {offsets = [0, 0, 48], sizes = [2, 8, 16], strides = [1, 1, 1]} : vector<2x8x128xf32> to vector<2x8x16xf32>
    %91 = arith.truncf %90 : vector<2x8x16xf32> to vector<2x8x16xbf16>
    %92 = vector.extract_strided_slice %15 {offsets = [0, 0, 48], sizes = [2, 8, 16], strides = [1, 1, 1]} : vector<2x8x128xf32> to vector<2x8x16xf32>
    %93 = arith.truncf %92 : vector<2x8x16xf32> to vector<2x8x16xbf16>
    "tpu.trace_start"() <{level = 10 : i32, message = "btd,bsd->bts"}> : () -> ()
    %cst_22 = arith.constant dense<0.000000e+00> : vector<2x8x8xf32>
    %94 = tpu.matmul %89, %91, %cst_22 {dimension_numbers = #tpu.dot_dimension_numbers<[2], [2], [1], [1], [0, 0, 0, 1, 1, 1], [0], [0]>} : vector<2x8x16xbf16>, vector<2x8x16xbf16>, vector<2x8x8xf32> -> vector<2x8x8xf32>
    %cst_23 = arith.constant -9.99999995E+11 : f32
    "tpu.trace_stop"() : () -> ()
    %95 = vector.shape_cast %18 : vector<8x8xi1> to vector<1x8x8xi1>
    %96 = vector.broadcast %95 : vector<1x8x8xi1> to vector<2x8x8xi1>
    %97 = vector.broadcast %cst_23 : f32 to vector<2x8x8xf32>
    %98 = arith.select %96, %94, %97 : vector<2x8x8xi1>, vector<2x8x8xf32>
    %cst_24 = arith.constant dense<0xFF800000> : vector<2x8xf32>
    %99 = vector.multi_reduction <maximumf>, %98, %cst_24 [2] : vector<2x8x8xf32> to vector<2x8xf32>
    %100 = vector.shape_cast %99 : vector<2x8xf32> to vector<2x8x1xf32>
    %101 = vector.broadcast %100 : vector<2x8x1xf32> to vector<2x8x8xf32>
    %102 = arith.subf %98, %101 : vector<2x8x8xf32>
    %103 = math.exp %102 : vector<2x8x8xf32>
    %cst_25 = arith.constant dense<0.000000e+00> : vector<2x8xf32>
    %104 = vector.multi_reduction <add>, %103, %cst_25 [2] : vector<2x8x8xf32> to vector<2x8xf32>
    %105 = vector.shape_cast %104 : vector<2x8xf32> to vector<2x8x1xf32>
    %106 = tpu.reciprocal %105 {approx = true} : vector<2x8x1xf32> -> vector<2x8x1xf32>
    %107 = vector.broadcast %106 : vector<2x8x1xf32> to vector<2x8x8xf32>
    %108 = arith.mulf %103, %107 : vector<2x8x8xf32>
    %109 = arith.truncf %108 : vector<2x8x8xf32> to vector<2x8x8xbf16>
    "tpu.trace_start"() <{level = 10 : i32, message = "bts,bsd->btd"}> : () -> ()
    %cst_26 = arith.constant dense<0.000000e+00> : vector<2x8x16xf32>
    %110 = tpu.matmul %109, %93, %cst_26 {dimension_numbers = #tpu.dot_dimension_numbers<[2], [1], [1], [2], [0, 0, 0, 1, 1, 2], [0], [0]>} : vector<2x8x8xbf16>, vector<2x8x16xbf16>, vector<2x8x16xf32> -> vector<2x8x16xf32>
    "tpu.trace_stop"() : () -> ()
    %111 = vector.extract_strided_slice %13 {offsets = [0, 0, 64], sizes = [2, 8, 16], strides = [1, 1, 1]} : vector<2x8x128xf32> to vector<2x8x16xf32>
    %112 = arith.truncf %111 : vector<2x8x16xf32> to vector<2x8x16xbf16>
    %113 = vector.extract_strided_slice %14 {offsets = [0, 0, 64], sizes = [2, 8, 16], strides = [1, 1, 1]} : vector<2x8x128xf32> to vector<2x8x16xf32>
    %114 = arith.truncf %113 : vector<2x8x16xf32> to vector<2x8x16xbf16>
    %115 = vector.extract_strided_slice %15 {offsets = [0, 0, 64], sizes = [2, 8, 16], strides = [1, 1, 1]} : vector<2x8x128xf32> to vector<2x8x16xf32>
    %116 = arith.truncf %115 : vector<2x8x16xf32> to vector<2x8x16xbf16>
    "tpu.trace_start"() <{level = 10 : i32, message = "btd,bsd->bts"}> : () -> ()
    %cst_27 = arith.constant dense<0.000000e+00> : vector<2x8x8xf32>
    %117 = tpu.matmul %112, %114, %cst_27 {dimension_numbers = #tpu.dot_dimension_numbers<[2], [2], [1], [1], [0, 0, 0, 1, 1, 1], [0], [0]>} : vector<2x8x16xbf16>, vector<2x8x16xbf16>, vector<2x8x8xf32> -> vector<2x8x8xf32>
    %cst_28 = arith.constant -9.99999995E+11 : f32
    "tpu.trace_stop"() : () -> ()
    %118 = vector.shape_cast %18 : vector<8x8xi1> to vector<1x8x8xi1>
    %119 = vector.broadcast %118 : vector<1x8x8xi1> to vector<2x8x8xi1>
    %120 = vector.broadcast %cst_28 : f32 to vector<2x8x8xf32>
    %121 = arith.select %119, %117, %120 : vector<2x8x8xi1>, vector<2x8x8xf32>
    %cst_29 = arith.constant dense<0xFF800000> : vector<2x8xf32>
    %122 = vector.multi_reduction <maximumf>, %121, %cst_29 [2] : vector<2x8x8xf32> to vector<2x8xf32>
    %123 = vector.shape_cast %122 : vector<2x8xf32> to vector<2x8x1xf32>
    %124 = vector.broadcast %123 : vector<2x8x1xf32> to vector<2x8x8xf32>
    %125 = arith.subf %121, %124 : vector<2x8x8xf32>
    %126 = math.exp %125 : vector<2x8x8xf32>
    %cst_30 = arith.constant dense<0.000000e+00> : vector<2x8xf32>
    %127 = vector.multi_reduction <add>, %126, %cst_30 [2] : vector<2x8x8xf32> to vector<2x8xf32>
    %128 = vector.shape_cast %127 : vector<2x8xf32> to vector<2x8x1xf32>
    %129 = tpu.reciprocal %128 {approx = true} : vector<2x8x1xf32> -> vector<2x8x1xf32>
    %130 = vector.broadcast %129 : vector<2x8x1xf32> to vector<2x8x8xf32>
    %131 = arith.mulf %126, %130 : vector<2x8x8xf32>
    %132 = arith.truncf %131 : vector<2x8x8xf32> to vector<2x8x8xbf16>
    "tpu.trace_start"() <{level = 10 : i32, message = "bts,bsd->btd"}> : () -> ()
    %cst_31 = arith.constant dense<0.000000e+00> : vector<2x8x16xf32>
    %133 = tpu.matmul %132, %116, %cst_31 {dimension_numbers = #tpu.dot_dimension_numbers<[2], [1], [1], [2], [0, 0, 0, 1, 1, 2], [0], [0]>} : vector<2x8x8xbf16>, vector<2x8x16xbf16>, vector<2x8x16xf32> -> vector<2x8x16xf32>
    "tpu.trace_stop"() : () -> ()
    %134 = vector.extract_strided_slice %13 {offsets = [0, 0, 80], sizes = [2, 8, 16], strides = [1, 1, 1]} : vector<2x8x128xf32> to vector<2x8x16xf32>
    %135 = arith.truncf %134 : vector<2x8x16xf32> to vector<2x8x16xbf16>
    %136 = vector.extract_strided_slice %14 {offsets = [0, 0, 80], sizes = [2, 8, 16], strides = [1, 1, 1]} : vector<2x8x128xf32> to vector<2x8x16xf32>
    %137 = arith.truncf %136 : vector<2x8x16xf32> to vector<2x8x16xbf16>
    %138 = vector.extract_strided_slice %15 {offsets = [0, 0, 80], sizes = [2, 8, 16], strides = [1, 1, 1]} : vector<2x8x128xf32> to vector<2x8x16xf32>
    %139 = arith.truncf %138 : vector<2x8x16xf32> to vector<2x8x16xbf16>
    "tpu.trace_start"() <{level = 10 : i32, message = "btd,bsd->bts"}> : () -> ()
    %cst_32 = arith.constant dense<0.000000e+00> : vector<2x8x8xf32>
    %140 = tpu.matmul %135, %137, %cst_32 {dimension_numbers = #tpu.dot_dimension_numbers<[2], [2], [1], [1], [0, 0, 0, 1, 1, 1], [0], [0]>} : vector<2x8x16xbf16>, vector<2x8x16xbf16>, vector<2x8x8xf32> -> vector<2x8x8xf32>
    %cst_33 = arith.constant -9.99999995E+11 : f32
    "tpu.trace_stop"() : () -> ()
    %141 = vector.shape_cast %18 : vector<8x8xi1> to vector<1x8x8xi1>
    %142 = vector.broadcast %141 : vector<1x8x8xi1> to vector<2x8x8xi1>
    %143 = vector.broadcast %cst_33 : f32 to vector<2x8x8xf32>
    %144 = arith.select %142, %140, %143 : vector<2x8x8xi1>, vector<2x8x8xf32>
    %cst_34 = arith.constant dense<0xFF800000> : vector<2x8xf32>
    %145 = vector.multi_reduction <maximumf>, %144, %cst_34 [2] : vector<2x8x8xf32> to vector<2x8xf32>
    %146 = vector.shape_cast %145 : vector<2x8xf32> to vector<2x8x1xf32>
    %147 = vector.broadcast %146 : vector<2x8x1xf32> to vector<2x8x8xf32>
    %148 = arith.subf %144, %147 : vector<2x8x8xf32>
    %149 = math.exp %148 : vector<2x8x8xf32>
    %cst_35 = arith.constant dense<0.000000e+00> : vector<2x8xf32>
    %150 = vector.multi_reduction <add>, %149, %cst_35 [2] : vector<2x8x8xf32> to vector<2x8xf32>
    %151 = vector.shape_cast %150 : vector<2x8xf32> to vector<2x8x1xf32>
    %152 = tpu.reciprocal %151 {approx = true} : vector<2x8x1xf32> -> vector<2x8x1xf32>
    %153 = vector.broadcast %152 : vector<2x8x1xf32> to vector<2x8x8xf32>
    %154 = arith.mulf %149, %153 : vector<2x8x8xf32>
    %155 = arith.truncf %154 : vector<2x8x8xf32> to vector<2x8x8xbf16>
    "tpu.trace_start"() <{level = 10 : i32, message = "bts,bsd->btd"}> : () -> ()
    %cst_36 = arith.constant dense<0.000000e+00> : vector<2x8x16xf32>
    %156 = tpu.matmul %155, %139, %cst_36 {dimension_numbers = #tpu.dot_dimension_numbers<[2], [1], [1], [2], [0, 0, 0, 1, 1, 2], [0], [0]>} : vector<2x8x8xbf16>, vector<2x8x16xbf16>, vector<2x8x16xf32> -> vector<2x8x16xf32>
    "tpu.trace_stop"() : () -> ()
    %157 = vector.extract_strided_slice %13 {offsets = [0, 0, 96], sizes = [2, 8, 16], strides = [1, 1, 1]} : vector<2x8x128xf32> to vector<2x8x16xf32>
    %158 = arith.truncf %157 : vector<2x8x16xf32> to vector<2x8x16xbf16>
    %159 = vector.extract_strided_slice %14 {offsets = [0, 0, 96], sizes = [2, 8, 16], strides = [1, 1, 1]} : vector<2x8x128xf32> to vector<2x8x16xf32>
    %160 = arith.truncf %159 : vector<2x8x16xf32> to vector<2x8x16xbf16>
    %161 = vector.extract_strided_slice %15 {offsets = [0, 0, 96], sizes = [2, 8, 16], strides = [1, 1, 1]} : vector<2x8x128xf32> to vector<2x8x16xf32>
    %162 = arith.truncf %161 : vector<2x8x16xf32> to vector<2x8x16xbf16>
    "tpu.trace_start"() <{level = 10 : i32, message = "btd,bsd->bts"}> : () -> ()
    %cst_37 = arith.constant dense<0.000000e+00> : vector<2x8x8xf32>
    %163 = tpu.matmul %158, %160, %cst_37 {dimension_numbers = #tpu.dot_dimension_numbers<[2], [2], [1], [1], [0, 0, 0, 1, 1, 1], [0], [0]>} : vector<2x8x16xbf16>, vector<2x8x16xbf16>, vector<2x8x8xf32> -> vector<2x8x8xf32>
    %cst_38 = arith.constant -9.99999995E+11 : f32
    "tpu.trace_stop"() : () -> ()
    %164 = vector.shape_cast %18 : vector<8x8xi1> to vector<1x8x8xi1>
    %165 = vector.broadcast %164 : vector<1x8x8xi1> to vector<2x8x8xi1>
    %166 = vector.broadcast %cst_38 : f32 to vector<2x8x8xf32>
    %167 = arith.select %165, %163, %166 : vector<2x8x8xi1>, vector<2x8x8xf32>
    %cst_39 = arith.constant dense<0xFF800000> : vector<2x8xf32>
    %168 = vector.multi_reduction <maximumf>, %167, %cst_39 [2] : vector<2x8x8xf32> to vector<2x8xf32>
    %169 = vector.shape_cast %168 : vector<2x8xf32> to vector<2x8x1xf32>
    %170 = vector.broadcast %169 : vector<2x8x1xf32> to vector<2x8x8xf32>
    %171 = arith.subf %167, %170 : vector<2x8x8xf32>
    %172 = math.exp %171 : vector<2x8x8xf32>
    %cst_40 = arith.constant dense<0.000000e+00> : vector<2x8xf32>
    %173 = vector.multi_reduction <add>, %172, %cst_40 [2] : vector<2x8x8xf32> to vector<2x8xf32>
    %174 = vector.shape_cast %173 : vector<2x8xf32> to vector<2x8x1xf32>
    %175 = tpu.reciprocal %174 {approx = true} : vector<2x8x1xf32> -> vector<2x8x1xf32>
    %176 = vector.broadcast %175 : vector<2x8x1xf32> to vector<2x8x8xf32>
    %177 = arith.mulf %172, %176 : vector<2x8x8xf32>
    %178 = arith.truncf %177 : vector<2x8x8xf32> to vector<2x8x8xbf16>
    "tpu.trace_start"() <{level = 10 : i32, message = "bts,bsd->btd"}> : () -> ()
    %cst_41 = arith.constant dense<0.000000e+00> : vector<2x8x16xf32>
    %179 = tpu.matmul %178, %162, %cst_41 {dimension_numbers = #tpu.dot_dimension_numbers<[2], [1], [1], [2], [0, 0, 0, 1, 1, 2], [0], [0]>} : vector<2x8x8xbf16>, vector<2x8x16xbf16>, vector<2x8x16xf32> -> vector<2x8x16xf32>
    "tpu.trace_stop"() : () -> ()
    %180 = vector.extract_strided_slice %13 {offsets = [0, 0, 112], sizes = [2, 8, 16], strides = [1, 1, 1]} : vector<2x8x128xf32> to vector<2x8x16xf32>
    %181 = arith.truncf %180 : vector<2x8x16xf32> to vector<2x8x16xbf16>
    %182 = vector.extract_strided_slice %14 {offsets = [0, 0, 112], sizes = [2, 8, 16], strides = [1, 1, 1]} : vector<2x8x128xf32> to vector<2x8x16xf32>
    %183 = arith.truncf %182 : vector<2x8x16xf32> to vector<2x8x16xbf16>
    %184 = vector.extract_strided_slice %15 {offsets = [0, 0, 112], sizes = [2, 8, 16], strides = [1, 1, 1]} : vector<2x8x128xf32> to vector<2x8x16xf32>
    %185 = arith.truncf %184 : vector<2x8x16xf32> to vector<2x8x16xbf16>
    "tpu.trace_start"() <{level = 10 : i32, message = "btd,bsd->bts"}> : () -> ()
    %cst_42 = arith.constant dense<0.000000e+00> : vector<2x8x8xf32>
    %186 = tpu.matmul %181, %183, %cst_42 {dimension_numbers = #tpu.dot_dimension_numbers<[2], [2], [1], [1], [0, 0, 0, 1, 1, 1], [0], [0]>} : vector<2x8x16xbf16>, vector<2x8x16xbf16>, vector<2x8x8xf32> -> vector<2x8x8xf32>
    %cst_43 = arith.constant -9.99999995E+11 : f32
    "tpu.trace_stop"() : () -> ()
    %187 = vector.shape_cast %18 : vector<8x8xi1> to vector<1x8x8xi1>
    %188 = vector.broadcast %187 : vector<1x8x8xi1> to vector<2x8x8xi1>
    %189 = vector.broadcast %cst_43 : f32 to vector<2x8x8xf32>
    %190 = arith.select %188, %186, %189 : vector<2x8x8xi1>, vector<2x8x8xf32>
    %cst_44 = arith.constant dense<0xFF800000> : vector<2x8xf32>
    %191 = vector.multi_reduction <maximumf>, %190, %cst_44 [2] : vector<2x8x8xf32> to vector<2x8xf32>
    %192 = vector.shape_cast %191 : vector<2x8xf32> to vector<2x8x1xf32>
    %193 = vector.broadcast %192 : vector<2x8x1xf32> to vector<2x8x8xf32>
    %194 = arith.subf %190, %193 : vector<2x8x8xf32>
    %195 = math.exp %194 : vector<2x8x8xf32>
    %cst_45 = arith.constant dense<0.000000e+00> : vector<2x8xf32>
    %196 = vector.multi_reduction <add>, %195, %cst_45 [2] : vector<2x8x8xf32> to vector<2x8xf32>
    %197 = vector.shape_cast %196 : vector<2x8xf32> to vector<2x8x1xf32>
    %198 = tpu.reciprocal %197 {approx = true} : vector<2x8x1xf32> -> vector<2x8x1xf32>
    %199 = vector.broadcast %198 : vector<2x8x1xf32> to vector<2x8x8xf32>
    %200 = arith.mulf %195, %199 : vector<2x8x8xf32>
    %201 = arith.truncf %200 : vector<2x8x8xf32> to vector<2x8x8xbf16>
    "tpu.trace_start"() <{level = 10 : i32, message = "bts,bsd->btd"}> : () -> ()
    %cst_46 = arith.constant dense<0.000000e+00> : vector<2x8x16xf32>
    %202 = tpu.matmul %201, %185, %cst_46 {dimension_numbers = #tpu.dot_dimension_numbers<[2], [1], [1], [2], [0, 0, 0, 1, 1, 2], [0], [0]>} : vector<2x8x8xbf16>, vector<2x8x16xbf16>, vector<2x8x16xf32> -> vector<2x8x16xf32>
    "tpu.trace_stop"() : () -> ()
    %203 = tpu.concatenate %41, %64, %87, %110, %133, %156, %179, %202 in 2 : vector<2x8x16xf32>, vector<2x8x16xf32>, vector<2x8x16xf32>, vector<2x8x16xf32>, vector<2x8x16xf32>, vector<2x8x16xf32>, vector<2x8x16xf32>, vector<2x8x16xf32> -> vector<2x8x128xf32>
    %204 = vector.shape_cast %203 : vector<2x8x128xf32> to vector<16x128xf32>
    %205 = arith.truncf %204 : vector<16x128xf32> to vector<16x128xbf16>
    %c0_47 = arith.constant 0 : index
    %c0_48 = arith.constant 0 : index
    %206 = vector.load %arg4[%c0_47, %c0_48] : memref<128x128xbf16, #tpu.memory_space<vmem>>, vector<128x128xbf16>
    %cst_49 = arith.constant dense<0.000000e+00> : vector<16x128xf32>
    %207 = tpu.matmul %205, %206, %cst_49 {dimension_numbers = #tpu.dot_dimension_numbers<[1], [0], [0], [1], [0, 0, 1, 1], [], []>} : vector<16x128xbf16>, vector<128x128xbf16>, vector<16x128xf32> -> vector<16x128xf32>
    %c0_50 = arith.constant 0 : index
    %c0_51 = arith.constant 0 : index
    %208 = vector.load %arg5[%c0_50, %c0_51] : memref<1x128xf32, #tpu.memory_space<vmem>>, vector<1x128xf32>
    %209 = vector.broadcast %208 : vector<1x128xf32> to vector<16x128xf32>
    %210 = arith.addf %207, %209 : vector<16x128xf32>
    %211 = arith.addf %210, %1 : vector<16x128xf32>
    %c0_52 = arith.constant 0 : index
    %c0_53 = arith.constant 0 : index
    %212 = vector.load %arg6[%c0_52, %c0_53] : memref<1x128xf32, #tpu.memory_space<vmem>>, vector<1x128xf32>
    %c0_54 = arith.constant 0 : index
    %c0_55 = arith.constant 0 : index
    %213 = vector.load %arg7[%c0_54, %c0_55] : memref<1x128xf32, #tpu.memory_space<vmem>>, vector<1x128xf32>
    %cst_56 = arith.constant dense<0.000000e+00> : vector<16xf32>
    %214 = vector.multi_reduction <add>, %211, %cst_56 [1] : vector<16x128xf32> to vector<16xf32>
    %215 = vector.shape_cast %214 : vector<16xf32> to vector<16x1xf32>
    %cst_57 = arith.constant 1.280000e+02 : f32
    %216 = vector.broadcast %cst_57 : f32 to vector<16x1xf32>
    %217 = arith.divf %215, %216 : vector<16x1xf32>
    %218 = vector.broadcast %217 : vector<16x1xf32> to vector<16x128xf32>
    %219 = arith.subf %211, %218 : vector<16x128xf32>
    %220 = arith.mulf %219, %219 : vector<16x128xf32>
    %cst_58 = arith.constant dense<0.000000e+00> : vector<16xf32>
    %221 = vector.multi_reduction <add>, %220, %cst_58 [1] : vector<16x128xf32> to vector<16xf32>
    %222 = vector.shape_cast %221 : vector<16xf32> to vector<16x1xf32>
    %cst_59 = arith.constant 1.280000e+02 : f32
    %223 = vector.broadcast %cst_59 : f32 to vector<16x1xf32>
    %224 = arith.divf %222, %223 : vector<16x1xf32>
    %225 = vector.broadcast %217 : vector<16x1xf32> to vector<16x128xf32>
    %226 = arith.subf %211, %225 : vector<16x128xf32>
    %cst_60 = arith.constant 9.99999974E-6 : f32
    %227 = vector.broadcast %cst_60 : f32 to vector<16x1xf32>
    %228 = arith.addf %224, %227 : vector<16x1xf32>
    %229 = math.rsqrt %228 : vector<16x1xf32>
    %230 = vector.broadcast %229 : vector<16x1xf32> to vector<16x128xf32>
    %231 = arith.mulf %226, %230 : vector<16x128xf32>
    %232 = vector.broadcast %212 : vector<1x128xf32> to vector<16x128xf32>
    %233 = arith.mulf %231, %232 : vector<16x128xf32>
    %234 = vector.broadcast %213 : vector<1x128xf32> to vector<16x128xf32>
    %235 = arith.addf %233, %234 : vector<16x128xf32>
    %236 = arith.truncf %235 : vector<16x128xf32> to vector<16x128xbf16>
    %c0_61 = arith.constant 0 : index
    %c0_62 = arith.constant 0 : index
    %237 = vector.load %arg8[%c0_61, %c0_62] : memref<128x512xbf16, #tpu.memory_space<vmem>>, vector<128x512xbf16>
    %cst_63 = arith.constant dense<0.000000e+00> : vector<16x512xf32>
    %238 = tpu.matmul %236, %237, %cst_63 {dimension_numbers = #tpu.dot_dimension_numbers<[1], [0], [0], [1], [0, 0, 1, 1], [], []>} : vector<16x128xbf16>, vector<128x512xbf16>, vector<16x512xf32> -> vector<16x512xf32>
    %c0_64 = arith.constant 0 : index
    %c0_65 = arith.constant 0 : index
    %239 = vector.load %arg9[%c0_64, %c0_65] : memref<1x512xf32, #tpu.memory_space<vmem>>, vector<1x512xf32>
    %240 = vector.broadcast %239 : vector<1x512xf32> to vector<16x512xf32>
    %241 = arith.addf %238, %240 : vector<16x512xf32>
    %242 = arith.mulf %241, %241 : vector<16x512xf32>
    %243 = arith.mulf %241, %242 : vector<16x512xf32>
    %cst_66 = arith.constant 4.471500e-02 : f32
    %244 = vector.broadcast %cst_66 : f32 to vector<16x512xf32>
    %245 = arith.mulf %244, %243 : vector<16x512xf32>
    %246 = arith.addf %241, %245 : vector<16x512xf32>
    %cst_67 = arith.constant 0.797884583 : f32
    %247 = vector.broadcast %cst_67 : f32 to vector<16x512xf32>
    %248 = arith.mulf %247, %246 : vector<16x512xf32>
    %249 = math.tanh %248 : vector<16x512xf32>
    %cst_68 = arith.constant 1.000000e+00 : f32
    %250 = vector.broadcast %cst_68 : f32 to vector<16x512xf32>
    %251 = arith.addf %250, %249 : vector<16x512xf32>
    %cst_69 = arith.constant 5.000000e-01 : f32
    %252 = vector.broadcast %cst_69 : f32 to vector<16x512xf32>
    %253 = arith.mulf %252, %251 : vector<16x512xf32>
    %254 = arith.mulf %241, %253 : vector<16x512xf32>
    %255 = arith.truncf %254 : vector<16x512xf32> to vector<16x512xbf16>
    %c0_70 = arith.constant 0 : index
    %c0_71 = arith.constant 0 : index
    %256 = vector.load %arg10[%c0_70, %c0_71] : memref<512x128xbf16, #tpu.memory_space<vmem>>, vector<512x128xbf16>
    %cst_72 = arith.constant dense<0.000000e+00> : vector<16x128xf32>
    %257 = tpu.matmul %255, %256, %cst_72 {dimension_numbers = #tpu.dot_dimension_numbers<[1], [0], [0], [1], [0, 0, 1, 1], [], []>} : vector<16x512xbf16>, vector<512x128xbf16>, vector<16x128xf32> -> vector<16x128xf32>
    %c0_73 = arith.constant 0 : index
    %c0_74 = arith.constant 0 : index
    %258 = vector.load %arg11[%c0_73, %c0_74] : memref<1x128xf32, #tpu.memory_space<vmem>>, vector<1x128xf32>
    %259 = vector.broadcast %258 : vector<1x128xf32> to vector<16x128xf32>
    %260 = arith.addf %257, %259 : vector<16x128xf32>
    %261 = arith.addf %260, %235 : vector<16x128xf32>
    %c0_75 = arith.constant 0 : index
    %c0_76 = arith.constant 0 : index
    %262 = vector.load %arg12[%c0_75, %c0_76] : memref<1x128xf32, #tpu.memory_space<vmem>>, vector<1x128xf32>
    %c0_77 = arith.constant 0 : index
    %c0_78 = arith.constant 0 : index
    %263 = vector.load %arg13[%c0_77, %c0_78] : memref<1x128xf32, #tpu.memory_space<vmem>>, vector<1x128xf32>
    %cst_79 = arith.constant dense<0.000000e+00> : vector<16xf32>
    %264 = vector.multi_reduction <add>, %261, %cst_79 [1] : vector<16x128xf32> to vector<16xf32>
    %265 = vector.shape_cast %264 : vector<16xf32> to vector<16x1xf32>
    %cst_80 = arith.constant 1.280000e+02 : f32
    %266 = vector.broadcast %cst_80 : f32 to vector<16x1xf32>
    %267 = arith.divf %265, %266 : vector<16x1xf32>
    %268 = vector.broadcast %267 : vector<16x1xf32> to vector<16x128xf32>
    %269 = arith.subf %261, %268 : vector<16x128xf32>
    %270 = arith.mulf %269, %269 : vector<16x128xf32>
    %cst_81 = arith.constant dense<0.000000e+00> : vector<16xf32>
    %271 = vector.multi_reduction <add>, %270, %cst_81 [1] : vector<16x128xf32> to vector<16xf32>
    %272 = vector.shape_cast %271 : vector<16xf32> to vector<16x1xf32>
    %cst_82 = arith.constant 1.280000e+02 : f32
    %273 = vector.broadcast %cst_82 : f32 to vector<16x1xf32>
    %274 = arith.divf %272, %273 : vector<16x1xf32>
    %275 = vector.broadcast %267 : vector<16x1xf32> to vector<16x128xf32>
    %276 = arith.subf %261, %275 : vector<16x128xf32>
    %cst_83 = arith.constant 9.99999974E-6 : f32
    %277 = vector.broadcast %cst_83 : f32 to vector<16x1xf32>
    %278 = arith.addf %274, %277 : vector<16x1xf32>
    %279 = math.rsqrt %278 : vector<16x1xf32>
    %280 = vector.broadcast %279 : vector<16x1xf32> to vector<16x128xf32>
    %281 = arith.mulf %276, %280 : vector<16x128xf32>
    %282 = vector.broadcast %262 : vector<1x128xf32> to vector<16x128xf32>
    %283 = arith.mulf %281, %282 : vector<16x128xf32>
    %284 = vector.broadcast %263 : vector<1x128xf32> to vector<16x128xf32>
    %285 = arith.addf %283, %284 : vector<16x128xf32>
    %286 = vector.shape_cast %285 : vector<16x128xf32> to vector<2x8x128xf32>
    %c0_84 = arith.constant 0 : index
    %c0_85 = arith.constant 0 : index
    %c0_86 = arith.constant 0 : index
    %287 = vector.load %arg14[%c0_84, %c0_85, %c0_86] : memref<2x8x128xf32, #tpu.memory_space<vmem>>, vector<2x8x128xf32>
    tpu.vector_store %arg14[%c0_84, %c0_85, %c0_86], %286 {strides = array<i32>} : memref<2x8x128xf32, #tpu.memory_space<vmem>>, vector<2x8x128xf32>,
    return
  }
  func.func @transform_0(%arg0: i32) -> (i32, i32, i32) {
    %c0_i32 = arith.constant 0 : i32
    %c0_i32_0 = arith.constant 0 : i32
    %c0_i32_1 = arith.constant 0 : i32
    return %arg0, %c0_i32, %c0_i32_0 : i32, i32, i32
  }
  func.func @transform_1(%arg0: i32) -> (i32, i32) {
    %c0_i32 = arith.constant 0 : i32
    %c0_i32_0 = arith.constant 0 : i32
    %c0_i32_1 = arith.constant 0 : i32
    return %c0_i32, %c0_i32_0 : i32, i32
  }
  func.func @transform_2(%arg0: i32) -> (i32, i32) {
    %c0_i32 = arith.constant 0 : i32
    %c0_i32_0 = arith.constant 0 : i32
    %c0_i32_1 = arith.constant 0 : i32
    return %c0_i32, %c0_i32_0 : i32, i32
  }
  func.func @transform_3(%arg0: i32) -> (i32, i32) {
    %c0_i32 = arith.constant 0 : i32
    %c0_i32_0 = arith.constant 0 : i32
    %c0_i32_1 = arith.constant 0 : i32
    return %c0_i32, %c0_i32_0 : i32, i32
  }
  func.func @transform_4(%arg0: i32) -> (i32, i32) {
    %c0_i32 = arith.constant 0 : i32
    %c0_i32_0 = arith.constant 0 : i32
    %c0_i32_1 = arith.constant 0 : i32
    return %c0_i32, %c0_i32_0 : i32, i32
  }
  func.func @transform_5(%arg0: i32) -> (i32, i32) {
    %c0_i32 = arith.constant 0 : i32
    %c0_i32_0 = arith.constant 0 : i32
    %c0_i32_1 = arith.constant 0 : i32
    return %c0_i32, %c0_i32_0 : i32, i32
  }
  func.func @transform_6(%arg0: i32) -> (i32, i32) {
    %c0_i32 = arith.constant 0 : i32
    %c0_i32_0 = arith.constant 0 : i32
    %c0_i32_1 = arith.constant 0 : i32
    return %c0_i32, %c0_i32_0 : i32, i32
  }
  func.func @transform_7(%arg0: i32) -> (i32, i32) {
    %c0_i32 = arith.constant 0 : i32
    %c0_i32_0 = arith.constant 0 : i32
    %c0_i32_1 = arith.constant 0 : i32
    return %c0_i32, %c0_i32_0 : i32, i32
  }
  func.func @transform_8(%arg0: i32) -> (i32, i32) {
    %c0_i32 = arith.constant 0 : i32
    %c0_i32_0 = arith.constant 0 : i32
    %c0_i32_1 = arith.constant 0 : i32
    return %c0_i32, %c0_i32_0 : i32, i32
  }
  func.func @transform_9(%arg0: i32) -> (i32, i32) {
    %c0_i32 = arith.constant 0 : i32
    %c0_i32_0 = arith.constant 0 : i32
    %c0_i32_1 = arith.constant 0 : i32
    return %c0_i32, %c0_i32_0 : i32, i32
  }
  func.func @transform_10(%arg0: i32) -> (i32, i32) {
    %c0_i32 = arith.constant 0 : i32
    %c0_i32_0 = arith.constant 0 : i32
    %c0_i32_1 = arith.constant 0 : i32
    return %c0_i32, %c0_i32_0 : i32, i32
  }
  func.func @transform_11(%arg0: i32) -> (i32, i32) {
    %c0_i32 = arith.constant 0 : i32
    %c0_i32_0 = arith.constant 0 : i32
    %c0_i32_1 = arith.constant 0 : i32
    return %c0_i32, %c0_i32_0 : i32, i32
  }
  func.func @transform_12(%arg0: i32) -> (i32, i32) {
    %c0_i32 = arith.constant 0 : i32
    %c0_i32_0 = arith.constant 0 : i32
    %c0_i32_1 = arith.constant 0 : i32
    return %c0_i32, %c0_i32_0 : i32, i32
  }
  func.func @transform_13(%arg0: i32) -> (i32, i32, i32) {
    %c0_i32 = arith.constant 0 : i32
    %c0_i32_0 = arith.constant 0 : i32
    %c0_i32_1 = arith.constant 0 : i32
    return %arg0, %c0_i32, %c0_i32_0 : i32, i32, i32
  }
}

</mosaic_0001>

<llo_original>
// kernel: tpu_custom_call.1
$region0: #{tpu_custom_call.1}
  #allocation0 [shape = 'u32[]', space=smem, size = 0x4, offset = 0x4, fixed_abs, tag = 'smem constant byte address 0x4 - core index']
  #allocation1 [shape = 'u32[144,128]{1,0:T(1,128)}', space=vmem, size = 0x12000, scoped, tag = 'internal scratch']
  %s0 = inlined_call_operand.hbm [shape: f32[2,8,128], index: 0, kind: input, shape index: {}]
  %s1 = inlined_call_operand.hbm [shape: bf16[128,384], index: 1, kind: input, shape index: {}]
  %s2 = inlined_call_operand.vmem [shape: f32[1,384], index: 2, kind: input, shape index: {}]
  %s3 = inlined_call_operand.hbm [shape: bf16[128,128], index: 3, kind: input, shape index: {}]
  %s4 = inlined_call_operand.hbm [shape: f32[1,128], index: 4, kind: input, shape index: {}]
  %s5 = inlined_call_operand.vmem [shape: f32[1,128], index: 5, kind: input, shape index: {}]
  %s6 = inlined_call_operand.vmem [shape: f32[1,128], index: 6, kind: input, shape index: {}]
  %s7 = inlined_call_operand.hbm [shape: bf16[128,512], index: 7, kind: input, shape index: {}]
  %s8 = inlined_call_operand.vmem [shape: f32[1,512], index: 8, kind: input, shape index: {}]
  %s9 = inlined_call_operand.hbm [shape: bf16[512,128], index: 9, kind: input, shape index: {}]
  %s10 = inlined_call_operand.vmem [shape: f32[1,128], index: 10, kind: input, shape index: {}]
  %s11 = inlined_call_operand.vmem [shape: f32[1,128], index: 11, kind: input, shape index: {}]
  %s12 = inlined_call_operand.vmem [shape: f32[1,128], index: 12, kind: input, shape index: {}]
  %s13 = inlined_call_operand.hbm [shape: f32[2,8,128], index: 13, kind: output, shape index: {}]
  %s14 = sld [smem:[#allocation0]]
  $region86: #{tpu_custom_call.1} parent=0
    _
  %s16 = ssub.s32 1, %s14
  %s17 = scalar_select 0, %s16, %s14
  $region1: #{tpu_custom_call.1} parent=0
    #allocation2 [shape = 'u8[8192]{0}', space=vmem, size = 0x2000, scoped, tag = 'input window, operand 0, single buffered']
    #allocation3 [shape = 's32[1]{0}', space=sflag, size = 0x4, scoped, tag = 'scoped memory for tpu_custom_call.1']
    #allocation4 [shape = 's32[1]{0}', space=sflag, size = 0x4, scoped, tag = 'scoped memory for tpu_custom_call.1']
    #allocation5 [shape = 'u8[98304]{0}', space=vmem, size = 0x18000, scoped, tag = 'input window, operand 1, single buffered']
    #allocation6 [shape = 's32[1]{0}', space=sflag, size = 0x4, scoped, tag = 'scoped memory for tpu_custom_call.1']
    #allocation7 [shape = 'u8[32768]{0}', space=vmem, size = 0x8000, scoped, tag = 'input window, operand 3, single buffered']
    #allocation8 [shape = 'u8[512]{0}', space=vmem, size = 0x400, scoped, tag = 'input window, operand 4, single buffered']
    #allocation9 [shape = 's32[1]{0}', space=sflag, size = 0x4, scoped, tag = 'scoped memory for tpu_custom_call.1']
    #allocation10 [shape = 'u8[131072]{0}', space=vmem, size = 0x20000, scoped, tag = 'input window, operand 7, single buffered']
    #allocation11 [shape = 'u8[131072]{0}', space=vmem, size = 0x20000, scoped, tag = 'input window, operand 9, single buffered']
    #allocation12 [shape = 's32[1]{0}', space=sflag, size = 0x4, scoped, tag = 'scoped memory for tpu_custom_call.1']
    #allocation13 [shape = 'u8[8192]{0}', space=vmem, size = 0x2000, scoped, tag = 'output window, operand 0, single buffered']
    %18 = vsyncpa [#allocation3], 0
    %19 = vsyncpa [#allocation6], 0
    %20 = vsyncpa [#allocation9], 0
    %21 = vsyncpa [#allocation12], 0
    %22 = vsyncpa [#allocation4], 0
    // Predicated region
    $region2: #{tpu_custom_call.1} parent=1 // pred_check
      _
    $region3: #{tpu_custom_call.1} parent=1 // pred_check_branch
      %24 = sbr.rel (0) target = $region5
    $region4: #{tpu_custom_call.1} parent=1 // pred_region
      %s26 = ssub.s32 256, 256
      %27 = vsyncadd [#allocation3], %s26
      %s28 = sshll.u32 [#allocation2], 4
      %s29 = int_to_ptr.vmem [resolvable:$true] %s28
      %34 = dma.hbm_to_vmem [thread:$0]  %s0, 256, %s29, [#allocation3], 128, 128, 8
    $region5: #{tpu_custom_call.1} parent=1 // pred_fallthru
      _
    // Predicated region
    $region6: #{tpu_custom_call.1} parent=1 // pred_check
      _
    $region7: #{tpu_custom_call.1} parent=1 // pred_check_branch
      %36 = sbr.rel (0) target = $region9
    $region8: #{tpu_custom_call.1} parent=1 // pred_region
      %s38 = ssub.s32 3072, 3072
      %39 = vsyncadd [#allocation6], %s38
      %s40 = sshll.u32 [#allocation5], 4
      %s41 = int_to_ptr.vmem [resolvable:$true] %s40
      %46 = dma.hbm_to_vmem [thread:$0]  %s1, 3072, %s41, [#allocation6], 192, 192, 12
    $region9: #{tpu_custom_call.1} parent=1 // pred_fallthru
      _
    // Predicated region
    $region10: #{tpu_custom_call.1} parent=1 // pred_check
      _
    $region11: #{tpu_custom_call.1} parent=1 // pred_check_branch
      %48 = sbr.rel (0) target = $region13
    $region12: #{tpu_custom_call.1} parent=1 // pred_region
      _
    $region13: #{tpu_custom_call.1} parent=1 // pred_fallthru
      _
    // Predicated region
    $region14: #{tpu_custom_call.1} parent=1 // pred_check
      _
    $region15: #{tpu_custom_call.1} parent=1 // pred_check_branch
      %50 = sbr.rel (0) target = $region17
    $region16: #{tpu_custom_call.1} parent=1 // pred_region
      %s52 = ssub.s32 1024, 1024
      %53 = vsyncadd [#allocation6], %s52
      %s54 = sshll.u32 [#allocation7], 4
      %s55 = int_to_ptr.vmem [resolvable:$true] %s54
      %60 = dma.hbm_to_vmem [thread:$0]  %s3, 1024, %s55, [#allocation6], 64, 64, 4
    $region17: #{tpu_custom_call.1} parent=1 // pred_fallthru
      _
    // Predicated region
    $region18: #{tpu_custom_call.1} parent=1 // pred_check
      _
    $region19: #{tpu_custom_call.1} parent=1 // pred_check_branch
      %62 = sbr.rel (0) target = $region21
    $region20: #{tpu_custom_call.1} parent=1 // pred_region
      %s64 = ssub.s32 16, 16
      %65 = vsyncadd [#allocation9], %s64
      %s67 = sshll.u32 [#allocation8], 4
      %s68 = int_to_ptr.vmem [resolvable:$true] %s67
      %70 = dma.hbm_to_vmem [thread:$0]  %s4, 16, %s68, [#allocation9]
    $region21: #{tpu_custom_call.1} parent=1 // pred_fallthru
      _
    // Predicated region
    $region22: #{tpu_custom_call.1} parent=1 // pred_check
      _
    $region23: #{tpu_custom_call.1} parent=1 // pred_check_branch
      %72 = sbr.rel (0) target = $region25
    $region24: #{tpu_custom_call.1} parent=1 // pred_region
      _
    $region25: #{tpu_custom_call.1} parent=1 // pred_fallthru
      _
    // Predicated region
    $region26: #{tpu_custom_call.1} parent=1 // pred_check
      _
    $region27: #{tpu_custom_call.1} parent=1 // pred_check_branch
      %74 = sbr.rel (0) target = $region29
    $region28: #{tpu_custom_call.1} parent=1 // pred_region
      _
    $region29: #{tpu_custom_call.1} parent=1 // pred_fallthru
      _
    // Predicated region
    $region30: #{tpu_custom_call.1} parent=1 // pred_check
      _
    $region31: #{tpu_custom_call.1} parent=1 // pred_check_branch
      %76 = sbr.rel (0) target = $region33
    $region32: #{tpu_custom_call.1} parent=1 // pred_region
      %s78 = ssub.s32 4096, 4096
      %79 = vsyncadd [#allocation9], %s78
      %s80 = sshll.u32 [#allocation10], 4
      %s81 = int_to_ptr.vmem [resolvable:$true] %s80
      %86 = dma.hbm_to_vmem [thread:$0]  %s7, 4096, %s81, [#allocation9], 256, 256, 16
    $region33: #{tpu_custom_call.1} parent=1 // pred_fallthru
      _
    // Predicated region
    $region34: #{tpu_custom_call.1} parent=1 // pred_check
      _
    $region35: #{tpu_custom_call.1} parent=1 // pred_check_branch
      %88 = sbr.rel (0) target = $region37
    $region36: #{tpu_custom_call.1} parent=1 // pred_region
      _
    $region37: #{tpu_custom_call.1} parent=1 // pred_fallthru
      _
    // Predicated region
    $region38: #{tpu_custom_call.1} parent=1 // pred_check
      _
    $region39: #{tpu_custom_call.1} parent=1 // pred_check_branch
      %90 = sbr.rel (0) target = $region41
    $region40: #{tpu_custom_call.1} parent=1 // pred_region
      %s92 = ssub.s32 4096, 4096
      %93 = vsyncadd [#allocation12], %s92
      %s94 = sshll.u32 [#allocation11], 4
      %s95 = int_to_ptr.vmem [resolvable:$true] %s94
      %100 = dma.hbm_to_vmem [thread:$0]  %s9, 4096, %s95, [#allocation12], 64, 64, 4
    $region41: #{tpu_custom_call.1} parent=1 // pred_fallthru
      _
    // Predicated region
    $region42: #{tpu_custom_call.1} parent=1 // pred_check
      _
    $region43: #{tpu_custom_call.1} parent=1 // pred_check_branch
      %102 = sbr.rel (0) target = $region45
    $region44: #{tpu_custom_call.1} parent=1 // pred_region
      _
    $region45: #{tpu_custom_call.1} parent=1 // pred_fallthru
      _
    // Predicated region
    $region46: #{tpu_custom_call.1} parent=1 // pred_check
      _
    $region47: #{tpu_custom_call.1} parent=1 // pred_check_branch
      %104 = sbr.rel (0) target = $region49
    $region48: #{tpu_custom_call.1} parent=1 // pred_region
      _
    $region49: #{tpu_custom_call.1} parent=1 // pred_fallthru
      _
    // Predicated region
    $region50: #{tpu_custom_call.1} parent=1 // pred_check
      _
    $region51: #{tpu_custom_call.1} parent=1 // pred_check_branch
      %106 = sbr.rel (0) target = $region53
    $region52: #{tpu_custom_call.1} parent=1 // pred_region
      _
    $region53: #{tpu_custom_call.1} parent=1 // pred_fallthru
      _
    // Predicated region
    $region54: #{tpu_custom_call.1} parent=1 // pred_check
      _
    $region55: #{tpu_custom_call.1} parent=1 // pred_check_branch
      %108 = sbr.rel (0) target = $region57
    $region56: #{tpu_custom_call.1} parent=1 // pred_region
      %109 = dma.done [#allocation3], 256
    $region57: #{tpu_custom_call.1} parent=1 // pred_fallthru
      _
    // Predicated region
    $region58: #{tpu_custom_call.1} parent=1 // pred_check
      _
    $region59: #{tpu_custom_call.1} parent=1 // pred_check_branch
      %111 = sbr.rel (0) target = $region61
    $region60: #{tpu_custom_call.1} parent=1 // pred_region
      %112 = dma.done [#allocation6], 3072
    $region61: #{tpu_custom_call.1} parent=1 // pred_fallthru
      _
    // Predicated region
    $region62: #{tpu_custom_call.1} parent=1 // pred_check
      _
    $region63: #{tpu_custom_call.1} parent=1 // pred_check_branch
      %114 = sbr.rel (0) target = $region65
    $region64: #{tpu_custom_call.1} parent=1 // pred_region
      %115 = dma.done [#allocation6], 1024
    $region65: #{tpu_custom_call.1} parent=1 // pred_fallthru
      _
    // Predicated region
    $region66: #{tpu_custom_call.1} parent=1 // pred_check
      _
    $region67: #{tpu_custom_call.1} parent=1 // pred_check_branch
      %117 = sbr.rel (0) target = $region69
    $region68: #{tpu_custom_call.1} parent=1 // pred_region
      %118 = dma.done [#allocation9], 16
    $region69: #{tpu_custom_call.1} parent=1 // pred_fallthru
      _
    // Predicated region
    $region70: #{tpu_custom_call.1} parent=1 // pred_check
      _
    $region71: #{tpu_custom_call.1} parent=1 // pred_check_branch
      %120 = sbr.rel (0) target = $region73
    $region72: #{tpu_custom_call.1} parent=1 // pred_region
      %121 = dma.done [#allocation9], 4096
    $region73: #{tpu_custom_call.1} parent=1 // pred_fallthru
      _
    // Predicated region
    $region74: #{tpu_custom_call.1} parent=1 // pred_check
      _
    $region75: #{tpu_custom_call.1} parent=1 // pred_check_branch
      %123 = sbr.rel (0) target = $region77
    $region76: #{tpu_custom_call.1} parent=1 // pred_region
      %124 = dma.done [#allocation12], 4096
    $region77: #{tpu_custom_call.1} parent=1 // pred_fallthru
      _
    %v126 = vld [vmem:[#allocation2] sm:$0xff]
    %v127 = vld [vmem:[#allocation2 + $0x8] sm:$0xff]
    %v128 = vpack.c.bf16 %v127, %v126
    %v129 = vld [vmem:[#allocation5] sm:$0xff]
    %v130 = vld [vmem:[#allocation5 + $0x8] sm:$0xf]
    %v131 = vld [vmem:[#allocation5 + $0xc] sm:$0xff]
    %v132 = vld [vmem:[#allocation5 + $0x14] sm:$0xf]
    %v133 = vld [vmem:[#allocation5 + $0x18] sm:$0xff]
    %v134 = vld [vmem:[#allocation5 + $0x20] sm:$0xf]
    %v135 = vld [vmem:[#allocation5 + $0x24] sm:$0xff]
    %v136 = vld [vmem:[#allocation5 + $0x2c] sm:$0xf]
    %v137 = vld [vmem:[#allocation5 + $0x30] sm:$0xff]
    %v138 = vld [vmem:[#allocation5 + $0x38] sm:$0xf]
    %v139 = vld [vmem:[#allocation5 + $0x3c] sm:$0xff]
    %v140 = vld [vmem:[#allocation5 + $0x44] sm:$0xf]
    %v141 = vld [vmem:[#allocation5 + $0x48] sm:$0xff]
    %v142 = vld [vmem:[#allocation5 + $0x50] sm:$0xf]
    %v143 = vld [vmem:[#allocation5 + $0x54] sm:$0xff]
    %v144 = vld [vmem:[#allocation5 + $0x5c] sm:$0xf]
    %v145 = vld [vmem:[#allocation5 + $0x60] sm:$0xff]
    %v146 = vld [vmem:[#allocation5 + $0x68] sm:$0xf]
    %v147 = vld [vmem:[#allocation5 + $0x6c] sm:$0xff]
    %v148 = vld [vmem:[#allocation5 + $0x74] sm:$0xf]
    %v149 = vld [vmem:[#allocation5 + $0x78] sm:$0xff]
    %v150 = vld [vmem:[#allocation5 + $0x80] sm:$0xf]
    %v151 = vld [vmem:[#allocation5 + $0x84] sm:$0xff]
    %v152 = vld [vmem:[#allocation5 + $0x8c] sm:$0xf]
    %v153 = vld [vmem:[#allocation5 + $0x90] sm:$0xff]
    %v154 = vld [vmem:[#allocation5 + $0x98] sm:$0xf]
    %v155 = vld [vmem:[#allocation5 + $0x9c] sm:$0xff]
    %v156 = vld [vmem:[#allocation5 + $0xa4] sm:$0xf]
    %v157 = vld [vmem:[#allocation5 + $0xa8] sm:$0xff]
    %v158 = vld [vmem:[#allocation5 + $0xb0] sm:$0xf]
    %v159 = vld [vmem:[#allocation5 + $0xb4] sm:$0xff]
    %v160 = vld [vmem:[#allocation5 + $0xbc] sm:$0xf]
    %v161 = vld [vmem:[%s2] sm:$0x7]
    %v163 = vlaneseq
    %v164 = vshrl.u32 %v163, 7
    %v165 = vsub.s32 0, %v164
    %v166 = vrot.slane %v161, %v165
    %v167 = vlaneseq
    %v168 = vshrl.u32 %v167, 7
    %v169 = vsub.s32 1, %v168
    %v170 = vrot.slane %v161, %v169
    %v171 = vlaneseq
    %v172 = vshrl.u32 %v171, 7
    %v173 = vsub.s32 2, %v172
    %v174 = vrot.slane %v161, %v173
    %v210 = vunpack.c.l.b16 %v129
    %v211 = vunpack.c.h.b16 %v129
    %v212 = vunpack.c.l.b16 %v130
    %v213 = vunpack.c.l.b16 %v131
    %v214 = vunpack.c.h.b16 %v131
    %v215 = vunpack.c.l.b16 %v132
    %v216 = vunpack.c.l.b16 %v133
    %v217 = vunpack.c.h.b16 %v133
    %v218 = vunpack.c.l.b16 %v134
    %v219 = vunpack.c.l.b16 %v135
    %v220 = vunpack.c.h.b16 %v135
    %v221 = vunpack.c.l.b16 %v136
    %v222 = vunpack.c.l.b16 %v137
    %v223 = vunpack.c.h.b16 %v137
    %v224 = vunpack.c.l.b16 %v138
    %v225 = vunpack.c.l.b16 %v139
    %v226 = vunpack.c.h.b16 %v139
    %v227 = vunpack.c.l.b16 %v140
    %v228 = vunpack.c.l.b16 %v141
    %v229 = vunpack.c.h.b16 %v141
    %v230 = vunpack.c.l.b16 %v142
    %v231 = vunpack.c.l.b16 %v143
    %v232 = vunpack.c.h.b16 %v143
    %v233 = vunpack.c.l.b16 %v144
    %v234 = vunpack.c.l.b16 %v145
    %v235 = vunpack.c.h.b16 %v145
    %v236 = vunpack.c.l.b16 %v146
    %v237 = vunpack.c.l.b16 %v147
    %v238 = vunpack.c.h.b16 %v147
    %v239 = vunpack.c.l.b16 %v148
    %v240 = vunpack.c.l.b16 %v149
    %v241 = vunpack.c.h.b16 %v149
    %v242 = vunpack.c.l.b16 %v150
    %v243 = vunpack.c.l.b16 %v151
    %v244 = vunpack.c.h.b16 %v151
    %v245 = vunpack.c.l.b16 %v152
    %v246 = vunpack.c.l.b16 %v153
    %v247 = vunpack.c.h.b16 %v153
    %v248 = vunpack.c.l.b16 %v154
    %v249 = vunpack.c.l.b16 %v155
    %v250 = vunpack.c.h.b16 %v155
    %v251 = vunpack.c.l.b16 %v156
    %v252 = vunpack.c.l.b16 %v157
    %v253 = vunpack.c.h.b16 %v157
    %v254 = vunpack.c.l.b16 %v158
    %v255 = vunpack.c.l.b16 %v159
    %v256 = vunpack.c.h.b16 %v159
    %v257 = vunpack.c.l.b16 %v160
    %v258 = vpack.c.b16 %v213, %v210
    %v259 = vpack.c.b16 %v214, %v211
    %v260 = vpack.c.b16 %v215, %v212
    %v261 = vpack.c.b16 %v219, %v216
    %v262 = vpack.c.b16 %v220, %v217
    %v263 = vpack.c.b16 %v221, %v218
    %v264 = vpack.c.b16 %v225, %v222
    %v265 = vpack.c.b16 %v226, %v223
    %v266 = vpack.c.b16 %v227, %v224
    %v267 = vpack.c.b16 %v231, %v228
    %v268 = vpack.c.b16 %v232, %v229
    %v269 = vpack.c.b16 %v233, %v230
    %v270 = vpack.c.b16 %v237, %v234
    %v271 = vpack.c.b16 %v238, %v235
    %v272 = vpack.c.b16 %v239, %v236
    %v273 = vpack.c.b16 %v243, %v240
    %v274 = vpack.c.b16 %v244, %v241
    %v275 = vpack.c.b16 %v245, %v242
    %v276 = vpack.c.b16 %v249, %v246
    %v277 = vpack.c.b16 %v250, %v247
    %v278 = vpack.c.b16 %v251, %v248
    %v279 = vpack.c.b16 %v255, %v252
    %v280 = vpack.c.b16 %v256, %v253
    %v281 = vpack.c.b16 %v257, %v254
    %306 = vmatprep.subr.bf16.mxu0 %v280
    %307 = vmatpush1.bf16.msra.mxu0 %v279
    %308 = vmatprep.subr.bf16.mxu0 %v277
    %309 = vmatpush1.bf16.msra.mxu0 %v276
    %310 = vmatprep.subr.bf16.mxu0 %v274
    %311 = vmatpush1.bf16.msra.mxu0 %v273
    %312 = vmatprep.subr.bf16.mxu0 %v271
    %313 = vmatpush1.bf16.msra.mxu0 %v270
    %314 = vmatprep.subr.bf16.mxu0 %v268
    %315 = vmatpush1.bf16.msra.mxu0 %v267
    %316 = vmatprep.subr.bf16.mxu0 %v265
    %317 = vmatpush1.bf16.msra.mxu0 %v264
    %318 = vmatprep.subr.bf16.mxu0 %v262
    %319 = vmatpush1.bf16.msra.mxu0 %v261
    %320 = vmatprep.subr.bf16.mxu0 %v259
    %321 = vmatpush1.bf16.msra.mxu0 %v258
    %322 = vmatprep.subr.bf16.mxu0 0
    %323 = vmatpush2.bf16.msra.mxu0 0
    %324 = vmatprep.subr.bf16.mxu0 0
    %325 = vmatpush2.bf16.msra.mxu0 0
    %326 = vmatprep.subr.bf16.mxu0 0
    %327 = vmatpush2.bf16.msra.mxu0 0
    %328 = vmatprep.subr.bf16.mxu0 0
    %329 = vmatpush2.bf16.msra.mxu0 0
    %330 = vmatprep.subr.bf16.mxu0 0
    %331 = vmatpush2.bf16.msra.mxu0 0
    %332 = vmatprep.subr.bf16.mxu0 0
    %333 = vmatpush2.bf16.msra.mxu0 0
    %334 = vmatprep.subr.bf16.mxu0 0
    %335 = vmatpush2.bf16.msra.mxu0 0
    %336 = vmatprep.subr.bf16.mxu0 0
    %337 = vmatpush2.bf16.msra.mxu0 0
    %338 = vmatprep.mubr.bf16.mxu0 0
    %339 = vmatmul.mubr.bf16.gmra.mxu0 %v128
    %v340 = vpop.f32.mrf.mxu0
    %v341 = vadd.f32 %v166, %v340
    %v342 = vpop.f32.mrf.mxu0
    %v343 = vadd.f32 %v170, %v342
    %v344 = vpop.f32.mrf.mxu0
    %v345 = vadd.f32 %v166, %v344
    %v346 = vpop.f32.mrf.mxu0
    %v347 = vadd.f32 %v170, %v346
    %348 = vdwg.mxu0
    %349 = vmatprep.subr.bf16.mxu0 0
    %350 = vmatpush1.bf16.msra.mxu0 %v281
    %351 = vmatprep.subr.bf16.mxu0 0
    %352 = vmatpush1.bf16.msra.mxu0 %v278
    %353 = vmatprep.subr.bf16.mxu0 0
    %354 = vmatpush1.bf16.msra.mxu0 %v275
    %355 = vmatprep.subr.bf16.mxu0 0
    %356 = vmatpush1.bf16.msra.mxu0 %v272
    %357 = vmatprep.subr.bf16.mxu0 0
    %358 = vmatpush1.bf16.msra.mxu0 %v269
    %359 = vmatprep.subr.bf16.mxu0 0
    %360 = vmatpush1.bf16.msra.mxu0 %v266
    %361 = vmatprep.subr.bf16.mxu0 0
    %362 = vmatpush1.bf16.msra.mxu0 %v263
    %363 = vmatprep.subr.bf16.mxu0 0
    %364 = vmatpush1.bf16.msra.mxu0 %v260
    %365 = vmatprep.subr.bf16.mxu0 0
    %366 = vmatpush2.bf16.msra.mxu0 0
    %367 = vmatprep.subr.bf16.mxu0 0
    %368 = vmatpush2.bf16.msra.mxu0 0
    %369 = vmatprep.subr.bf16.mxu0 0
    %370 = vmatpush2.bf16.msra.mxu0 0
    %371 = vmatprep.subr.bf16.mxu0 0
    %372 = vmatpush2.bf16.msra.mxu0 0
    %373 = vmatprep.subr.bf16.mxu0 0
    %374 = vmatpush2.bf16.msra.mxu0 0
    %375 = vmatprep.subr.bf16.mxu0 0
    %376 = vmatpush2.bf16.msra.mxu0 0
    %377 = vmatprep.subr.bf16.mxu0 0
    %378 = vmatpush2.bf16.msra.mxu0 0
    %379 = vmatprep.subr.bf16.mxu0 0
    %380 = vmatpush2.bf16.msra.mxu0 0
    %381 = vmatprep.mubr.bf16.mxu0 0
    %382 = vmatmul.mubr.bf16.gmra.mxu0 %v128
    %v383 = vpop.f32.mrf.mxu0
    %v384 = vadd.f32 %v174, %v383
    %v385 = vpop.f32.mrf.mxu0
    %v386 = vpop.f32.mrf.mxu0
    %v387 = vadd.f32 %v174, %v386
    %v388 = vpop.f32.mrf.mxu0
    %389 = vdwg.mxu0
    %v390 = vmul.f32 %v341, 0.25
    %v391 = vmul.f32 %v345, 0.25
    %v392 = vlaneseq
    %v393 = vshrl.u32 %v392, 7
    %v394 = vlaneseq
    %v395 = vand.u32 %v394, 127
    %vm396 = vcmp.ge.s32.totalorder %v393, %v395
    %v397 = vpack.c.bf16 %v390, %v390
    %v398 = vpack.c.bf16 %v391, %v391
    %v399 = vpack.c.bf16 %v343, %v343
    %v400 = vpack.c.bf16 %v347, %v347
    %v401 = vpack.c.bf16 %v384, %v384
    %v402 = vpack.c.bf16 %v387, %v387
    %vm403 = vcmask 130048
    %v405 = vsel %vm403, %v397, 0
    %v408 = vsel %vm403, %v399, 0
    %410 = vmatprep.subr.bf16.mxu0 0
    %411 = vmatpush1.bf16.xpose.msra.mxu0 0
    %412 = vmatprep.subr.bf16.mxu0 0
    %413 = vmatpush1.bf16.xpose.msra.mxu0 0
    %414 = vmatprep.subr.bf16.mxu0 0
    %415 = vmatpush1.bf16.xpose.msra.mxu0 0
    %416 = vmatprep.subr.bf16.mxu0 0
    %417 = vmatpush1.bf16.xpose.msra.mxu0 0
    %418 = vmatprep.subr.bf16.mxu0 0
    %419 = vmatpush1.bf16.xpose.msra.mxu0 0
    %420 = vmatprep.subr.bf16.mxu0 0
    %421 = vmatpush1.bf16.xpose.msra.mxu0 0
    %422 = vmatprep.subr.bf16.mxu0 0
    %423 = vmatpush1.bf16.xpose.msra.mxu0 0
    %424 = vmatprep.subr.bf16.mxu0 0
    %425 = vmatpush1.bf16.xpose.msra.mxu0 %v408
    %426 = vmatprep.subr.bf16.mxu0 0
    %427 = vmatpush2.bf16.xpose.msra.mxu0 0
    %428 = vmatprep.subr.bf16.mxu0 0
    %429 = vmatpush2.bf16.xpose.msra.mxu0 0
    %430 = vmatprep.subr.bf16.mxu0 0
    %431 = vmatpush2.bf16.xpose.msra.mxu0 0
    %432 = vmatprep.subr.bf16.mxu0 0
    %433 = vmatpush2.bf16.xpose.msra.mxu0 0
    %434 = vmatprep.subr.bf16.mxu0 0
    %435 = vmatpush2.bf16.xpose.msra.mxu0 0
    %436 = vmatprep.subr.bf16.mxu0 0
    %437 = vmatpush2.bf16.xpose.msra.mxu0 0
    %438 = vmatprep.subr.bf16.mxu0 0
    %439 = vmatpush2.bf16.xpose.msra.mxu0 0
    %440 = vmatprep.subr.bf16.mxu0 0
    %441 = vmatpush2.bf16.xpose.msra.mxu0 0
    %442 = vmatprep.mubr.bf16.mxu0 0
    %443 = vmatmul.mubr.bf16.gmra.mxu0 %v405
    %v444 = vpop.f32.mrf.mxu0
    %v445 = vadd.f32 0.0, %v444
    %v446 = vpop.f32.mrf.mxu0
    %v447 = vpop.f32.mrf.mxu0
    %v448 = vpop.f32.mrf.mxu0
    %449 = vdwg.mxu0
    %v451 = vsel %vm403, %v398, 0
    %v454 = vsel %vm403, %v400, 0
    %456 = vmatprep.subr.bf16.mxu0 0
    %457 = vmatpush1.bf16.xpose.msra.mxu0 0
    %458 = vmatprep.subr.bf16.mxu0 0
    %459 = vmatpush1.bf16.xpose.msra.mxu0 0
    %460 = vmatprep.subr.bf16.mxu0 0
    %461 = vmatpush1.bf16.xpose.msra.mxu0 0
    %462 = vmatprep.subr.bf16.mxu0 0
    %463 = vmatpush1.bf16.xpose.msra.mxu0 0
    %464 = vmatprep.subr.bf16.mxu0 0
    %465 = vmatpush1.bf16.xpose.msra.mxu0 0
    %466 = vmatprep.subr.bf16.mxu0 0
    %467 = vmatpush1.bf16.xpose.msra.mxu0 0
    %468 = vmatprep.subr.bf16.mxu0 0
    %469 = vmatpush1.bf16.xpose.msra.mxu0 0
    %470 = vmatprep.subr.bf16.mxu0 0
    %471 = vmatpush1.bf16.xpose.msra.mxu0 %v454
    %472 = vmatprep.subr.bf16.mxu0 0
    %473 = vmatpush2.bf16.xpose.msra.mxu0 0
    %474 = vmatprep.subr.bf16.mxu0 0
    %475 = vmatpush2.bf16.xpose.msra.mxu0 0
    %476 = vmatprep.subr.bf16.mxu0 0
    %477 = vmatpush2.bf16.xpose.msra.mxu0 0
    %478 = vmatprep.subr.bf16.mxu0 0
    %479 = vmatpush2.bf16.xpose.msra.mxu0 0
    %480 = vmatprep.subr.bf16.mxu0 0
    %481 = vmatpush2.bf16.xpose.msra.mxu0 0
    %482 = vmatprep.subr.bf16.mxu0 0
    %483 = vmatpush2.bf16.xpose.msra.mxu0 0
    %484 = vmatprep.subr.bf16.mxu0 0
    %485 = vmatpush2.bf16.xpose.msra.mxu0 0
    %486 = vmatprep.subr.bf16.mxu0 0
    %487 = vmatpush2.bf16.xpose.msra.mxu0 0
    %488 = vmatprep.mubr.bf16.mxu0 0
    %489 = vmatmul.mubr.bf16.gmra.mxu0 %v451
    %v490 = vpop.f32.mrf.mxu0
    %v491 = vadd.f32 0.0, %v490
    %v492 = vpop.f32.mrf.mxu0
    %v493 = vpop.f32.mrf.mxu0
    %v494 = vpop.f32.mrf.mxu0
    %495 = vdwg.mxu0
    %v496 = vsel %vm396, 1, 0
    %vm497 = vcmp.eq.s32.totalorder %v496, 1
    %v498 = vsel %vm497, %v445, -1e+12
    %v499 = vsel %vm497, %v491, -1e+12
    %vm500 = vcmask 64512
    %v501 = vsel %vm500, %v498, -inf
    %502 = vmax.xlane.f32.xlu0 %v501
    %v503 = vpop.xlane.xlu0 %502
    %v504 = vsel %vm500, %v499, -inf
    %505 = vmax.xlane.f32.xlu0 %v504
    %v506 = vpop.xlane.xlu0 %505
    %v507 = vsub.f32 %v498, %v503
    %v508 = vsub.f32 %v499, %v506
    %v509 = vmul.f32 %v507, 1.442695
    %v510 = vpow.pop %v509
    %v511 = vmul.f32 %v508, 1.442695
    %v512 = vpow.pop %v511
    %v513 = vsel %vm500, %v510, 0.0
    %514 = vadd.xlane.f32.xlu0 %v513
    %v515 = vpop.xlane.xlu0 %514
    %v516 = vsel %vm500, %v512, 0.0
    %517 = vadd.xlane.f32.xlu0 %v516
    %v518 = vpop.xlane.xlu0 %517
    %v519 = vrcp.pop %v515
    %v520 = vrcp.pop %v518
    %v521 = vmul.f32 %v510, %v519
    %v522 = vmul.f32 %v512, %v520
    %v523 = vpack.c.bf16 %v521, %v521
    %v524 = vpack.c.bf16 %v522, %v522
    %v526 = vsel %vm500, %v523, 0
    %vm528 = vcmask 1043456
    %v530 = vsel %vm528, %v401, 0
    %532 = vmatprep.subr.bf16.mxu0 0
    %533 = vmatpush1.bf16.msra.mxu0 0
    %534 = vmatprep.subr.bf16.mxu0 0
    %535 = vmatpush1.bf16.msra.mxu0 0
    %536 = vmatprep.subr.bf16.mxu0 0
    %537 = vmatpush1.bf16.msra.mxu0 0
    %538 = vmatprep.subr.bf16.mxu0 0
    %539 = vmatpush1.bf16.msra.mxu0 0
    %540 = vmatprep.subr.bf16.mxu0 0
    %541 = vmatpush1.bf16.msra.mxu0 0
    %542 = vmatprep.subr.bf16.mxu0 0
    %543 = vmatpush1.bf16.msra.mxu0 0
    %544 = vmatprep.subr.bf16.mxu0 0
    %545 = vmatpush1.bf16.msra.mxu0 0
    %546 = vmatprep.subr.bf16.mxu0 0
    %547 = vmatpush1.bf16.msra.mxu0 %v530
    %548 = vmatprep.subr.bf16.mxu0 0
    %549 = vmatpush2.bf16.msra.mxu0 0
    %550 = vmatprep.subr.bf16.mxu0 0
    %551 = vmatpush2.bf16.msra.mxu0 0
    %552 = vmatprep.subr.bf16.mxu0 0
    %553 = vmatpush2.bf16.msra.mxu0 0
    %554 = vmatprep.subr.bf16.mxu0 0
    %555 = vmatpush2.bf16.msra.mxu0 0
    %556 = vmatprep.subr.bf16.mxu0 0
    %557 = vmatpush2.bf16.msra.mxu0 0
    %558 = vmatprep.subr.bf16.mxu0 0
    %559 = vmatpush2.bf16.msra.mxu0 0
    %560 = vmatprep.subr.bf16.mxu0 0
    %561 = vmatpush2.bf16.msra.mxu0 0
    %562 = vmatprep.subr.bf16.mxu0 0
    %563 = vmatpush2.bf16.msra.mxu0 0
    %564 = vmatprep.mubr.bf16.mxu0 0
    %565 = vmatmul.mubr.bf16.gmra.mxu0 %v526
    %v566 = vpop.f32.mrf.mxu0
    %v567 = vadd.f32 0.0, %v566
    %v568 = vpop.f32.mrf.mxu0
    %v569 = vpop.f32.mrf.mxu0
    %v570 = vpop.f32.mrf.mxu0
    %571 = vdwg.mxu0
    %v573 = vsel %vm500, %v524, 0
    %v576 = vsel %vm528, %v402, 0
    %578 = vmatprep.subr.bf16.mxu0 0
    %579 = vmatpush1.bf16.msra.mxu0 0
    %580 = vmatprep.subr.bf16.mxu0 0
    %581 = vmatpush1.bf16.msra.mxu0 0
    %582 = vmatprep.subr.bf16.mxu0 0
    %583 = vmatpush1.bf16.msra.mxu0 0
    %584 = vmatprep.subr.bf16.mxu0 0
    %585 = vmatpush1.bf16.msra.mxu0 0
    %586 = vmatprep.subr.bf16.mxu0 0
    %587 = vmatpush1.bf16.msra.mxu0 0
    %588 = vmatprep.subr.bf16.mxu0 0
    %589 = vmatpush1.bf16.msra.mxu0 0
    %590 = vmatprep.subr.bf16.mxu0 0
    %591 = vmatpush1.bf16.msra.mxu0 0
    %592 = vmatprep.subr.bf16.mxu0 0
    %593 = vmatpush1.bf16.msra.mxu0 %v576
    %594 = vmatprep.subr.bf16.mxu0 0
    %595 = vmatpush2.bf16.msra.mxu0 0
    %596 = vmatprep.subr.bf16.mxu0 0
    %597 = vmatpush2.bf16.msra.mxu0 0
    %598 = vmatprep.subr.bf16.mxu0 0
    %599 = vmatpush2.bf16.msra.mxu0 0
    %600 = vmatprep.subr.bf16.mxu0 0
    %601 = vmatpush2.bf16.msra.mxu0 0
    %602 = vmatprep.subr.bf16.mxu0 0
    %603 = vmatpush2.bf16.msra.mxu0 0
    %604 = vmatprep.subr.bf16.mxu0 0
    %605 = vmatpush2.bf16.msra.mxu0 0
    %606 = vmatprep.subr.bf16.mxu0 0
    %607 = vmatpush2.bf16.msra.mxu0 0
    %608 = vmatprep.subr.bf16.mxu0 0
    %609 = vmatpush2.bf16.msra.mxu0 0
    %610 = vmatprep.mubr.bf16.mxu0 0
    %611 = vmatmul.mubr.bf16.gmra.mxu0 %v573
    %v612 = vpop.f32.mrf.mxu0
    %v613 = vadd.f32 0.0, %v612
    %v614 = vpop.f32.mrf.mxu0
    %v615 = vpop.f32.mrf.mxu0
    %v616 = vpop.f32.mrf.mxu0
    %617 = vdwg.mxu0
    %619 = vrot.lane.b32.xlu0 %v397, 112
    %v620 = vpop.permute.xlu0 %619
    %622 = vrot.lane.b32.xlu0 %v399, 112
    %v623 = vpop.permute.xlu0 %622
    %v625 = vsel %vm403, %v620, 0
    %v628 = vsel %vm403, %v623, 0
    %630 = vmatprep.subr.bf16.mxu0 0
    %631 = vmatpush1.bf16.xpose.msra.mxu0 0
    %632 = vmatprep.subr.bf16.mxu0 0
    %633 = vmatpush1.bf16.xpose.msra.mxu0 0
    %634 = vmatprep.subr.bf16.mxu0 0
    %635 = vmatpush1.bf16.xpose.msra.mxu0 0
    %636 = vmatprep.subr.bf16.mxu0 0
    %637 = vmatpush1.bf16.xpose.msra.mxu0 0
    %638 = vmatprep.subr.bf16.mxu0 0
    %639 = vmatpush1.bf16.xpose.msra.mxu0 0
    %640 = vmatprep.subr.bf16.mxu0 0
    %641 = vmatpush1.bf16.xpose.msra.mxu0 0
    %642 = vmatprep.subr.bf16.mxu0 0
    %643 = vmatpush1.bf16.xpose.msra.mxu0 0
    %644 = vmatprep.subr.bf16.mxu0 0
    %645 = vmatpush1.bf16.xpose.msra.mxu0 %v628
    %646 = vmatprep.subr.bf16.mxu0 0
    %647 = vmatpush2.bf16.xpose.msra.mxu0 0
    %648 = vmatprep.subr.bf16.mxu0 0
    %649 = vmatpush2.bf16.xpose.msra.mxu0 0
    %650 = vmatprep.subr.bf16.mxu0 0
    %651 = vmatpush2.bf16.xpose.msra.mxu0 0
    %652 = vmatprep.subr.bf16.mxu0 0
    %653 = vmatpush2.bf16.xpose.msra.mxu0 0
    %654 = vmatprep.subr.bf16.mxu0 0
    %655 = vmatpush2.bf16.xpose.msra.mxu0 0
    %656 = vmatprep.subr.bf16.mxu0 0
    %657 = vmatpush2.bf16.xpose.msra.mxu0 0
    %658 = vmatprep.subr.bf16.mxu0 0
    %659 = vmatpush2.bf16.xpose.msra.mxu0 0
    %660 = vmatprep.subr.bf16.mxu0 0
    %661 = vmatpush2.bf16.xpose.msra.mxu0 0
    %662 = vmatprep.mubr.bf16.mxu0 0
    %663 = vmatmul.mubr.bf16.gmra.mxu0 %v625
    %v664 = vpop.f32.mrf.mxu0
    %v665 = vadd.f32 0.0, %v664
    %v666 = vpop.f32.mrf.mxu0
    %v667 = vpop.f32.mrf.mxu0
    %v668 = vpop.f32.mrf.mxu0
    %669 = vdwg.mxu0
    %671 = vrot.lane.b32.xlu0 %v398, 112
    %v672 = vpop.permute.xlu0 %671
    %674 = vrot.lane.b32.xlu0 %v400, 112
    %v675 = vpop.permute.xlu0 %674
    %v677 = vsel %vm403, %v672, 0
    %v680 = vsel %vm403, %v675, 0
    %682 = vmatprep.subr.bf16.mxu0 0
    %683 = vmatpush1.bf16.xpose.msra.mxu0 0
    %684 = vmatprep.subr.bf16.mxu0 0
    %685 = vmatpush1.bf16.xpose.msra.mxu0 0
    %686 = vmatprep.subr.bf16.mxu0 0
    %687 = vmatpush1.bf16.xpose.msra.mxu0 0
    %688 = vmatprep.subr.bf16.mxu0 0
    %689 = vmatpush1.bf16.xpose.msra.mxu0 0
    %690 = vmatprep.subr.bf16.mxu0 0
    %691 = vmatpush1.bf16.xpose.msra.mxu0 0
    %692 = vmatprep.subr.bf16.mxu0 0
    %693 = vmatpush1.bf16.xpose.msra.mxu0 0
    %694 = vmatprep.subr.bf16.mxu0 0
    %695 = vmatpush1.bf16.xpose.msra.mxu0 0
    %696 = vmatprep.subr.bf16.mxu0 0
    %697 = vmatpush1.bf16.xpose.msra.mxu0 %v680
    %698 = vmatprep.subr.bf16.mxu0 0
    %699 = vmatpush2.bf16.xpose.msra.mxu0 0
    %700 = vmatprep.subr.bf16.mxu0 0
    %701 = vmatpush2.bf16.xpose.msra.mxu0 0
    %702 = vmatprep.subr.bf16.mxu0 0
    %703 = vmatpush2.bf16.xpose.msra.mxu0 0
    %704 = vmatprep.subr.bf16.mxu0 0
    %705 = vmatpush2.bf16.xpose.msra.mxu0 0
    %706 = vmatprep.subr.bf16.mxu0 0
    %707 = vmatpush2.bf16.xpose.msra.mxu0 0
    %708 = vmatprep.subr.bf16.mxu0 0
    %709 = vmatpush2.bf16.xpose.msra.mxu0 0
    %710 = vmatprep.subr.bf16.mxu0 0
    %711 = vmatpush2.bf16.xpose.msra.mxu0 0
    %712 = vmatprep.subr.bf16.mxu0 0
    %713 = vmatpush2.bf16.xpose.msra.mxu0 0
    %714 = vmatprep.mubr.bf16.mxu0 0
    %715 = vmatmul.mubr.bf16.gmra.mxu0 %v677
    %v716 = vpop.f32.mrf.mxu0
    %v717 = vadd.f32 0.0, %v716
    %v718 = vpop.f32.mrf.mxu0
    %v719 = vpop.f32.mrf.mxu0
    %v720 = vpop.f32.mrf.mxu0
    %721 = vdwg.mxu0
    %v722 = vsel %vm497, %v665, -1e+12
    %v723 = vsel %vm497, %v717, -1e+12
    %v724 = vsel %vm500, %v722, -inf
    %725 = vmax.xlane.f32.xlu0 %v724
    %v726 = vpop.xlane.xlu0 %725
    %v727 = vsel %vm500, %v723, -inf
    %728 = vmax.xlane.f32.xlu0 %v727
    %v729 = vpop.xlane.xlu0 %728
    %v730 = vsub.f32 %v722, %v726
    %v731 = vsub.f32 %v723, %v729
    %v732 = vmul.f32 %v730, 1.442695
    %v733 = vpow.pop %v732
    %v734 = vmul.f32 %v731, 1.442695
    %v735 = vpow.pop %v734
    %v736 = vsel %vm500, %v733, 0.0
    %737 = vadd.xlane.f32.xlu0 %v736
    %v738 = vpop.xlane.xlu0 %737
    %v739 = vsel %vm500, %v735, 0.0
    %740 = vadd.xlane.f32.xlu0 %v739
    %v741 = vpop.xlane.xlu0 %740
    %v742 = vrcp.pop %v738
    %v743 = vrcp.pop %v741
    %v744 = vmul.f32 %v733, %v742
    %v745 = vmul.f32 %v735, %v743
    %v746 = vpack.c.bf16 %v744, %v744
    %v747 = vpack.c.bf16 %v745, %v745
    %749 = vrot.lane.b32.xlu0 %v401, 112
    %v750 = vpop.permute.xlu0 %749
    %v752 = vsel %vm500, %v746, 0
    %v755 = vsel %vm528, %v750, 0
    %757 = vmatprep.subr.bf16.mxu0 0
    %758 = vmatpush1.bf16.msra.mxu0 0
    %759 = vmatprep.subr.bf16.mxu0 0
    %760 = vmatpush1.bf16.msra.mxu0 0
    %761 = vmatprep.subr.bf16.mxu0 0
    %762 = vmatpush1.bf16.msra.mxu0 0
    %763 = vmatprep.subr.bf16.mxu0 0
    %764 = vmatpush1.bf16.msra.mxu0 0
    %765 = vmatprep.subr.bf16.mxu0 0
    %766 = vmatpush1.bf16.msra.mxu0 0
    %767 = vmatprep.subr.bf16.mxu0 0
    %768 = vmatpush1.bf16.msra.mxu0 0
    %769 = vmatprep.subr.bf16.mxu0 0
    %770 = vmatpush1.bf16.msra.mxu0 0
    %771 = vmatprep.subr.bf16.mxu0 0
    %772 = vmatpush1.bf16.msra.mxu0 %v755
    %773 = vmatprep.subr.bf16.mxu0 0
    %774 = vmatpush2.bf16.msra.mxu0 0
    %775 = vmatprep.subr.bf16.mxu0 0
    %776 = vmatpush2.bf16.msra.mxu0 0
    %777 = vmatprep.subr.bf16.mxu0 0
    %778 = vmatpush2.bf16.msra.mxu0 0
    %779 = vmatprep.subr.bf16.mxu0 0
    %780 = vmatpush2.bf16.msra.mxu0 0
    %781 = vmatprep.subr.bf16.mxu0 0
    %782 = vmatpush2.bf16.msra.mxu0 0
    %783 = vmatprep.subr.bf16.mxu0 0
    %784 = vmatpush2.bf16.msra.mxu0 0
    %785 = vmatprep.subr.bf16.mxu0 0
    %786 = vmatpush2.bf16.msra.mxu0 0
    %787 = vmatprep.subr.bf16.mxu0 0
    %788 = vmatpush2.bf16.msra.mxu0 0
    %789 = vmatprep.mubr.bf16.mxu0 0
    %790 = vmatmul.mubr.bf16.gmra.mxu0 %v752
    %v791 = vpop.f32.mrf.mxu0
    %v792 = vadd.f32 0.0, %v791
    %v793 = vpop.f32.mrf.mxu0
    %v794 = vpop.f32.mrf.mxu0
    %v795 = vpop.f32.mrf.mxu0
    %796 = vdwg.mxu0
    %798 = vrot.lane.b32.xlu0 %v402, 112
    %v799 = vpop.permute.xlu0 %798
    %v801 = vsel %vm500, %v747, 0
    %v804 = vsel %vm528, %v799, 0
    %806 = vmatprep.subr.bf16.mxu0 0
    %807 = vmatpush1.bf16.msra.mxu0 0
    %808 = vmatprep.subr.bf16.mxu0 0
    %809 = vmatpush1.bf16.msra.mxu0 0
    %810 = vmatprep.subr.bf16.mxu0 0
    %811 = vmatpush1.bf16.msra.mxu0 0
    %812 = vmatprep.subr.bf16.mxu0 0
    %813 = vmatpush1.bf16.msra.mxu0 0
    %814 = vmatprep.subr.bf16.mxu0 0
    %815 = vmatpush1.bf16.msra.mxu0 0
    %816 = vmatprep.subr.bf16.mxu0 0
    %817 = vmatpush1.bf16.msra.mxu0 0
    %818 = vmatprep.subr.bf16.mxu0 0
    %819 = vmatpush1.bf16.msra.mxu0 0
    %820 = vmatprep.subr.bf16.mxu0 0
    %821 = vmatpush1.bf16.msra.mxu0 %v804
    %822 = vmatprep.subr.bf16.mxu0 0
    %823 = vmatpush2.bf16.msra.mxu0 0
    %824 = vmatprep.subr.bf16.mxu0 0
    %825 = vmatpush2.bf16.msra.mxu0 0
    %826 = vmatprep.subr.bf16.mxu0 0
    %827 = vmatpush2.bf16.msra.mxu0 0
    %828 = vmatprep.subr.bf16.mxu0 0
    %829 = vmatpush2.bf16.msra.mxu0 0
    %830 = vmatprep.subr.bf16.mxu0 0
    %831 = vmatpush2.bf16.msra.mxu0 0
    %832 = vmatprep.subr.bf16.mxu0 0
    %833 = vmatpush2.bf16.msra.mxu0 0
    %834 = vmatprep.subr.bf16.mxu0 0
    %835 = vmatpush2.bf16.msra.mxu0 0
    %836 = vmatprep.subr.bf16.mxu0 0
    %837 = vmatpush2.bf16.msra.mxu0 0
    %838 = vmatprep.mubr.bf16.mxu0 0
    %839 = vmatmul.mubr.bf16.gmra.mxu0 %v801
    %v840 = vpop.f32.mrf.mxu0
    %v841 = vadd.f32 0.0, %v840
    %v842 = vpop.f32.mrf.mxu0
    %v843 = vpop.f32.mrf.mxu0
    %v844 = vpop.f32.mrf.mxu0
    %845 = vdwg.mxu0
    %846 = vrot.lane.b32.xlu0 %v397, 96
    %v847 = vpop.permute.xlu0 %846
    %848 = vrot.lane.b32.xlu0 %v399, 96
    %v849 = vpop.permute.xlu0 %848
    %v851 = vsel %vm403, %v847, 0
    %v854 = vsel %vm403, %v849, 0
    %856 = vmatprep.subr.bf16.mxu0 0
    %857 = vmatpush1.bf16.xpose.msra.mxu0 0
    %858 = vmatprep.subr.bf16.mxu0 0
    %859 = vmatpush1.bf16.xpose.msra.mxu0 0
    %860 = vmatprep.subr.bf16.mxu0 0
    %861 = vmatpush1.bf16.xpose.msra.mxu0 0
    %862 = vmatprep.subr.bf16.mxu0 0
    %863 = vmatpush1.bf16.xpose.msra.mxu0 0
    %864 = vmatprep.subr.bf16.mxu0 0
    %865 = vmatpush1.bf16.xpose.msra.mxu0 0
    %866 = vmatprep.subr.bf16.mxu0 0
    %867 = vmatpush1.bf16.xpose.msra.mxu0 0
    %868 = vmatprep.subr.bf16.mxu0 0
    %869 = vmatpush1.bf16.xpose.msra.mxu0 0
    %870 = vmatprep.subr.bf16.mxu0 0
    %871 = vmatpush1.bf16.xpose.msra.mxu0 %v854
    %872 = vmatprep.subr.bf16.mxu0 0
    %873 = vmatpush2.bf16.xpose.msra.mxu0 0
    %874 = vmatprep.subr.bf16.mxu0 0
    %875 = vmatpush2.bf16.xpose.msra.mxu0 0
    %876 = vmatprep.subr.bf16.mxu0 0
    %877 = vmatpush2.bf16.xpose.msra.mxu0 0
    %878 = vmatprep.subr.bf16.mxu0 0
    %879 = vmatpush2.bf16.xpose.msra.mxu0 0
    %880 = vmatprep.subr.bf16.mxu0 0
    %881 = vmatpush2.bf16.xpose.msra.mxu0 0
    %882 = vmatprep.subr.bf16.mxu0 0
    %883 = vmatpush2.bf16.xpose.msra.mxu0 0
    %884 = vmatprep.subr.bf16.mxu0 0
    %885 = vmatpush2.bf16.xpose.msra.mxu0 0
    %886 = vmatprep.subr.bf16.mxu0 0
    %887 = vmatpush2.bf16.xpose.msra.mxu0 0
    %888 = vmatprep.mubr.bf16.mxu0 0
    %889 = vmatmul.mubr.bf16.gmra.mxu0 %v851
    %v890 = vpop.f32.mrf.mxu0
    %v891 = vadd.f32 0.0, %v890
    %v892 = vpop.f32.mrf.mxu0
    %v893 = vpop.f32.mrf.mxu0
    %v894 = vpop.f32.mrf.mxu0
    %895 = vdwg.mxu0
    %896 = vrot.lane.b32.xlu0 %v398, 96
    %v897 = vpop.permute.xlu0 %896
    %898 = vrot.lane.b32.xlu0 %v400, 96
    %v899 = vpop.permute.xlu0 %898
    %v901 = vsel %vm403, %v897, 0
    %v904 = vsel %vm403, %v899, 0
    %906 = vmatprep.subr.bf16.mxu0 0
    %907 = vmatpush1.bf16.xpose.msra.mxu0 0
    %908 = vmatprep.subr.bf16.mxu0 0
    %909 = vmatpush1.bf16.xpose.msra.mxu0 0
    %910 = vmatprep.subr.bf16.mxu0 0
    %911 = vmatpush1.bf16.xpose.msra.mxu0 0
    %912 = vmatprep.subr.bf16.mxu0 0
    %913 = vmatpush1.bf16.xpose.msra.mxu0 0
    %914 = vmatprep.subr.bf16.mxu0 0
    %915 = vmatpush1.bf16.xpose.msra.mxu0 0
    %916 = vmatprep.subr.bf16.mxu0 0
    %917 = vmatpush1.bf16.xpose.msra.mxu0 0
    %918 = vmatprep.subr.bf16.mxu0 0
    %919 = vmatpush1.bf16.xpose.msra.mxu0 0
    %920 = vmatprep.subr.bf16.mxu0 0
    %921 = vmatpush1.bf16.xpose.msra.mxu0 %v904
    %922 = vmatprep.subr.bf16.mxu0 0
    %923 = vmatpush2.bf16.xpose.msra.mxu0 0
    %924 = vmatprep.subr.bf16.mxu0 0
    %925 = vmatpush2.bf16.xpose.msra.mxu0 0
    %926 = vmatprep.subr.bf16.mxu0 0
    %927 = vmatpush2.bf16.xpose.msra.mxu0 0
    %928 = vmatprep.subr.bf16.mxu0 0
    %929 = vmatpush2.bf16.xpose.msra.mxu0 0
    %930 = vmatprep.subr.bf16.mxu0 0
    %931 = vmatpush2.bf16.xpose.msra.mxu0 0
    %932 = vmatprep.subr.bf16.mxu0 0
    %933 = vmatpush2.bf16.xpose.msra.mxu0 0
    %934 = vmatprep.subr.bf16.mxu0 0
    %935 = vmatpush2.bf16.xpose.msra.mxu0 0
    %936 = vmatprep.subr.bf16.mxu0 0
    %937 = vmatpush2.bf16.xpose.msra.mxu0 0
    %938 = vmatprep.mubr.bf16.mxu0 0
    %939 = vmatmul.mubr.bf16.gmra.mxu0 %v901
    %v940 = vpop.f32.mrf.mxu0
    %v941 = vadd.f32 0.0, %v940
    %v942 = vpop.f32.mrf.mxu0
    %v943 = vpop.f32.mrf.mxu0
    %v944 = vpop.f32.mrf.mxu0
    %945 = vdwg.mxu0
    %v946 = vsel %vm497, %v891, -1e+12
    %v947 = vsel %vm497, %v941, -1e+12
    %v948 = vsel %vm500, %v946, -inf
    %949 = vmax.xlane.f32.xlu0 %v948
    %v950 = vpop.xlane.xlu0 %949
    %v951 = vsel %vm500, %v947, -inf
    %952 = vmax.xlane.f32.xlu0 %v951
    %v953 = vpop.xlane.xlu0 %952
    %v954 = vsub.f32 %v946, %v950
    %v955 = vsub.f32 %v947, %v953
    %v956 = vmul.f32 %v954, 1.442695
    %v957 = vpow.pop %v956
    %v958 = vmul.f32 %v955, 1.442695
    %v959 = vpow.pop %v958
    %v960 = vsel %vm500, %v957, 0.0
    %961 = vadd.xlane.f32.xlu0 %v960
    %v962 = vpop.xlane.xlu0 %961
    %v963 = vsel %vm500, %v959, 0.0
    %964 = vadd.xlane.f32.xlu0 %v963
    %v965 = vpop.xlane.xlu0 %964
    %v966 = vrcp.pop %v962
    %v967 = vrcp.pop %v965
    %v968 = vmul.f32 %v957, %v966
    %v969 = vmul.f32 %v959, %v967
    %v970 = vpack.c.bf16 %v968, %v968
    %v971 = vpack.c.bf16 %v969, %v969
    %972 = vrot.lane.b32.xlu0 %v401, 96
    %v973 = vpop.permute.xlu0 %972
    %v975 = vsel %vm500, %v970, 0
    %v978 = vsel %vm528, %v973, 0
    %980 = vmatprep.subr.bf16.mxu0 0
    %981 = vmatpush1.bf16.msra.mxu0 0
    %982 = vmatprep.subr.bf16.mxu0 0
    %983 = vmatpush1.bf16.msra.mxu0 0
    %984 = vmatprep.subr.bf16.mxu0 0
    %985 = vmatpush1.bf16.msra.mxu0 0
    %986 = vmatprep.subr.bf16.mxu0 0
    %987 = vmatpush1.bf16.msra.mxu0 0
    %988 = vmatprep.subr.bf16.mxu0 0
    %989 = vmatpush1.bf16.msra.mxu0 0
    %990 = vmatprep.subr.bf16.mxu0 0
    %991 = vmatpush1.bf16.msra.mxu0 0
    %992 = vmatprep.subr.bf16.mxu0 0
    %993 = vmatpush1.bf16.msra.mxu0 0
    %994 = vmatprep.subr.bf16.mxu0 0
    %995 = vmatpush1.bf16.msra.mxu0 %v978
    %996 = vmatprep.subr.bf16.mxu0 0
    %997 = vmatpush2.bf16.msra.mxu0 0
    %998 = vmatprep.subr.bf16.mxu0 0
    %999 = vmatpush2.bf16.msra.mxu0 0
    %1000 = vmatprep.subr.bf16.mxu0 0
    %1001 = vmatpush2.bf16.msra.mxu0 0
    %1002 = vmatprep.subr.bf16.mxu0 0
    %1003 = vmatpush2.bf16.msra.mxu0 0
    %1004 = vmatprep.subr.bf16.mxu0 0
    %1005 = vmatpush2.bf16.msra.mxu0 0
    %1006 = vmatprep.subr.bf16.mxu0 0
    %1007 = vmatpush2.bf16.msra.mxu0 0
    %1008 = vmatprep.subr.bf16.mxu0 0
    %1009 = vmatpush2.bf16.msra.mxu0 0
    %1010 = vmatprep.subr.bf16.mxu0 0
    %1011 = vmatpush2.bf16.msra.mxu0 0
    %1012 = vmatprep.mubr.bf16.mxu0 0
    %1013 = vmatmul.mubr.bf16.gmra.mxu0 %v975
    %v1014 = vpop.f32.mrf.mxu0
    %v1015 = vadd.f32 0.0, %v1014
    %v1016 = vpop.f32.mrf.mxu0
    %v1017 = vpop.f32.mrf.mxu0
    %v1018 = vpop.f32.mrf.mxu0
    %1019 = vdwg.mxu0
    %1020 = vrot.lane.b32.xlu0 %v402, 96
    %v1021 = vpop.permute.xlu0 %1020
    %v1023 = vsel %vm500, %v971, 0
    %v1026 = vsel %vm528, %v1021, 0
    %1028 = vmatprep.subr.bf16.mxu0 0
    %1029 = vmatpush1.bf16.msra.mxu0 0
    %1030 = vmatprep.subr.bf16.mxu0 0
    %1031 = vmatpush1.bf16.msra.mxu0 0
    %1032 = vmatprep.subr.bf16.mxu0 0
    %1033 = vmatpush1.bf16.msra.mxu0 0
    %1034 = vmatprep.subr.bf16.mxu0 0
    %1035 = vmatpush1.bf16.msra.mxu0 0
    %1036 = vmatprep.subr.bf16.mxu0 0
    %1037 = vmatpush1.bf16.msra.mxu0 0
    %1038 = vmatprep.subr.bf16.mxu0 0
    %1039 = vmatpush1.bf16.msra.mxu0 0
    %1040 = vmatprep.subr.bf16.mxu0 0
    %1041 = vmatpush1.bf16.msra.mxu0 0
    %1042 = vmatprep.subr.bf16.mxu0 0
    %1043 = vmatpush1.bf16.msra.mxu0 %v1026
    %1044 = vmatprep.subr.bf16.mxu0 0
    %1045 = vmatpush2.bf16.msra.mxu0 0
    %1046 = vmatprep.subr.bf16.mxu0 0
    %1047 = vmatpush2.bf16.msra.mxu0 0
    %1048 = vmatprep.subr.bf16.mxu0 0
    %1049 = vmatpush2.bf16.msra.mxu0 0
    %1050 = vmatprep.subr.bf16.mxu0 0
    %1051 = vmatpush2.bf16.msra.mxu0 0
    %1052 = vmatprep.subr.bf16.mxu0 0
    %1053 = vmatpush2.bf16.msra.mxu0 0
    %1054 = vmatprep.subr.bf16.mxu0 0
    %1055 = vmatpush2.bf16.msra.mxu0 0
    %1056 = vmatprep.subr.bf16.mxu0 0
    %1057 = vmatpush2.bf16.msra.mxu0 0
    %1058 = vmatprep.subr.bf16.mxu0 0
    %1059 = vmatpush2.bf16.msra.mxu0 0
    %1060 = vmatprep.mubr.bf16.mxu0 0
    %1061 = vmatmul.mubr.bf16.gmra.mxu0 %v1023
    %v1062 = vpop.f32.mrf.mxu0
    %v1063 = vadd.f32 0.0, %v1062
    %v1064 = vpop.f32.mrf.mxu0
    %v1065 = vpop.f32.mrf.mxu0
    %v1066 = vpop.f32.mrf.mxu0
    %1067 = vdwg.mxu0
    %1068 = vrot.lane.b32.xlu0 %v397, 80
    %v1069 = vpop.permute.xlu0 %1068
    %1070 = vrot.lane.b32.xlu0 %v399, 80
    %v1071 = vpop.permute.xlu0 %1070
    %v1073 = vsel %vm403, %v1069, 0
    %v1076 = vsel %vm403, %v1071, 0
    %1078 = vmatprep.subr.bf16.mxu0 0
    %1079 = vmatpush1.bf16.xpose.msra.mxu0 0
    %1080 = vmatprep.subr.bf16.mxu0 0
    %1081 = vmatpush1.bf16.xpose.msra.mxu0 0
    %1082 = vmatprep.subr.bf16.mxu0 0
    %1083 = vmatpush1.bf16.xpose.msra.mxu0 0
    %1084 = vmatprep.subr.bf16.mxu0 0
    %1085 = vmatpush1.bf16.xpose.msra.mxu0 0
    %1086 = vmatprep.subr.bf16.mxu0 0
    %1087 = vmatpush1.bf16.xpose.msra.mxu0 0
    %1088 = vmatprep.subr.bf16.mxu0 0
    %1089 = vmatpush1.bf16.xpose.msra.mxu0 0
    %1090 = vmatprep.subr.bf16.mxu0 0
    %1091 = vmatpush1.bf16.xpose.msra.mxu0 0
    %1092 = vmatprep.subr.bf16.mxu0 0
    %1093 = vmatpush1.bf16.xpose.msra.mxu0 %v1076
    %1094 = vmatprep.subr.bf16.mxu0 0
    %1095 = vmatpush2.bf16.xpose.msra.mxu0 0
    %1096 = vmatprep.subr.bf16.mxu0 0
    %1097 = vmatpush2.bf16.xpose.msra.mxu0 0
    %1098 = vmatprep.subr.bf16.mxu0 0
    %1099 = vmatpush2.bf16.xpose.msra.mxu0 0
    %1100 = vmatprep.subr.bf16.mxu0 0
    %1101 = vmatpush2.bf16.xpose.msra.mxu0 0
    %1102 = vmatprep.subr.bf16.mxu0 0
    %1103 = vmatpush2.bf16.xpose.msra.mxu0 0
    %1104 = vmatprep.subr.bf16.mxu0 0
    %1105 = vmatpush2.bf16.xpose.msra.mxu0 0
    %1106 = vmatprep.subr.bf16.mxu0 0
    %1107 = vmatpush2.bf16.xpose.msra.mxu0 0
    %1108 = vmatprep.subr.bf16.mxu0 0
    %1109 = vmatpush2.bf16.xpose.msra.mxu0 0
    %1110 = vmatprep.mubr.bf16.mxu0 0
    %1111 = vmatmul.mubr.bf16.gmra.mxu0 %v1073
    %v1112 = vpop.f32.mrf.mxu0
    %v1113 = vadd.f32 0.0, %v1112
    %v1114 = vpop.f32.mrf.mxu0
    %v1115 = vpop.f32.mrf.mxu0
    %v1116 = vpop.f32.mrf.mxu0
    %1117 = vdwg.mxu0
    %1118 = vrot.lane.b32.xlu0 %v398, 80
    %v1119 = vpop.permute.xlu0 %1118
    %1120 = vrot.lane.b32.xlu0 %v400, 80
    %v1121 = vpop.permute.xlu0 %1120
    %v1123 = vsel %vm403, %v1119, 0
    %v1126 = vsel %vm403, %v1121, 0
    %1128 = vmatprep.subr.bf16.mxu0 0
    %1129 = vmatpush1.bf16.xpose.msra.mxu0 0
    %1130 = vmatprep.subr.bf16.mxu0 0
    %1131 = vmatpush1.bf16.xpose.msra.mxu0 0
    %1132 = vmatprep.subr.bf16.mxu0 0
    %1133 = vmatpush1.bf16.xpose.msra.mxu0 0
    %1134 = vmatprep.subr.bf16.mxu0 0
    %1135 = vmatpush1.bf16.xpose.msra.mxu0 0
    %1136 = vmatprep.subr.bf16.mxu0 0
    %1137 = vmatpush1.bf16.xpose.msra.mxu0 0
    %1138 = vmatprep.subr.bf16.mxu0 0
    %1139 = vmatpush1.bf16.xpose.msra.mxu0 0
    %1140 = vmatprep.subr.bf16.mxu0 0
    %1141 = vmatpush1.bf16.xpose.msra.mxu0 0
    %1142 = vmatprep.subr.bf16.mxu0 0
    %1143 = vmatpush1.bf16.xpose.msra.mxu0 %v1126
    %1144 = vmatprep.subr.bf16.mxu0 0
    %1145 = vmatpush2.bf16.xpose.msra.mxu0 0
    %1146 = vmatprep.subr.bf16.mxu0 0
    %1147 = vmatpush2.bf16.xpose.msra.mxu0 0
    %1148 = vmatprep.subr.bf16.mxu0 0
    %1149 = vmatpush2.bf16.xpose.msra.mxu0 0
    %1150 = vmatprep.subr.bf16.mxu0 0
    %1151 = vmatpush2.bf16.xpose.msra.mxu0 0
    %1152 = vmatprep.subr.bf16.mxu0 0
    %1153 = vmatpush2.bf16.xpose.msra.mxu0 0
    %1154 = vmatprep.subr.bf16.mxu0 0
    %1155 = vmatpush2.bf16.xpose.msra.mxu0 0
    %1156 = vmatprep.subr.bf16.mxu0 0
    %1157 = vmatpush2.bf16.xpose.msra.mxu0 0
    %1158 = vmatprep.subr.bf16.mxu0 0
    %1159 = vmatpush2.bf16.xpose.msra.mxu0 0
    %1160 = vmatprep.mubr.bf16.mxu0 0
    %1161 = vmatmul.mubr.bf16.gmra.mxu0 %v1123
    %v1162 = vpop.f32.mrf.mxu0
    %v1163 = vadd.f32 0.0, %v1162
    %v1164 = vpop.f32.mrf.mxu0
    %v1165 = vpop.f32.mrf.mxu0
    %v1166 = vpop.f32.mrf.mxu0
    %1167 = vdwg.mxu0
    %v1168 = vsel %vm497, %v1113, -1e+12
    %v1169 = vsel %vm497, %v1163, -1e+12
    %v1170 = vsel %vm500, %v1168, -inf
    %1171 = vmax.xlane.f32.xlu0 %v1170
    %v1172 = vpop.xlane.xlu0 %1171
    %v1173 = vsel %vm500, %v1169, -inf
    %1174 = vmax.xlane.f32.xlu0 %v1173
    %v1175 = vpop.xlane.xlu0 %1174
    %v1176 = vsub.f32 %v1168, %v1172
    %v1177 = vsub.f32 %v1169, %v1175
    %v1178 = vmul.f32 %v1176, 1.442695
    %v1179 = vpow.pop %v1178
    %v1180 = vmul.f32 %v1177, 1.442695
    %v1181 = vpow.pop %v1180
    %v1182 = vsel %vm500, %v1179, 0.0
    %1183 = vadd.xlane.f32.xlu0 %v1182
    %v1184 = vpop.xlane.xlu0 %1183
    %v1185 = vsel %vm500, %v1181, 0.0
    %1186 = vadd.xlane.f32.xlu0 %v1185
    %v1187 = vpop.xlane.xlu0 %1186
    %v1188 = vrcp.pop %v1184
    %v1189 = vrcp.pop %v1187
    %v1190 = vmul.f32 %v1179, %v1188
    %v1191 = vmul.f32 %v1181, %v1189
    %v1192 = vpack.c.bf16 %v1190, %v1190
    %v1193 = vpack.c.bf16 %v1191, %v1191
    %1194 = vrot.lane.b32.xlu0 %v401, 80
    %v1195 = vpop.permute.xlu0 %1194
    %v1197 = vsel %vm500, %v1192, 0
    %v1200 = vsel %vm528, %v1195, 0
    %1202 = vmatprep.subr.bf16.mxu0 0
    %1203 = vmatpush1.bf16.msra.mxu0 0
    %1204 = vmatprep.subr.bf16.mxu0 0
    %1205 = vmatpush1.bf16.msra.mxu0 0
    %1206 = vmatprep.subr.bf16.mxu0 0
    %1207 = vmatpush1.bf16.msra.mxu0 0
    %1208 = vmatprep.subr.bf16.mxu0 0
    %1209 = vmatpush1.bf16.msra.mxu0 0
    %1210 = vmatprep.subr.bf16.mxu0 0
    %1211 = vmatpush1.bf16.msra.mxu0 0
    %1212 = vmatprep.subr.bf16.mxu0 0
    %1213 = vmatpush1.bf16.msra.mxu0 0
    %1214 = vmatprep.subr.bf16.mxu0 0
    %1215 = vmatpush1.bf16.msra.mxu0 0
    %1216 = vmatprep.subr.bf16.mxu0 0
    %1217 = vmatpush1.bf16.msra.mxu0 %v1200
    %1218 = vmatprep.subr.bf16.mxu0 0
    %1219 = vmatpush2.bf16.msra.mxu0 0
    %1220 = vmatprep.subr.bf16.mxu0 0
    %1221 = vmatpush2.bf16.msra.mxu0 0
    %1222 = vmatprep.subr.bf16.mxu0 0
    %1223 = vmatpush2.bf16.msra.mxu0 0
    %1224 = vmatprep.subr.bf16.mxu0 0
    %1225 = vmatpush2.bf16.msra.mxu0 0
    %1226 = vmatprep.subr.bf16.mxu0 0
    %1227 = vmatpush2.bf16.msra.mxu0 0
    %1228 = vmatprep.subr.bf16.mxu0 0
    %1229 = vmatpush2.bf16.msra.mxu0 0
    %1230 = vmatprep.subr.bf16.mxu0 0
    %1231 = vmatpush2.bf16.msra.mxu0 0
    %1232 = vmatprep.subr.bf16.mxu0 0
    %1233 = vmatpush2.bf16.msra.mxu0 0
    %1234 = vmatprep.mubr.bf16.mxu0 0
    %1235 = vmatmul.mubr.bf16.gmra.mxu0 %v1197
    %v1236 = vpop.f32.mrf.mxu0
    %v1237 = vadd.f32 0.0, %v1236
    %v1238 = vpop.f32.mrf.mxu0
    %v1239 = vpop.f32.mrf.mxu0
    %v1240 = vpop.f32.mrf.mxu0
    %1241 = vdwg.mxu0
    %1242 = vrot.lane.b32.xlu0 %v402, 80
    %v1243 = vpop.permute.xlu0 %1242
    %v1245 = vsel %vm500, %v1193, 0
    %v1248 = vsel %vm528, %v1243, 0
    %1250 = vmatprep.subr.bf16.mxu0 0
    %1251 = vmatpush1.bf16.msra.mxu0 0
    %1252 = vmatprep.subr.bf16.mxu0 0
    %1253 = vmatpush1.bf16.msra.mxu0 0
    %1254 = vmatprep.subr.bf16.mxu0 0
    %1255 = vmatpush1.bf16.msra.mxu0 0
    %1256 = vmatprep.subr.bf16.mxu0 0
    %1257 = vmatpush1.bf16.msra.mxu0 0
    %1258 = vmatprep.subr.bf16.mxu0 0
    %1259 = vmatpush1.bf16.msra.mxu0 0
    %1260 = vmatprep.subr.bf16.mxu0 0
    %1261 = vmatpush1.bf16.msra.mxu0 0
    %1262 = vmatprep.subr.bf16.mxu0 0
    %1263 = vmatpush1.bf16.msra.mxu0 0
    %1264 = vmatprep.subr.bf16.mxu0 0
    %1265 = vmatpush1.bf16.msra.mxu0 %v1248
    %1266 = vmatprep.subr.bf16.mxu0 0
    %1267 = vmatpush2.bf16.msra.mxu0 0
    %1268 = vmatprep.subr.bf16.mxu0 0
    %1269 = vmatpush2.bf16.msra.mxu0 0
    %1270 = vmatprep.subr.bf16.mxu0 0
    %1271 = vmatpush2.bf16.msra.mxu0 0
    %1272 = vmatprep.subr.bf16.mxu0 0
    %1273 = vmatpush2.bf16.msra.mxu0 0
    %1274 = vmatprep.subr.bf16.mxu0 0
    %1275 = vmatpush2.bf16.msra.mxu0 0
    %1276 = vmatprep.subr.bf16.mxu0 0
    %1277 = vmatpush2.bf16.msra.mxu0 0
    %1278 = vmatprep.subr.bf16.mxu0 0
    %1279 = vmatpush2.bf16.msra.mxu0 0
    %1280 = vmatprep.subr.bf16.mxu0 0
    %1281 = vmatpush2.bf16.msra.mxu0 0
    %1282 = vmatprep.mubr.bf16.mxu0 0
    %1283 = vmatmul.mubr.bf16.gmra.mxu0 %v1245
    %v1284 = vpop.f32.mrf.mxu0
    %v1285 = vadd.f32 0.0, %v1284
    %v1286 = vpop.f32.mrf.mxu0
    %v1287 = vpop.f32.mrf.mxu0
    %v1288 = vpop.f32.mrf.mxu0
    %1289 = vdwg.mxu0
    %1290 = vrot.lane.b32.xlu0 %v397, 64
    %v1291 = vpop.permute.xlu0 %1290
    %1292 = vrot.lane.b32.xlu0 %v399, 64
    %v1293 = vpop.permute.xlu0 %1292
    %v1295 = vsel %vm403, %v1291, 0
    %v1298 = vsel %vm403, %v1293, 0
    %1300 = vmatprep.subr.bf16.mxu0 0
    %1301 = vmatpush1.bf16.xpose.msra.mxu0 0
    %1302 = vmatprep.subr.bf16.mxu0 0
    %1303 = vmatpush1.bf16.xpose.msra.mxu0 0
    %1304 = vmatprep.subr.bf16.mxu0 0
    %1305 = vmatpush1.bf16.xpose.msra.mxu0 0
    %1306 = vmatprep.subr.bf16.mxu0 0
    %1307 = vmatpush1.bf16.xpose.msra.mxu0 0
    %1308 = vmatprep.subr.bf16.mxu0 0
    %1309 = vmatpush1.bf16.xpose.msra.mxu0 0
    %1310 = vmatprep.subr.bf16.mxu0 0
    %1311 = vmatpush1.bf16.xpose.msra.mxu0 0
    %1312 = vmatprep.subr.bf16.mxu0 0
    %1313 = vmatpush1.bf16.xpose.msra.mxu0 0
    %1314 = vmatprep.subr.bf16.mxu0 0
    %1315 = vmatpush1.bf16.xpose.msra.mxu0 %v1298
    %1316 = vmatprep.subr.bf16.mxu0 0
    %1317 = vmatpush2.bf16.xpose.msra.mxu0 0
    %1318 = vmatprep.subr.bf16.mxu0 0
    %1319 = vmatpush2.bf16.xpose.msra.mxu0 0
    %1320 = vmatprep.subr.bf16.mxu0 0
    %1321 = vmatpush2.bf16.xpose.msra.mxu0 0
    %1322 = vmatprep.subr.bf16.mxu0 0
    %1323 = vmatpush2.bf16.xpose.msra.mxu0 0
    %1324 = vmatprep.subr.bf16.mxu0 0
    %1325 = vmatpush2.bf16.xpose.msra.mxu0 0
    %1326 = vmatprep.subr.bf16.mxu0 0
    %1327 = vmatpush2.bf16.xpose.msra.mxu0 0
    %1328 = vmatprep.subr.bf16.mxu0 0
    %1329 = vmatpush2.bf16.xpose.msra.mxu0 0
    %1330 = vmatprep.subr.bf16.mxu0 0
    %1331 = vmatpush2.bf16.xpose.msra.mxu0 0
    %1332 = vmatprep.mubr.bf16.mxu0 0
    %1333 = vmatmul.mubr.bf16.gmra.mxu0 %v1295
    %v1334 = vpop.f32.mrf.mxu0
    %v1335 = vadd.f32 0.0, %v1334
    %v1336 = vpop.f32.mrf.mxu0
    %v1337 = vpop.f32.mrf.mxu0
    %v1338 = vpop.f32.mrf.mxu0
    %1339 = vdwg.mxu0
    %1340 = vrot.lane.b32.xlu0 %v398, 64
    %v1341 = vpop.permute.xlu0 %1340
    %1342 = vrot.lane.b32.xlu0 %v400, 64
    %v1343 = vpop.permute.xlu0 %1342
    %v1345 = vsel %vm403, %v1341, 0
    %v1348 = vsel %vm403, %v1343, 0
    %1350 = vmatprep.subr.bf16.mxu0 0
    %1351 = vmatpush1.bf16.xpose.msra.mxu0 0
    %1352 = vmatprep.subr.bf16.mxu0 0
    %1353 = vmatpush1.bf16.xpose.msra.mxu0 0
    %1354 = vmatprep.subr.bf16.mxu0 0
    %1355 = vmatpush1.bf16.xpose.msra.mxu0 0
    %1356 = vmatprep.subr.bf16.mxu0 0
    %1357 = vmatpush1.bf16.xpose.msra.mxu0 0
    %1358 = vmatprep.subr.bf16.mxu0 0
    %1359 = vmatpush1.bf16.xpose.msra.mxu0 0
    %1360 = vmatprep.subr.bf16.mxu0 0
    %1361 = vmatpush1.bf16.xpose.msra.mxu0 0
    %1362 = vmatprep.subr.bf16.mxu0 0
    %1363 = vmatpush1.bf16.xpose.msra.mxu0 0
    %1364 = vmatprep.subr.bf16.mxu0 0
    %1365 = vmatpush1.bf16.xpose.msra.mxu0 %v1348
    %1366 = vmatprep.subr.bf16.mxu0 0
    %1367 = vmatpush2.bf16.xpose.msra.mxu0 0
    %1368 = vmatprep.subr.bf16.mxu0 0
    %1369 = vmatpush2.bf16.xpose.msra.mxu0 0
    %1370 = vmatprep.subr.bf16.mxu0 0
    %1371 = vmatpush2.bf16.xpose.msra.mxu0 0
    %1372 = vmatprep.subr.bf16.mxu0 0
    %1373 = vmatpush2.bf16.xpose.msra.mxu0 0
    %1374 = vmatprep.subr.bf16.mxu0 0
    %1375 = vmatpush2.bf16.xpose.msra.mxu0 0
    %1376 = vmatprep.subr.bf16.mxu0 0
    %1377 = vmatpush2.bf16.xpose.msra.mxu0 0
    %1378 = vmatprep.subr.bf16.mxu0 0
    %1379 = vmatpush2.bf16.xpose.msra.mxu0 0
    %1380 = vmatprep.subr.bf16.mxu0 0
    %1381 = vmatpush2.bf16.xpose.msra.mxu0 0
    %1382 = vmatprep.mubr.bf16.mxu0 0
    %1383 = vmatmul.mubr.bf16.gmra.mxu0 %v1345
    %v1384 = vpop.f32.mrf.mxu0
    %v1385 = vadd.f32 0.0, %v1384
    %v1386 = vpop.f32.mrf.mxu0
    %v1387 = vpop.f32.mrf.mxu0
    %v1388 = vpop.f32.mrf.mxu0
    %1389 = vdwg.mxu0
    %v1390 = vsel %vm497, %v1335, -1e+12
    %v1391 = vsel %vm497, %v1385, -1e+12
    %v1392 = vsel %vm500, %v1390, -inf
    %1393 = vmax.xlane.f32.xlu0 %v1392
    %v1394 = vpop.xlane.xlu0 %1393
    %v1395 = vsel %vm500, %v1391, -inf
    %1396 = vmax.xlane.f32.xlu0 %v1395
    %v1397 = vpop.xlane.xlu0 %1396
    %v1398 = vsub.f32 %v1390, %v1394
    %v1399 = vsub.f32 %v1391, %v1397
    %v1400 = vmul.f32 %v1398, 1.442695
    %v1401 = vpow.pop %v1400
    %v1402 = vmul.f32 %v1399, 1.442695
    %v1403 = vpow.pop %v1402
    %v1404 = vsel %vm500, %v1401, 0.0
    %1405 = vadd.xlane.f32.xlu0 %v1404
    %v1406 = vpop.xlane.xlu0 %1405
    %v1407 = vsel %vm500, %v1403, 0.0
    %1408 = vadd.xlane.f32.xlu0 %v1407
    %v1409 = vpop.xlane.xlu0 %1408
    %v1410 = vrcp.pop %v1406
    %v1411 = vrcp.pop %v1409
    %v1412 = vmul.f32 %v1401, %v1410
    %v1413 = vmul.f32 %v1403, %v1411
    %v1414 = vpack.c.bf16 %v1412, %v1412
    %v1415 = vpack.c.bf16 %v1413, %v1413
    %1416 = vrot.lane.b32.xlu0 %v401, 64
    %v1417 = vpop.permute.xlu0 %1416
    %v1419 = vsel %vm500, %v1414, 0
    %v1422 = vsel %vm528, %v1417, 0
    %1424 = vmatprep.subr.bf16.mxu0 0
    %1425 = vmatpush1.bf16.msra.mxu0 0
    %1426 = vmatprep.subr.bf16.mxu0 0
    %1427 = vmatpush1.bf16.msra.mxu0 0
    %1428 = vmatprep.subr.bf16.mxu0 0
    %1429 = vmatpush1.bf16.msra.mxu0 0
    %1430 = vmatprep.subr.bf16.mxu0 0
    %1431 = vmatpush1.bf16.msra.mxu0 0
    %1432 = vmatprep.subr.bf16.mxu0 0
    %1433 = vmatpush1.bf16.msra.mxu0 0
    %1434 = vmatprep.subr.bf16.mxu0 0
    %1435 = vmatpush1.bf16.msra.mxu0 0
    %1436 = vmatprep.subr.bf16.mxu0 0
    %1437 = vmatpush1.bf16.msra.mxu0 0
    %1438 = vmatprep.subr.bf16.mxu0 0
    %1439 = vmatpush1.bf16.msra.mxu0 %v1422
    %1440 = vmatprep.subr.bf16.mxu0 0
    %1441 = vmatpush2.bf16.msra.mxu0 0
    %1442 = vmatprep.subr.bf16.mxu0 0
    %1443 = vmatpush2.bf16.msra.mxu0 0
    %1444 = vmatprep.subr.bf16.mxu0 0
    %1445 = vmatpush2.bf16.msra.mxu0 0
    %1446 = vmatprep.subr.bf16.mxu0 0
    %1447 = vmatpush2.bf16.msra.mxu0 0
    %1448 = vmatprep.subr.bf16.mxu0 0
    %1449 = vmatpush2.bf16.msra.mxu0 0
    %1450 = vmatprep.subr.bf16.mxu0 0
    %1451 = vmatpush2.bf16.msra.mxu0 0
    %1452 = vmatprep.subr.bf16.mxu0 0
    %1453 = vmatpush2.bf16.msra.mxu0 0
    %1454 = vmatprep.subr.bf16.mxu0 0
    %1455 = vmatpush2.bf16.msra.mxu0 0
    %1456 = vmatprep.mubr.bf16.mxu0 0
    %1457 = vmatmul.mubr.bf16.gmra.mxu0 %v1419
    %v1458 = vpop.f32.mrf.mxu0
    %v1459 = vadd.f32 0.0, %v1458
    %v1460 = vpop.f32.mrf.mxu0
    %v1461 = vpop.f32.mrf.mxu0
    %v1462 = vpop.f32.mrf.mxu0
    %1463 = vdwg.mxu0
    %1464 = vrot.lane.b32.xlu0 %v402, 64
    %v1465 = vpop.permute.xlu0 %1464
    %v1467 = vsel %vm500, %v1415, 0
    %v1470 = vsel %vm528, %v1465, 0
    %1472 = vmatprep.subr.bf16.mxu0 0
    %1473 = vmatpush1.bf16.msra.mxu0 0
    %1474 = vmatprep.subr.bf16.mxu0 0
    %1475 = vmatpush1.bf16.msra.mxu0 0
    %1476 = vmatprep.subr.bf16.mxu0 0
    %1477 = vmatpush1.bf16.msra.mxu0 0
    %1478 = vmatprep.subr.bf16.mxu0 0
    %1479 = vmatpush1.bf16.msra.mxu0 0
    %1480 = vmatprep.subr.bf16.mxu0 0
    %1481 = vmatpush1.bf16.msra.mxu0 0
    %1482 = vmatprep.subr.bf16.mxu0 0
    %1483 = vmatpush1.bf16.msra.mxu0 0
    %1484 = vmatprep.subr.bf16.mxu0 0
    %1485 = vmatpush1.bf16.msra.mxu0 0
    %1486 = vmatprep.subr.bf16.mxu0 0
    %1487 = vmatpush1.bf16.msra.mxu0 %v1470
    %1488 = vmatprep.subr.bf16.mxu0 0
    %1489 = vmatpush2.bf16.msra.mxu0 0
    %1490 = vmatprep.subr.bf16.mxu0 0
    %1491 = vmatpush2.bf16.msra.mxu0 0
    %1492 = vmatprep.subr.bf16.mxu0 0
    %1493 = vmatpush2.bf16.msra.mxu0 0
    %1494 = vmatprep.subr.bf16.mxu0 0
    %1495 = vmatpush2.bf16.msra.mxu0 0
    %1496 = vmatprep.subr.bf16.mxu0 0
    %1497 = vmatpush2.bf16.msra.mxu0 0
    %1498 = vmatprep.subr.bf16.mxu0 0
    %1499 = vmatpush2.bf16.msra.mxu0 0
    %1500 = vmatprep.subr.bf16.mxu0 0
    %1501 = vmatpush2.bf16.msra.mxu0 0
    %1502 = vmatprep.subr.bf16.mxu0 0
    %1503 = vmatpush2.bf16.msra.mxu0 0
    %1504 = vmatprep.mubr.bf16.mxu0 0
    %1505 = vmatmul.mubr.bf16.gmra.mxu0 %v1467
    %v1506 = vpop.f32.mrf.mxu0
    %v1507 = vadd.f32 0.0, %v1506
    %v1508 = vpop.f32.mrf.mxu0
    %v1509 = vpop.f32.mrf.mxu0
    %v1510 = vpop.f32.mrf.mxu0
    %1511 = vdwg.mxu0
    %1512 = vrot.lane.b32.xlu0 %v397, 48
    %v1513 = vpop.permute.xlu0 %1512
    %1514 = vrot.lane.b32.xlu0 %v399, 48
    %v1515 = vpop.permute.xlu0 %1514
    %v1517 = vsel %vm403, %v1513, 0
    %v1520 = vsel %vm403, %v1515, 0
    %1522 = vmatprep.subr.bf16.mxu0 0
    %1523 = vmatpush1.bf16.xpose.msra.mxu0 0
    %1524 = vmatprep.subr.bf16.mxu0 0
    %1525 = vmatpush1.bf16.xpose.msra.mxu0 0
    %1526 = vmatprep.subr.bf16.mxu0 0
    %1527 = vmatpush1.bf16.xpose.msra.mxu0 0
    %1528 = vmatprep.subr.bf16.mxu0 0
    %1529 = vmatpush1.bf16.xpose.msra.mxu0 0
    %1530 = vmatprep.subr.bf16.mxu0 0
    %1531 = vmatpush1.bf16.xpose.msra.mxu0 0
    %1532 = vmatprep.subr.bf16.mxu0 0
    %1533 = vmatpush1.bf16.xpose.msra.mxu0 0
    %1534 = vmatprep.subr.bf16.mxu0 0
    %1535 = vmatpush1.bf16.xpose.msra.mxu0 0
    %1536 = vmatprep.subr.bf16.mxu0 0
    %1537 = vmatpush1.bf16.xpose.msra.mxu0 %v1520
    %1538 = vmatprep.subr.bf16.mxu0 0
    %1539 = vmatpush2.bf16.xpose.msra.mxu0 0
    %1540 = vmatprep.subr.bf16.mxu0 0
    %1541 = vmatpush2.bf16.xpose.msra.mxu0 0
    %1542 = vmatprep.subr.bf16.mxu0 0
    %1543 = vmatpush2.bf16.xpose.msra.mxu0 0
    %1544 = vmatprep.subr.bf16.mxu0 0
    %1545 = vmatpush2.bf16.xpose.msra.mxu0 0
    %1546 = vmatprep.subr.bf16.mxu0 0
    %1547 = vmatpush2.bf16.xpose.msra.mxu0 0
    %1548 = vmatprep.subr.bf16.mxu0 0
    %1549 = vmatpush2.bf16.xpose.msra.mxu0 0
    %1550 = vmatprep.subr.bf16.mxu0 0
    %1551 = vmatpush2.bf16.xpose.msra.mxu0 0
    %1552 = vmatprep.subr.bf16.mxu0 0
    %1553 = vmatpush2.bf16.xpose.msra.mxu0 0
    %1554 = vmatprep.mubr.bf16.mxu0 0
    %1555 = vmatmul.mubr.bf16.gmra.mxu0 %v1517
    %v1556 = vpop.f32.mrf.mxu0
    %v1557 = vadd.f32 0.0, %v1556
    %v1558 = vpop.f32.mrf.mxu0
    %v1559 = vpop.f32.mrf.mxu0
    %v1560 = vpop.f32.mrf.mxu0
    %1561 = vdwg.mxu0
    %1562 = vrot.lane.b32.xlu0 %v398, 48
    %v1563 = vpop.permute.xlu0 %1562
    %1564 = vrot.lane.b32.xlu0 %v400, 48
    %v1565 = vpop.permute.xlu0 %1564
    %v1567 = vsel %vm403, %v1563, 0
    %v1570 = vsel %vm403, %v1565, 0
    %1572 = vmatprep.subr.bf16.mxu0 0
    %1573 = vmatpush1.bf16.xpose.msra.mxu0 0
    %1574 = vmatprep.subr.bf16.mxu0 0
    %1575 = vmatpush1.bf16.xpose.msra.mxu0 0
    %1576 = vmatprep.subr.bf16.mxu0 0
    %1577 = vmatpush1.bf16.xpose.msra.mxu0 0
    %1578 = vmatprep.subr.bf16.mxu0 0
    %1579 = vmatpush1.bf16.xpose.msra.mxu0 0
    %1580 = vmatprep.subr.bf16.mxu0 0
    %1581 = vmatpush1.bf16.xpose.msra.mxu0 0
    %1582 = vmatprep.subr.bf16.mxu0 0
    %1583 = vmatpush1.bf16.xpose.msra.mxu0 0
    %1584 = vmatprep.subr.bf16.mxu0 0
    %1585 = vmatpush1.bf16.xpose.msra.mxu0 0
    %1586 = vmatprep.subr.bf16.mxu0 0
    %1587 = vmatpush1.bf16.xpose.msra.mxu0 %v1570
    %1588 = vmatprep.subr.bf16.mxu0 0
    %1589 = vmatpush2.bf16.xpose.msra.mxu0 0
    %1590 = vmatprep.subr.bf16.mxu0 0
    %1591 = vmatpush2.bf16.xpose.msra.mxu0 0
    %1592 = vmatprep.subr.bf16.mxu0 0
    %1593 = vmatpush2.bf16.xpose.msra.mxu0 0
    %1594 = vmatprep.subr.bf16.mxu0 0
    %1595 = vmatpush2.bf16.xpose.msra.mxu0 0
    %1596 = vmatprep.subr.bf16.mxu0 0
    %1597 = vmatpush2.bf16.xpose.msra.mxu0 0
    %1598 = vmatprep.subr.bf16.mxu0 0
    %1599 = vmatpush2.bf16.xpose.msra.mxu0 0
    %1600 = vmatprep.subr.bf16.mxu0 0
    %1601 = vmatpush2.bf16.xpose.msra.mxu0 0
    %1602 = vmatprep.subr.bf16.mxu0 0
    %1603 = vmatpush2.bf16.xpose.msra.mxu0 0
    %1604 = vmatprep.mubr.bf16.mxu0 0
    %1605 = vmatmul.mubr.bf16.gmra.mxu0 %v1567
    %v1606 = vpop.f32.mrf.mxu0
    %v1607 = vadd.f32 0.0, %v1606
    %v1608 = vpop.f32.mrf.mxu0
    %v1609 = vpop.f32.mrf.mxu0
    %v1610 = vpop.f32.mrf.mxu0
    %1611 = vdwg.mxu0
    %v1612 = vsel %vm497, %v1557, -1e+12
    %v1613 = vsel %vm497, %v1607, -1e+12
    %v1614 = vsel %vm500, %v1612, -inf
    %1615 = vmax.xlane.f32.xlu0 %v1614
    %v1616 = vpop.xlane.xlu0 %1615
    %v1617 = vsel %vm500, %v1613, -inf
    %1618 = vmax.xlane.f32.xlu0 %v1617
    %v1619 = vpop.xlane.xlu0 %1618
    %v1620 = vsub.f32 %v1612, %v1616
    %v1621 = vsub.f32 %v1613, %v1619
    %v1622 = vmul.f32 %v1620, 1.442695
    %v1623 = vpow.pop %v1622
    %v1624 = vmul.f32 %v1621, 1.442695
    %v1625 = vpow.pop %v1624
    %v1626 = vsel %vm500, %v1623, 0.0
    %1627 = vadd.xlane.f32.xlu0 %v1626
    %v1628 = vpop.xlane.xlu0 %1627
    %v1629 = vsel %vm500, %v1625, 0.0
    %1630 = vadd.xlane.f32.xlu0 %v1629
    %v1631 = vpop.xlane.xlu0 %1630
    %v1632 = vrcp.pop %v1628
    %v1633 = vrcp.pop %v1631
    %v1634 = vmul.f32 %v1623, %v1632
    %v1635 = vmul.f32 %v1625, %v1633
    %v1636 = vpack.c.bf16 %v1634, %v1634
    %v1637 = vpack.c.bf16 %v1635, %v1635
    %1638 = vrot.lane.b32.xlu0 %v401, 48
    %v1639 = vpop.permute.xlu0 %1638
    %v1641 = vsel %vm500, %v1636, 0
    %v1644 = vsel %vm528, %v1639, 0
    %1646 = vmatprep.subr.bf16.mxu0 0
    %1647 = vmatpush1.bf16.msra.mxu0 0
    %1648 = vmatprep.subr.bf16.mxu0 0
    %1649 = vmatpush1.bf16.msra.mxu0 0
    %1650 = vmatprep.subr.bf16.mxu0 0
    %1651 = vmatpush1.bf16.msra.mxu0 0
    %1652 = vmatprep.subr.bf16.mxu0 0
    %1653 = vmatpush1.bf16.msra.mxu0 0
    %1654 = vmatprep.subr.bf16.mxu0 0
    %1655 = vmatpush1.bf16.msra.mxu0 0
    %1656 = vmatprep.subr.bf16.mxu0 0
    %1657 = vmatpush1.bf16.msra.mxu0 0
    %1658 = vmatprep.subr.bf16.mxu0 0
    %1659 = vmatpush1.bf16.msra.mxu0 0
    %1660 = vmatprep.subr.bf16.mxu0 0
    %1661 = vmatpush1.bf16.msra.mxu0 %v1644
    %1662 = vmatprep.subr.bf16.mxu0 0
    %1663 = vmatpush2.bf16.msra.mxu0 0
    %1664 = vmatprep.subr.bf16.mxu0 0
    %1665 = vmatpush2.bf16.msra.mxu0 0
    %1666 = vmatprep.subr.bf16.mxu0 0
    %1667 = vmatpush2.bf16.msra.mxu0 0
    %1668 = vmatprep.subr.bf16.mxu0 0
    %1669 = vmatpush2.bf16.msra.mxu0 0
    %1670 = vmatprep.subr.bf16.mxu0 0
    %1671 = vmatpush2.bf16.msra.mxu0 0
    %1672 = vmatprep.subr.bf16.mxu0 0
    %1673 = vmatpush2.bf16.msra.mxu0 0
    %1674 = vmatprep.subr.bf16.mxu0 0
    %1675 = vmatpush2.bf16.msra.mxu0 0
    %1676 = vmatprep.subr.bf16.mxu0 0
    %1677 = vmatpush2.bf16.msra.mxu0 0
    %1678 = vmatprep.mubr.bf16.mxu0 0
    %1679 = vmatmul.mubr.bf16.gmra.mxu0 %v1641
    %v1680 = vpop.f32.mrf.mxu0
    %v1681 = vadd.f32 0.0, %v1680
    %v1682 = vpop.f32.mrf.mxu0
    %v1683 = vpop.f32.mrf.mxu0
    %v1684 = vpop.f32.mrf.mxu0
    %1685 = vdwg.mxu0
    %1686 = vrot.lane.b32.xlu0 %v402, 48
    %v1687 = vpop.permute.xlu0 %1686
    %v1689 = vsel %vm500, %v1637, 0
    %v1692 = vsel %vm528, %v1687, 0
    %1694 = vmatprep.subr.bf16.mxu0 0
    %1695 = vmatpush1.bf16.msra.mxu0 0
    %1696 = vmatprep.subr.bf16.mxu0 0
    %1697 = vmatpush1.bf16.msra.mxu0 0
    %1698 = vmatprep.subr.bf16.mxu0 0
    %1699 = vmatpush1.bf16.msra.mxu0 0
    %1700 = vmatprep.subr.bf16.mxu0 0
    %1701 = vmatpush1.bf16.msra.mxu0 0
    %1702 = vmatprep.subr.bf16.mxu0 0
    %1703 = vmatpush1.bf16.msra.mxu0 0
    %1704 = vmatprep.subr.bf16.mxu0 0
    %1705 = vmatpush1.bf16.msra.mxu0 0
    %1706 = vmatprep.subr.bf16.mxu0 0
    %1707 = vmatpush1.bf16.msra.mxu0 0
    %1708 = vmatprep.subr.bf16.mxu0 0
    %1709 = vmatpush1.bf16.msra.mxu0 %v1692
    %1710 = vmatprep.subr.bf16.mxu0 0
    %1711 = vmatpush2.bf16.msra.mxu0 0
    %1712 = vmatprep.subr.bf16.mxu0 0
    %1713 = vmatpush2.bf16.msra.mxu0 0
    %1714 = vmatprep.subr.bf16.mxu0 0
    %1715 = vmatpush2.bf16.msra.mxu0 0
    %1716 = vmatprep.subr.bf16.mxu0 0
    %1717 = vmatpush2.bf16.msra.mxu0 0
    %1718 = vmatprep.subr.bf16.mxu0 0
    %1719 = vmatpush2.bf16.msra.mxu0 0
    %1720 = vmatprep.subr.bf16.mxu0 0
    %1721 = vmatpush2.bf16.msra.mxu0 0
    %1722 = vmatprep.subr.bf16.mxu0 0
    %1723 = vmatpush2.bf16.msra.mxu0 0
    %1724 = vmatprep.subr.bf16.mxu0 0
    %1725 = vmatpush2.bf16.msra.mxu0 0
    %1726 = vmatprep.mubr.bf16.mxu0 0
    %1727 = vmatmul.mubr.bf16.gmra.mxu0 %v1689
    %v1728 = vpop.f32.mrf.mxu0
    %v1729 = vadd.f32 0.0, %v1728
    %v1730 = vpop.f32.mrf.mxu0
    %v1731 = vpop.f32.mrf.mxu0
    %v1732 = vpop.f32.mrf.mxu0
    %1733 = vdwg.mxu0
    %1734 = vrot.lane.b32.xlu0 %v397, 32
    %v1735 = vpop.permute.xlu0 %1734
    %1736 = vrot.lane.b32.xlu0 %v399, 32
    %v1737 = vpop.permute.xlu0 %1736
    %v1739 = vsel %vm403, %v1735, 0
    %v1742 = vsel %vm403, %v1737, 0
    %1744 = vmatprep.subr.bf16.mxu0 0
    %1745 = vmatpush1.bf16.xpose.msra.mxu0 0
    %1746 = vmatprep.subr.bf16.mxu0 0
    %1747 = vmatpush1.bf16.xpose.msra.mxu0 0
    %1748 = vmatprep.subr.bf16.mxu0 0
    %1749 = vmatpush1.bf16.xpose.msra.mxu0 0
    %1750 = vmatprep.subr.bf16.mxu0 0
    %1751 = vmatpush1.bf16.xpose.msra.mxu0 0
    %1752 = vmatprep.subr.bf16.mxu0 0
    %1753 = vmatpush1.bf16.xpose.msra.mxu0 0
    %1754 = vmatprep.subr.bf16.mxu0 0
    %1755 = vmatpush1.bf16.xpose.msra.mxu0 0
    %1756 = vmatprep.subr.bf16.mxu0 0
    %1757 = vmatpush1.bf16.xpose.msra.mxu0 0
    %1758 = vmatprep.subr.bf16.mxu0 0
    %1759 = vmatpush1.bf16.xpose.msra.mxu0 %v1742
    %1760 = vmatprep.subr.bf16.mxu0 0
    %1761 = vmatpush2.bf16.xpose.msra.mxu0 0
    %1762 = vmatprep.subr.bf16.mxu0 0
    %1763 = vmatpush2.bf16.xpose.msra.mxu0 0
    %1764 = vmatprep.subr.bf16.mxu0 0
    %1765 = vmatpush2.bf16.xpose.msra.mxu0 0
    %1766 = vmatprep.subr.bf16.mxu0 0
    %1767 = vmatpush2.bf16.xpose.msra.mxu0 0
    %1768 = vmatprep.subr.bf16.mxu0 0
    %1769 = vmatpush2.bf16.xpose.msra.mxu0 0
    %1770 = vmatprep.subr.bf16.mxu0 0
    %1771 = vmatpush2.bf16.xpose.msra.mxu0 0
    %1772 = vmatprep.subr.bf16.mxu0 0
    %1773 = vmatpush2.bf16.xpose.msra.mxu0 0
    %1774 = vmatprep.subr.bf16.mxu0 0
    %1775 = vmatpush2.bf16.xpose.msra.mxu0 0
    %1776 = vmatprep.mubr.bf16.mxu0 0
    %1777 = vmatmul.mubr.bf16.gmra.mxu0 %v1739
    %v1778 = vpop.f32.mrf.mxu0
    %v1779 = vadd.f32 0.0, %v1778
    %v1780 = vpop.f32.mrf.mxu0
    %v1781 = vpop.f32.mrf.mxu0
    %v1782 = vpop.f32.mrf.mxu0
    %1783 = vdwg.mxu0
    %1784 = vrot.lane.b32.xlu0 %v398, 32
    %v1785 = vpop.permute.xlu0 %1784
    %1786 = vrot.lane.b32.xlu0 %v400, 32
    %v1787 = vpop.permute.xlu0 %1786
    %v1789 = vsel %vm403, %v1785, 0
    %v1792 = vsel %vm403, %v1787, 0
    %1794 = vmatprep.subr.bf16.mxu0 0
    %1795 = vmatpush1.bf16.xpose.msra.mxu0 0
    %1796 = vmatprep.subr.bf16.mxu0 0
    %1797 = vmatpush1.bf16.xpose.msra.mxu0 0
    %1798 = vmatprep.subr.bf16.mxu0 0
    %1799 = vmatpush1.bf16.xpose.msra.mxu0 0
    %1800 = vmatprep.subr.bf16.mxu0 0
    %1801 = vmatpush1.bf16.xpose.msra.mxu0 0
    %1802 = vmatprep.subr.bf16.mxu0 0
    %1803 = vmatpush1.bf16.xpose.msra.mxu0 0
    %1804 = vmatprep.subr.bf16.mxu0 0
    %1805 = vmatpush1.bf16.xpose.msra.mxu0 0
    %1806 = vmatprep.subr.bf16.mxu0 0
    %1807 = vmatpush1.bf16.xpose.msra.mxu0 0
    %1808 = vmatprep.subr.bf16.mxu0 0
    %1809 = vmatpush1.bf16.xpose.msra.mxu0 %v1792
    %1810 = vmatprep.subr.bf16.mxu0 0
    %1811 = vmatpush2.bf16.xpose.msra.mxu0 0
    %1812 = vmatprep.subr.bf16.mxu0 0
    %1813 = vmatpush2.bf16.xpose.msra.mxu0 0
    %1814 = vmatprep.subr.bf16.mxu0 0
    %1815 = vmatpush2.bf16.xpose.msra.mxu0 0
    %1816 = vmatprep.subr.bf16.mxu0 0
    %1817 = vmatpush2.bf16.xpose.msra.mxu0 0
    %1818 = vmatprep.subr.bf16.mxu0 0
    %1819 = vmatpush2.bf16.xpose.msra.mxu0 0
    %1820 = vmatprep.subr.bf16.mxu0 0
    %1821 = vmatpush2.bf16.xpose.msra.mxu0 0
    %1822 = vmatprep.subr.bf16.mxu0 0
    %1823 = vmatpush2.bf16.xpose.msra.mxu0 0
    %1824 = vmatprep.subr.bf16.mxu0 0
    %1825 = vmatpush2.bf16.xpose.msra.mxu0 0
    %1826 = vmatprep.mubr.bf16.mxu0 0
    %1827 = vmatmul.mubr.bf16.gmra.mxu0 %v1789
    %v1828 = vpop.f32.mrf.mxu0
    %v1829 = vadd.f32 0.0, %v1828
    %v1830 = vpop.f32.mrf.mxu0
    %v1831 = vpop.f32.mrf.mxu0
    %v1832 = vpop.f32.mrf.mxu0
    %1833 = vdwg.mxu0
    %v1834 = vsel %vm497, %v1779, -1e+12
    %v1835 = vsel %vm497, %v1829, -1e+12
    %v1836 = vsel %vm500, %v1834, -inf
    %1837 = vmax.xlane.f32.xlu0 %v1836
    %v1838 = vpop.xlane.xlu0 %1837
    %v1839 = vsel %vm500, %v1835, -inf
    %1840 = vmax.xlane.f32.xlu0 %v1839
    %v1841 = vpop.xlane.xlu0 %1840
    %v1842 = vsub.f32 %v1834, %v1838
    %v1843 = vsub.f32 %v1835, %v1841
    %v1844 = vmul.f32 %v1842, 1.442695
    %v1845 = vpow.pop %v1844
    %v1846 = vmul.f32 %v1843, 1.442695
    %v1847 = vpow.pop %v1846
    %v1848 = vsel %vm500, %v1845, 0.0
    %1849 = vadd.xlane.f32.xlu0 %v1848
    %v1850 = vpop.xlane.xlu0 %1849
    %v1851 = vsel %vm500, %v1847, 0.0
    %1852 = vadd.xlane.f32.xlu0 %v1851
    %v1853 = vpop.xlane.xlu0 %1852
    %v1854 = vrcp.pop %v1850
    %v1855 = vrcp.pop %v1853
    %v1856 = vmul.f32 %v1845, %v1854
    %v1857 = vmul.f32 %v1847, %v1855
    %v1858 = vpack.c.bf16 %v1856, %v1856
    %v1859 = vpack.c.bf16 %v1857, %v1857
    %1860 = vrot.lane.b32.xlu0 %v401, 32
    %v1861 = vpop.permute.xlu0 %1860
    %v1863 = vsel %vm500, %v1858, 0
    %v1866 = vsel %vm528, %v1861, 0
    %1868 = vmatprep.subr.bf16.mxu0 0
    %1869 = vmatpush1.bf16.msra.mxu0 0
    %1870 = vmatprep.subr.bf16.mxu0 0
    %1871 = vmatpush1.bf16.msra.mxu0 0
    %1872 = vmatprep.subr.bf16.mxu0 0
    %1873 = vmatpush1.bf16.msra.mxu0 0
    %1874 = vmatprep.subr.bf16.mxu0 0
    %1875 = vmatpush1.bf16.msra.mxu0 0
    %1876 = vmatprep.subr.bf16.mxu0 0
    %1877 = vmatpush1.bf16.msra.mxu0 0
    %1878 = vmatprep.subr.bf16.mxu0 0
    %1879 = vmatpush1.bf16.msra.mxu0 0
    %1880 = vmatprep.subr.bf16.mxu0 0
    %1881 = vmatpush1.bf16.msra.mxu0 0
    %1882 = vmatprep.subr.bf16.mxu0 0
    %1883 = vmatpush1.bf16.msra.mxu0 %v1866
    %1884 = vmatprep.subr.bf16.mxu0 0
    %1885 = vmatpush2.bf16.msra.mxu0 0
    %1886 = vmatprep.subr.bf16.mxu0 0
    %1887 = vmatpush2.bf16.msra.mxu0 0
    %1888 = vmatprep.subr.bf16.mxu0 0
    %1889 = vmatpush2.bf16.msra.mxu0 0
    %1890 = vmatprep.subr.bf16.mxu0 0
    %1891 = vmatpush2.bf16.msra.mxu0 0
    %1892 = vmatprep.subr.bf16.mxu0 0
    %1893 = vmatpush2.bf16.msra.mxu0 0
    %1894 = vmatprep.subr.bf16.mxu0 0
    %1895 = vmatpush2.bf16.msra.mxu0 0
    %1896 = vmatprep.subr.bf16.mxu0 0
    %1897 = vmatpush2.bf16.msra.mxu0 0
    %1898 = vmatprep.subr.bf16.mxu0 0
    %1899 = vmatpush2.bf16.msra.mxu0 0
    %1900 = vmatprep.mubr.bf16.mxu0 0
    %1901 = vmatmul.mubr.bf16.gmra.mxu0 %v1863
    %v1902 = vpop.f32.mrf.mxu0
    %v1903 = vadd.f32 0.0, %v1902
    %v1904 = vpop.f32.mrf.mxu0
    %v1905 = vpop.f32.mrf.mxu0
    %v1906 = vpop.f32.mrf.mxu0
    %1907 = vdwg.mxu0
    %1908 = vrot.lane.b32.xlu0 %v402, 32
    %v1909 = vpop.permute.xlu0 %1908
    %v1911 = vsel %vm500, %v1859, 0
    %v1914 = vsel %vm528, %v1909, 0
    %1916 = vmatprep.subr.bf16.mxu0 0
    %1917 = vmatpush1.bf16.msra.mxu0 0
    %1918 = vmatprep.subr.bf16.mxu0 0
    %1919 = vmatpush1.bf16.msra.mxu0 0
    %1920 = vmatprep.subr.bf16.mxu0 0
    %1921 = vmatpush1.bf16.msra.mxu0 0
    %1922 = vmatprep.subr.bf16.mxu0 0
    %1923 = vmatpush1.bf16.msra.mxu0 0
    %1924 = vmatprep.subr.bf16.mxu0 0
    %1925 = vmatpush1.bf16.msra.mxu0 0
    %1926 = vmatprep.subr.bf16.mxu0 0
    %1927 = vmatpush1.bf16.msra.mxu0 0
    %1928 = vmatprep.subr.bf16.mxu0 0
    %1929 = vmatpush1.bf16.msra.mxu0 0
    %1930 = vmatprep.subr.bf16.mxu0 0
    %1931 = vmatpush1.bf16.msra.mxu0 %v1914
    %1932 = vmatprep.subr.bf16.mxu0 0
    %1933 = vmatpush2.bf16.msra.mxu0 0
    %1934 = vmatprep.subr.bf16.mxu0 0
    %1935 = vmatpush2.bf16.msra.mxu0 0
    %1936 = vmatprep.subr.bf16.mxu0 0
    %1937 = vmatpush2.bf16.msra.mxu0 0
    %1938 = vmatprep.subr.bf16.mxu0 0
    %1939 = vmatpush2.bf16.msra.mxu0 0
    %1940 = vmatprep.subr.bf16.mxu0 0
    %1941 = vmatpush2.bf16.msra.mxu0 0
    %1942 = vmatprep.subr.bf16.mxu0 0
    %1943 = vmatpush2.bf16.msra.mxu0 0
    %1944 = vmatprep.subr.bf16.mxu0 0
    %1945 = vmatpush2.bf16.msra.mxu0 0
    %1946 = vmatprep.subr.bf16.mxu0 0
    %1947 = vmatpush2.bf16.msra.mxu0 0
    %1948 = vmatprep.mubr.bf16.mxu0 0
    %1949 = vmatmul.mubr.bf16.gmra.mxu0 %v1911
    %v1950 = vpop.f32.mrf.mxu0
    %v1951 = vadd.f32 0.0, %v1950
    %v1952 = vpop.f32.mrf.mxu0
    %v1953 = vpop.f32.mrf.mxu0
    %v1954 = vpop.f32.mrf.mxu0
    %1955 = vdwg.mxu0
    %1956 = vrot.lane.b32.xlu0 %v397, 16
    %v1957 = vpop.permute.xlu0 %1956
    %1958 = vrot.lane.b32.xlu0 %v399, 16
    %v1959 = vpop.permute.xlu0 %1958
    %v1961 = vsel %vm403, %v1957, 0
    %v1964 = vsel %vm403, %v1959, 0
    %1966 = vmatprep.subr.bf16.mxu0 0
    %1967 = vmatpush1.bf16.xpose.msra.mxu0 0
    %1968 = vmatprep.subr.bf16.mxu0 0
    %1969 = vmatpush1.bf16.xpose.msra.mxu0 0
    %1970 = vmatprep.subr.bf16.mxu0 0
    %1971 = vmatpush1.bf16.xpose.msra.mxu0 0
    %1972 = vmatprep.subr.bf16.mxu0 0
    %1973 = vmatpush1.bf16.xpose.msra.mxu0 0
    %1974 = vmatprep.subr.bf16.mxu0 0
    %1975 = vmatpush1.bf16.xpose.msra.mxu0 0
    %1976 = vmatprep.subr.bf16.mxu0 0
    %1977 = vmatpush1.bf16.xpose.msra.mxu0 0
    %1978 = vmatprep.subr.bf16.mxu0 0
    %1979 = vmatpush1.bf16.xpose.msra.mxu0 0
    %1980 = vmatprep.subr.bf16.mxu0 0
    %1981 = vmatpush1.bf16.xpose.msra.mxu0 %v1964
    %1982 = vmatprep.subr.bf16.mxu0 0
    %1983 = vmatpush2.bf16.xpose.msra.mxu0 0
    %1984 = vmatprep.subr.bf16.mxu0 0
    %1985 = vmatpush2.bf16.xpose.msra.mxu0 0
    %1986 = vmatprep.subr.bf16.mxu0 0
    %1987 = vmatpush2.bf16.xpose.msra.mxu0 0
    %1988 = vmatprep.subr.bf16.mxu0 0
    %1989 = vmatpush2.bf16.xpose.msra.mxu0 0
    %1990 = vmatprep.subr.bf16.mxu0 0
    %1991 = vmatpush2.bf16.xpose.msra.mxu0 0
    %1992 = vmatprep.subr.bf16.mxu0 0
    %1993 = vmatpush2.bf16.xpose.msra.mxu0 0
    %1994 = vmatprep.subr.bf16.mxu0 0
    %1995 = vmatpush2.bf16.xpose.msra.mxu0 0
    %1996 = vmatprep.subr.bf16.mxu0 0
    %1997 = vmatpush2.bf16.xpose.msra.mxu0 0
    %1998 = vmatprep.mubr.bf16.mxu0 0
    %1999 = vmatmul.mubr.bf16.gmra.mxu0 %v1961
    %v2000 = vpop.f32.mrf.mxu0
    %v2001 = vadd.f32 0.0, %v2000
    %v2002 = vpop.f32.mrf.mxu0
    %v2003 = vpop.f32.mrf.mxu0
    %v2004 = vpop.f32.mrf.mxu0
    %2005 = vdwg.mxu0
    %2006 = vrot.lane.b32.xlu0 %v398, 16
    %v2007 = vpop.permute.xlu0 %2006
    %2008 = vrot.lane.b32.xlu0 %v400, 16
    %v2009 = vpop.permute.xlu0 %2008
    %v2011 = vsel %vm403, %v2007, 0
    %v2014 = vsel %vm403, %v2009, 0
    %2016 = vmatprep.subr.bf16.mxu0 0
    %2017 = vmatpush1.bf16.xpose.msra.mxu0 0
    %2018 = vmatprep.subr.bf16.mxu0 0
    %2019 = vmatpush1.bf16.xpose.msra.mxu0 0
    %2020 = vmatprep.subr.bf16.mxu0 0
    %2021 = vmatpush1.bf16.xpose.msra.mxu0 0
    %2022 = vmatprep.subr.bf16.mxu0 0
    %2023 = vmatpush1.bf16.xpose.msra.mxu0 0
    %2024 = vmatprep.subr.bf16.mxu0 0
    %2025 = vmatpush1.bf16.xpose.msra.mxu0 0
    %2026 = vmatprep.subr.bf16.mxu0 0
    %2027 = vmatpush1.bf16.xpose.msra.mxu0 0
    %2028 = vmatprep.subr.bf16.mxu0 0
    %2029 = vmatpush1.bf16.xpose.msra.mxu0 0
    %2030 = vmatprep.subr.bf16.mxu0 0
    %2031 = vmatpush1.bf16.xpose.msra.mxu0 %v2014
    %2032 = vmatprep.subr.bf16.mxu0 0
    %2033 = vmatpush2.bf16.xpose.msra.mxu0 0
    %2034 = vmatprep.subr.bf16.mxu0 0
    %2035 = vmatpush2.bf16.xpose.msra.mxu0 0
    %2036 = vmatprep.subr.bf16.mxu0 0
    %2037 = vmatpush2.bf16.xpose.msra.mxu0 0
    %2038 = vmatprep.subr.bf16.mxu0 0
    %2039 = vmatpush2.bf16.xpose.msra.mxu0 0
    %2040 = vmatprep.subr.bf16.mxu0 0
    %2041 = vmatpush2.bf16.xpose.msra.mxu0 0
    %2042 = vmatprep.subr.bf16.mxu0 0
    %2043 = vmatpush2.bf16.xpose.msra.mxu0 0
    %2044 = vmatprep.subr.bf16.mxu0 0
    %2045 = vmatpush2.bf16.xpose.msra.mxu0 0
    %2046 = vmatprep.subr.bf16.mxu0 0
    %2047 = vmatpush2.bf16.xpose.msra.mxu0 0
    %2048 = vmatprep.mubr.bf16.mxu0 0
    %2049 = vmatmul.mubr.bf16.gmra.mxu0 %v2011
    %v2050 = vpop.f32.mrf.mxu0
    %v2051 = vadd.f32 0.0, %v2050
    %v2052 = vpop.f32.mrf.mxu0
    %v2053 = vpop.f32.mrf.mxu0
    %v2054 = vpop.f32.mrf.mxu0
    %2055 = vdwg.mxu0
    %v2056 = vsel %vm497, %v2001, -1e+12
    %v2057 = vsel %vm497, %v2051, -1e+12
    %v2058 = vsel %vm500, %v2056, -inf
    %2059 = vmax.xlane.f32.xlu0 %v2058
    %v2060 = vpop.xlane.xlu0 %2059
    %v2061 = vsel %vm500, %v2057, -inf
    %2062 = vmax.xlane.f32.xlu0 %v2061
    %v2063 = vpop.xlane.xlu0 %2062
    %v2064 = vsub.f32 %v2056, %v2060
    %v2065 = vsub.f32 %v2057, %v2063
    %v2066 = vmul.f32 %v2064, 1.442695
    %v2067 = vpow.pop %v2066
    %v2068 = vmul.f32 %v2065, 1.442695
    %v2069 = vpow.pop %v2068
    %v2070 = vsel %vm500, %v2067, 0.0
    %2071 = vadd.xlane.f32.xlu0 %v2070
    %v2072 = vpop.xlane.xlu0 %2071
    %v2073 = vsel %vm500, %v2069, 0.0
    %2074 = vadd.xlane.f32.xlu0 %v2073
    %v2075 = vpop.xlane.xlu0 %2074
    %v2076 = vrcp.pop %v2072
    %v2077 = vrcp.pop %v2075
    %v2078 = vmul.f32 %v2067, %v2076
    %v2079 = vmul.f32 %v2069, %v2077
    %v2080 = vpack.c.bf16 %v2078, %v2078
    %v2081 = vpack.c.bf16 %v2079, %v2079
    %2082 = vrot.lane.b32.xlu0 %v401, 16
    %v2083 = vpop.permute.xlu0 %2082
    %v2085 = vsel %vm500, %v2080, 0
    %v2088 = vsel %vm528, %v2083, 0
    %2090 = vmatprep.subr.bf16.mxu0 0
    %2091 = vmatpush1.bf16.msra.mxu0 0
    %2092 = vmatprep.subr.bf16.mxu0 0
    %2093 = vmatpush1.bf16.msra.mxu0 0
    %2094 = vmatprep.subr.bf16.mxu0 0
    %2095 = vmatpush1.bf16.msra.mxu0 0
    %2096 = vmatprep.subr.bf16.mxu0 0
    %2097 = vmatpush1.bf16.msra.mxu0 0
    %2098 = vmatprep.subr.bf16.mxu0 0
    %2099 = vmatpush1.bf16.msra.mxu0 0
    %2100 = vmatprep.subr.bf16.mxu0 0
    %2101 = vmatpush1.bf16.msra.mxu0 0
    %2102 = vmatprep.subr.bf16.mxu0 0
    %2103 = vmatpush1.bf16.msra.mxu0 0
    %2104 = vmatprep.subr.bf16.mxu0 0
    %2105 = vmatpush1.bf16.msra.mxu0 %v2088
    %2106 = vmatprep.subr.bf16.mxu0 0
    %2107 = vmatpush2.bf16.msra.mxu0 0
    %2108 = vmatprep.subr.bf16.mxu0 0
    %2109 = vmatpush2.bf16.msra.mxu0 0
    %2110 = vmatprep.subr.bf16.mxu0 0
    %2111 = vmatpush2.bf16.msra.mxu0 0
    %2112 = vmatprep.subr.bf16.mxu0 0
    %2113 = vmatpush2.bf16.msra.mxu0 0
    %2114 = vmatprep.subr.bf16.mxu0 0
    %2115 = vmatpush2.bf16.msra.mxu0 0
    %2116 = vmatprep.subr.bf16.mxu0 0
    %2117 = vmatpush2.bf16.msra.mxu0 0
    %2118 = vmatprep.subr.bf16.mxu0 0
    %2119 = vmatpush2.bf16.msra.mxu0 0
    %2120 = vmatprep.subr.bf16.mxu0 0
    %2121 = vmatpush2.bf16.msra.mxu0 0
    %2122 = vmatprep.mubr.bf16.mxu0 0
    %2123 = vmatmul.mubr.bf16.gmra.mxu0 %v2085
    %v2124 = vpop.f32.mrf.mxu0
    %v2125 = vadd.f32 0.0, %v2124
    %v2126 = vpop.f32.mrf.mxu0
    %v2127 = vpop.f32.mrf.mxu0
    %v2128 = vpop.f32.mrf.mxu0
    %2129 = vdwg.mxu0
    %2130 = vrot.lane.b32.xlu0 %v402, 16
    %v2131 = vpop.permute.xlu0 %2130
    %v2133 = vsel %vm500, %v2081, 0
    %v2136 = vsel %vm528, %v2131, 0
    %2138 = vmatprep.subr.bf16.mxu0 0
    %2139 = vmatpush1.bf16.msra.mxu0 0
    %2140 = vmatprep.subr.bf16.mxu0 0
    %2141 = vmatpush1.bf16.msra.mxu0 0
    %2142 = vmatprep.subr.bf16.mxu0 0
    %2143 = vmatpush1.bf16.msra.mxu0 0
    %2144 = vmatprep.subr.bf16.mxu0 0
    %2145 = vmatpush1.bf16.msra.mxu0 0
    %2146 = vmatprep.subr.bf16.mxu0 0
    %2147 = vmatpush1.bf16.msra.mxu0 0
    %2148 = vmatprep.subr.bf16.mxu0 0
    %2149 = vmatpush1.bf16.msra.mxu0 0
    %2150 = vmatprep.subr.bf16.mxu0 0
    %2151 = vmatpush1.bf16.msra.mxu0 0
    %2152 = vmatprep.subr.bf16.mxu0 0
    %2153 = vmatpush1.bf16.msra.mxu0 %v2136
    %2154 = vmatprep.subr.bf16.mxu0 0
    %2155 = vmatpush2.bf16.msra.mxu0 0
    %2156 = vmatprep.subr.bf16.mxu0 0
    %2157 = vmatpush2.bf16.msra.mxu0 0
    %2158 = vmatprep.subr.bf16.mxu0 0
    %2159 = vmatpush2.bf16.msra.mxu0 0
    %2160 = vmatprep.subr.bf16.mxu0 0
    %2161 = vmatpush2.bf16.msra.mxu0 0
    %2162 = vmatprep.subr.bf16.mxu0 0
    %2163 = vmatpush2.bf16.msra.mxu0 0
    %2164 = vmatprep.subr.bf16.mxu0 0
    %2165 = vmatpush2.bf16.msra.mxu0 0
    %2166 = vmatprep.subr.bf16.mxu0 0
    %2167 = vmatpush2.bf16.msra.mxu0 0
    %2168 = vmatprep.subr.bf16.mxu0 0
    %2169 = vmatpush2.bf16.msra.mxu0 0
    %2170 = vmatprep.mubr.bf16.mxu0 0
    %2171 = vmatmul.mubr.bf16.gmra.mxu0 %v2133
    %v2172 = vpop.f32.mrf.mxu0
    %v2173 = vadd.f32 0.0, %v2172
    %v2174 = vpop.f32.mrf.mxu0
    %v2175 = vpop.f32.mrf.mxu0
    %v2176 = vpop.f32.mrf.mxu0
    %2177 = vdwg.mxu0
    %2180 = vrot.lane.b32.xlu0 %v792, 16
    %v2181 = vpop.permute.xlu0 %2180
    %2182 = vrot.lane.b32.xlu0 %v841, 16
    %v2183 = vpop.permute.xlu0 %2182
    %2188 = vrot.lane.b32.xlu0 %v1015, 32
    %v2189 = vpop.permute.xlu0 %2188
    %2190 = vrot.lane.b32.xlu0 %v1063, 32
    %v2191 = vpop.permute.xlu0 %2190
    %2196 = vrot.lane.b32.xlu0 %v1237, 48
    %v2197 = vpop.permute.xlu0 %2196
    %2198 = vrot.lane.b32.xlu0 %v1285, 48
    %v2199 = vpop.permute.xlu0 %2198
    %2204 = vrot.lane.b32.xlu0 %v1459, 64
    %v2205 = vpop.permute.xlu0 %2204
    %2206 = vrot.lane.b32.xlu0 %v1507, 64
    %v2207 = vpop.permute.xlu0 %2206
    %2212 = vrot.lane.b32.xlu0 %v1681, 80
    %v2213 = vpop.permute.xlu0 %2212
    %2214 = vrot.lane.b32.xlu0 %v1729, 80
    %v2215 = vpop.permute.xlu0 %2214
    %2220 = vrot.lane.b32.xlu0 %v1903, 96
    %v2221 = vpop.permute.xlu0 %2220
    %2222 = vrot.lane.b32.xlu0 %v1951, 96
    %v2223 = vpop.permute.xlu0 %2222
    %2228 = vrot.lane.b32.xlu0 %v2125, 112
    %v2229 = vpop.permute.xlu0 %2228
    %2230 = vrot.lane.b32.xlu0 %v2173, 112
    %v2231 = vpop.permute.xlu0 %2230
    %v2234 = vsel %vm403, %v567, %v2181
    %v2235 = vsel %vm403, %v613, %v2183
    %vm2236 = vcmask 261120
    %v2237 = vsel %vm2236, %v2234, %v2189
    %v2238 = vsel %vm2236, %v2235, %v2191
    %vm2239 = vcmask 392192
    %v2240 = vsel %vm2239, %v2237, %v2197
    %v2241 = vsel %vm2239, %v2238, %v2199
    %vm2242 = vcmask 523264
    %v2243 = vsel %vm2242, %v2240, %v2205
    %v2244 = vsel %vm2242, %v2241, %v2207
    %vm2245 = vcmask 654336
    %v2246 = vsel %vm2245, %v2243, %v2213
    %v2247 = vsel %vm2245, %v2244, %v2215
    %vm2248 = vcmask 785408
    %v2249 = vsel %vm2248, %v2246, %v2221
    %v2250 = vsel %vm2248, %v2247, %v2223
    %vm2251 = vcmask 916480
    %v2252 = vsel %vm2251, %v2249, %v2229
    %v2253 = vsel %vm2251, %v2250, %v2231
    %v2254 = vpack.c.bf16 %v2253, %v2252
    %v2255 = vld [vmem:[#allocation7] sm:$0xf]
    %v2256 = vld [vmem:[#allocation7 + $0x4] sm:$0xf]
    %v2257 = vld [vmem:[#allocation7 + $0x8] sm:$0xf]
    %v2258 = vld [vmem:[#allocation7 + $0xc] sm:$0xf]
    %v2259 = vld [vmem:[#allocation7 + $0x10] sm:$0xf]
    %v2260 = vld [vmem:[#allocation7 + $0x14] sm:$0xf]
    %v2261 = vld [vmem:[#allocation7 + $0x18] sm:$0xf]
    %v2262 = vld [vmem:[#allocation7 + $0x1c] sm:$0xf]
    %v2263 = vld [vmem:[#allocation7 + $0x20] sm:$0xf]
    %v2264 = vld [vmem:[#allocation7 + $0x24] sm:$0xf]
    %v2265 = vld [vmem:[#allocation7 + $0x28] sm:$0xf]
    %v2266 = vld [vmem:[#allocation7 + $0x2c] sm:$0xf]
    %v2267 = vld [vmem:[#allocation7 + $0x30] sm:$0xf]
    %v2268 = vld [vmem:[#allocation7 + $0x34] sm:$0xf]
    %v2269 = vld [vmem:[#allocation7 + $0x38] sm:$0xf]
    %v2270 = vld [vmem:[#allocation7 + $0x3c] sm:$0xf]
    %v2271 = vld [vmem:[#allocation8] sm:$0x1]
    %v2273 = vlaneseq
    %v2274 = vshrl.u32 %v2273, 7
    %v2275 = vsub.s32 0, %v2274
    %v2276 = vrot.slane %v2271, %v2275
    %v2294 = vunpack.c.l.b16 %v2255
    %v2295 = vunpack.c.l.b16 %v2256
    %v2296 = vunpack.c.l.b16 %v2257
    %v2297 = vunpack.c.l.b16 %v2258
    %v2298 = vunpack.c.l.b16 %v2259
    %v2299 = vunpack.c.l.b16 %v2260
    %v2300 = vunpack.c.l.b16 %v2261
    %v2301 = vunpack.c.l.b16 %v2262
    %v2302 = vunpack.c.l.b16 %v2263
    %v2303 = vunpack.c.l.b16 %v2264
    %v2304 = vunpack.c.l.b16 %v2265
    %v2305 = vunpack.c.l.b16 %v2266
    %v2306 = vunpack.c.l.b16 %v2267
    %v2307 = vunpack.c.l.b16 %v2268
    %v2308 = vunpack.c.l.b16 %v2269
    %v2309 = vunpack.c.l.b16 %v2270
    %v2310 = vpack.c.b16 %v2295, %v2294
    %v2311 = vpack.c.b16 %v2297, %v2296
    %v2312 = vpack.c.b16 %v2299, %v2298
    %v2313 = vpack.c.b16 %v2301, %v2300
    %v2314 = vpack.c.b16 %v2303, %v2302
    %v2315 = vpack.c.b16 %v2305, %v2304
    %v2316 = vpack.c.b16 %v2307, %v2306
    %v2317 = vpack.c.b16 %v2309, %v2308
    %2326 = vmatprep.subr.bf16.mxu0 0
    %2327 = vmatpush1.bf16.msra.mxu0 %v2317
    %2328 = vmatprep.subr.bf16.mxu0 0
    %2329 = vmatpush1.bf16.msra.mxu0 %v2316
    %2330 = vmatprep.subr.bf16.mxu0 0
    %2331 = vmatpush1.bf16.msra.mxu0 %v2315
    %2332 = vmatprep.subr.bf16.mxu0 0
    %2333 = vmatpush1.bf16.msra.mxu0 %v2314
    %2334 = vmatprep.subr.bf16.mxu0 0
    %2335 = vmatpush1.bf16.msra.mxu0 %v2313
    %2336 = vmatprep.subr.bf16.mxu0 0
    %2337 = vmatpush1.bf16.msra.mxu0 %v2312
    %2338 = vmatprep.subr.bf16.mxu0 0
    %2339 = vmatpush1.bf16.msra.mxu0 %v2311
    %2340 = vmatprep.subr.bf16.mxu0 0
    %2341 = vmatpush1.bf16.msra.mxu0 %v2310
    %2342 = vmatprep.subr.bf16.mxu0 0
    %2343 = vmatpush2.bf16.msra.mxu0 0
    %2344 = vmatprep.subr.bf16.mxu0 0
    %2345 = vmatpush2.bf16.msra.mxu0 0
    %2346 = vmatprep.subr.bf16.mxu0 0
    %2347 = vmatpush2.bf16.msra.mxu0 0
    %2348 = vmatprep.subr.bf16.mxu0 0
    %2349 = vmatpush2.bf16.msra.mxu0 0
    %2350 = vmatprep.subr.bf16.mxu0 0
    %2351 = vmatpush2.bf16.msra.mxu0 0
    %2352 = vmatprep.subr.bf16.mxu0 0
    %2353 = vmatpush2.bf16.msra.mxu0 0
    %2354 = vmatprep.subr.bf16.mxu0 0
    %2355 = vmatpush2.bf16.msra.mxu0 0
    %2356 = vmatprep.subr.bf16.mxu0 0
    %2357 = vmatpush2.bf16.msra.mxu0 0
    %2358 = vmatprep.mubr.bf16.mxu0 0
    %2359 = vmatmul.mubr.bf16.gmra.mxu0 %v2254
    %v2360 = vpop.f32.mrf.mxu0
    %v2361 = vadd.f32 %v2276, %v2360
    %v2362 = vpop.f32.mrf.mxu0
    %v2363 = vpop.f32.mrf.mxu0
    %v2364 = vadd.f32 %v2276, %v2363
    %v2365 = vpop.f32.mrf.mxu0
    %2366 = vdwg.mxu0
    %v2367 = vadd.f32 %v2361, %v126
    %v2368 = vadd.f32 %v2364, %v127
    %v2369 = vld [vmem:[%s5] sm:$0x1]
    %v2370 = vld [vmem:[%s6] sm:$0x1]
    %2371 = vadd.xlane.f32.xlu0 %v2367
    %v2372 = vpop.xlane.xlu0 %2371
    %2373 = vadd.xlane.f32.xlu0 %v2368
    %v2374 = vpop.xlane.xlu0 %2373
    %v2375 = vrcp.pop 128.0
    %v2376 = vmul.f32 %v2372, %v2375
    %v2377 = vmul.f32 %v2374, %v2375
    %v2378 = vsub.f32 %v2367, %v2376
    %v2379 = vsub.f32 %v2368, %v2377
    %v2380 = vmul.f32 %v2378, %v2378
    %v2381 = vmul.f32 %v2379, %v2379
    %2382 = vadd.xlane.f32.xlu0 %v2380
    %v2383 = vpop.xlane.xlu0 %2382
    %2384 = vadd.xlane.f32.xlu0 %v2381
    %v2385 = vpop.xlane.xlu0 %2384
    %v2386 = vmul.f32 %v2383, %v2375
    %v2387 = vmul.f32 %v2385, %v2375
    %v2388 = vadd.f32 %v2386, 1e-05
    %v2389 = vadd.f32 %v2387, 1e-05
    %v2390 = vrsqrt.pop %v2388
    %v2391 = vrsqrt.pop %v2389
    %v2392 = vmul.f32 %v2378, %v2390
    %v2393 = vmul.f32 %v2379, %v2391
    %v2395 = vlaneseq
    %v2396 = vshrl.u32 %v2395, 7
    %v2397 = vsub.s32 0, %v2396
    %v2398 = vrot.slane %v2369, %v2397
    %v2400 = vmul.f32 %v2392, %v2398
    %v2401 = vmul.f32 %v2393, %v2398
    %v2403 = vlaneseq
    %v2404 = vshrl.u32 %v2403, 7
    %v2405 = vsub.s32 0, %v2404
    %v2406 = vrot.slane %v2370, %v2405
    %v2408 = vadd.f32 %v2400, %v2406
    %v2409 = vadd.f32 %v2401, %v2406
    %v2410 = vpack.c.bf16 %v2409, %v2408
    %v2411 = vld [vmem:[#allocation10] sm:$0xff]
    %v2412 = vld [vmem:[#allocation10 + $0x8] sm:$0xff]
    %v2413 = vld [vmem:[#allocation10 + $0x10] sm:$0xff]
    %v2414 = vld [vmem:[#allocation10 + $0x18] sm:$0xff]
    %v2415 = vld [vmem:[#allocation10 + $0x20] sm:$0xff]
    %v2416 = vld [vmem:[#allocation10 + $0x28] sm:$0xff]
    %v2417 = vld [vmem:[#allocation10 + $0x30] sm:$0xff]
    %v2418 = vld [vmem:[#allocation10 + $0x38] sm:$0xff]
    %v2419 = vld [vmem:[#allocation10 + $0x40] sm:$0xff]
    %v2420 = vld [vmem:[#allocation10 + $0x48] sm:$0xff]
    %v2421 = vld [vmem:[#allocation10 + $0x50] sm:$0xff]
    %v2422 = vld [vmem:[#allocation10 + $0x58] sm:$0xff]
    %v2423 = vld [vmem:[#allocation10 + $0x60] sm:$0xff]
    %v2424 = vld [vmem:[#allocation10 + $0x68] sm:$0xff]
    %v2425 = vld [vmem:[#allocation10 + $0x70] sm:$0xff]
    %v2426 = vld [vmem:[#allocation10 + $0x78] sm:$0xff]
    %v2427 = vld [vmem:[#allocation10 + $0x80] sm:$0xff]
    %v2428 = vld [vmem:[#allocation10 + $0x88] sm:$0xff]
    %v2429 = vld [vmem:[#allocation10 + $0x90] sm:$0xff]
    %v2430 = vld [vmem:[#allocation10 + $0x98] sm:$0xff]
    %v2431 = vld [vmem:[#allocation10 + $0xa0] sm:$0xff]
    %v2432 = vld [vmem:[#allocation10 + $0xa8] sm:$0xff]
    %v2433 = vld [vmem:[#allocation10 + $0xb0] sm:$0xff]
    %v2434 = vld [vmem:[#allocation10 + $0xb8] sm:$0xff]
    %v2435 = vld [vmem:[#allocation10 + $0xc0] sm:$0xff]
    %v2436 = vld [vmem:[#allocation10 + $0xc8] sm:$0xff]
    %v2437 = vld [vmem:[#allocation10 + $0xd0] sm:$0xff]
    %v2438 = vld [vmem:[#allocation10 + $0xd8] sm:$0xff]
    %v2439 = vld [vmem:[#allocation10 + $0xe0] sm:$0xff]
    %v2440 = vld [vmem:[#allocation10 + $0xe8] sm:$0xff]
    %v2441 = vld [vmem:[#allocation10 + $0xf0] sm:$0xff]
    %v2442 = vld [vmem:[#allocation10 + $0xf8] sm:$0xff]
    %v2443 = vld [vmem:[%s8] sm:$0xf]
    %v2445 = vlaneseq
    %v2446 = vshrl.u32 %v2445, 7
    %v2447 = vsub.s32 0, %v2446
    %v2448 = vrot.slane %v2443, %v2447
    %v2449 = vlaneseq
    %v2450 = vshrl.u32 %v2449, 7
    %v2451 = vsub.s32 1, %v2450
    %v2452 = vrot.slane %v2443, %v2451
    %v2453 = vlaneseq
    %v2454 = vshrl.u32 %v2453, 7
    %v2455 = vsub.s32 2, %v2454
    %v2456 = vrot.slane %v2443, %v2455
    %v2457 = vlaneseq
    %v2458 = vshrl.u32 %v2457, 7
    %v2459 = vsub.s32 3, %v2458
    %v2460 = vrot.slane %v2443, %v2459
    %v2497 = vunpack.c.l.b16 %v2411
    %v2498 = vunpack.c.h.b16 %v2411
    %v2499 = vunpack.c.l.b16 %v2412
    %v2500 = vunpack.c.h.b16 %v2412
    %v2501 = vunpack.c.l.b16 %v2413
    %v2502 = vunpack.c.h.b16 %v2413
    %v2503 = vunpack.c.l.b16 %v2414
    %v2504 = vunpack.c.h.b16 %v2414
    %v2505 = vunpack.c.l.b16 %v2415
    %v2506 = vunpack.c.h.b16 %v2415
    %v2507 = vunpack.c.l.b16 %v2416
    %v2508 = vunpack.c.h.b16 %v2416
    %v2509 = vunpack.c.l.b16 %v2417
    %v2510 = vunpack.c.h.b16 %v2417
    %v2511 = vunpack.c.l.b16 %v2418
    %v2512 = vunpack.c.h.b16 %v2418
    %v2513 = vunpack.c.l.b16 %v2419
    %v2514 = vunpack.c.h.b16 %v2419
    %v2515 = vunpack.c.l.b16 %v2420
    %v2516 = vunpack.c.h.b16 %v2420
    %v2517 = vunpack.c.l.b16 %v2421
    %v2518 = vunpack.c.h.b16 %v2421
    %v2519 = vunpack.c.l.b16 %v2422
    %v2520 = vunpack.c.h.b16 %v2422
    %v2521 = vunpack.c.l.b16 %v2423
    %v2522 = vunpack.c.h.b16 %v2423
    %v2523 = vunpack.c.l.b16 %v2424
    %v2524 = vunpack.c.h.b16 %v2424
    %v2525 = vunpack.c.l.b16 %v2425
    %v2526 = vunpack.c.h.b16 %v2425
    %v2527 = vunpack.c.l.b16 %v2426
    %v2528 = vunpack.c.h.b16 %v2426
    %v2529 = vunpack.c.l.b16 %v2427
    %v2530 = vunpack.c.h.b16 %v2427
    %v2531 = vunpack.c.l.b16 %v2428
    %v2532 = vunpack.c.h.b16 %v2428
    %v2533 = vunpack.c.l.b16 %v2429
    %v2534 = vunpack.c.h.b16 %v2429
    %v2535 = vunpack.c.l.b16 %v2430
    %v2536 = vunpack.c.h.b16 %v2430
    %v2537 = vunpack.c.l.b16 %v2431
    %v2538 = vunpack.c.h.b16 %v2431
    %v2539 = vunpack.c.l.b16 %v2432
    %v2540 = vunpack.c.h.b16 %v2432
    %v2541 = vunpack.c.l.b16 %v2433
    %v2542 = vunpack.c.h.b16 %v2433
    %v2543 = vunpack.c.l.b16 %v2434
    %v2544 = vunpack.c.h.b16 %v2434
    %v2545 = vunpack.c.l.b16 %v2435
    %v2546 = vunpack.c.h.b16 %v2435
    %v2547 = vunpack.c.l.b16 %v2436
    %v2548 = vunpack.c.h.b16 %v2436
    %v2549 = vunpack.c.l.b16 %v2437
    %v2550 = vunpack.c.h.b16 %v2437
    %v2551 = vunpack.c.l.b16 %v2438
    %v2552 = vunpack.c.h.b16 %v2438
    %v2553 = vunpack.c.l.b16 %v2439
    %v2554 = vunpack.c.h.b16 %v2439
    %v2555 = vunpack.c.l.b16 %v2440
    %v2556 = vunpack.c.h.b16 %v2440
    %v2557 = vunpack.c.l.b16 %v2441
    %v2558 = vunpack.c.h.b16 %v2441
    %v2559 = vunpack.c.l.b16 %v2442
    %v2560 = vunpack.c.h.b16 %v2442
    %v2561 = vpack.c.b16 %v2501, %v2497
    %v2562 = vpack.c.b16 %v2502, %v2498
    %v2563 = vpack.c.b16 %v2503, %v2499
    %v2564 = vpack.c.b16 %v2504, %v2500
    %v2565 = vpack.c.b16 %v2509, %v2505
    %v2566 = vpack.c.b16 %v2510, %v2506
    %v2567 = vpack.c.b16 %v2511, %v2507
    %v2568 = vpack.c.b16 %v2512, %v2508
    %v2569 = vpack.c.b16 %v2517, %v2513
    %v2570 = vpack.c.b16 %v2518, %v2514
    %v2571 = vpack.c.b16 %v2519, %v2515
    %v2572 = vpack.c.b16 %v2520, %v2516
    %v2573 = vpack.c.b16 %v2525, %v2521
    %v2574 = vpack.c.b16 %v2526, %v2522
    %v2575 = vpack.c.b16 %v2527, %v2523
    %v2576 = vpack.c.b16 %v2528, %v2524
    %v2577 = vpack.c.b16 %v2533, %v2529
    %v2578 = vpack.c.b16 %v2534, %v2530
    %v2579 = vpack.c.b16 %v2535, %v2531
    %v2580 = vpack.c.b16 %v2536, %v2532
    %v2581 = vpack.c.b16 %v2541, %v2537
    %v2582 = vpack.c.b16 %v2542, %v2538
    %v2583 = vpack.c.b16 %v2543, %v2539
    %v2584 = vpack.c.b16 %v2544, %v2540
    %v2585 = vpack.c.b16 %v2549, %v2545
    %v2586 = vpack.c.b16 %v2550, %v2546
    %v2587 = vpack.c.b16 %v2551, %v2547
    %v2588 = vpack.c.b16 %v2552, %v2548
    %v2589 = vpack.c.b16 %v2557, %v2553
    %v2590 = vpack.c.b16 %v2558, %v2554
    %v2591 = vpack.c.b16 %v2559, %v2555
    %v2592 = vpack.c.b16 %v2560, %v2556
    %2625 = vmatprep.subr.bf16.mxu0 %v2590
    %2626 = vmatpush1.bf16.msra.mxu0 %v2589
    %2627 = vmatprep.subr.bf16.mxu0 %v2586
    %2628 = vmatpush1.bf16.msra.mxu0 %v2585
    %2629 = vmatprep.subr.bf16.mxu0 %v2582
    %2630 = vmatpush1.bf16.msra.mxu0 %v2581
    %2631 = vmatprep.subr.bf16.mxu0 %v2578
    %2632 = vmatpush1.bf16.msra.mxu0 %v2577
    %2633 = vmatprep.subr.bf16.mxu0 %v2574
    %2634 = vmatpush1.bf16.msra.mxu0 %v2573
    %2635 = vmatprep.subr.bf16.mxu0 %v2570
    %2636 = vmatpush1.bf16.msra.mxu0 %v2569
    %2637 = vmatprep.subr.bf16.mxu0 %v2566
    %2638 = vmatpush1.bf16.msra.mxu0 %v2565
    %2639 = vmatprep.subr.bf16.mxu0 %v2562
    %2640 = vmatpush1.bf16.msra.mxu0 %v2561
    %2641 = vmatprep.subr.bf16.mxu0 0
    %2642 = vmatpush2.bf16.msra.mxu0 0
    %2643 = vmatprep.subr.bf16.mxu0 0
    %2644 = vmatpush2.bf16.msra.mxu0 0
    %2645 = vmatprep.subr.bf16.mxu0 0
    %2646 = vmatpush2.bf16.msra.mxu0 0
    %2647 = vmatprep.subr.bf16.mxu0 0
    %2648 = vmatpush2.bf16.msra.mxu0 0
    %2649 = vmatprep.subr.bf16.mxu0 0
    %2650 = vmatpush2.bf16.msra.mxu0 0
    %2651 = vmatprep.subr.bf16.mxu0 0
    %2652 = vmatpush2.bf16.msra.mxu0 0
    %2653 = vmatprep.subr.bf16.mxu0 0
    %2654 = vmatpush2.bf16.msra.mxu0 0
    %2655 = vmatprep.subr.bf16.mxu0 0
    %2656 = vmatpush2.bf16.msra.mxu0 0
    %2657 = vmatprep.mubr.bf16.mxu0 0
    %2658 = vmatmul.mubr.bf16.gmra.mxu0 %v2410
    %v2659 = vpop.f32.mrf.mxu0
    %v2660 = vadd.f32 %v2448, %v2659
    %v2661 = vpop.f32.mrf.mxu0
    %v2662 = vadd.f32 %v2452, %v2661
    %v2663 = vpop.f32.mrf.mxu0
    %v2664 = vadd.f32 %v2448, %v2663
    %v2665 = vpop.f32.mrf.mxu0
    %v2666 = vadd.f32 %v2452, %v2665
    %2667 = vdwg.mxu0
    %2668 = vmatprep.subr.bf16.mxu0 %v2592
    %2669 = vmatpush1.bf16.msra.mxu0 %v2591
    %2670 = vmatprep.subr.bf16.mxu0 %v2588
    %2671 = vmatpush1.bf16.msra.mxu0 %v2587
    %2672 = vmatprep.subr.bf16.mxu0 %v2584
    %2673 = vmatpush1.bf16.msra.mxu0 %v2583
    %2674 = vmatprep.subr.bf16.mxu0 %v2580
    %2675 = vmatpush1.bf16.msra.mxu0 %v2579
    %2676 = vmatprep.subr.bf16.mxu0 %v2576
    %2677 = vmatpush1.bf16.msra.mxu0 %v2575
    %2678 = vmatprep.subr.bf16.mxu0 %v2572
    %2679 = vmatpush1.bf16.msra.mxu0 %v2571
    %2680 = vmatprep.subr.bf16.mxu0 %v2568
    %2681 = vmatpush1.bf16.msra.mxu0 %v2567
    %2682 = vmatprep.subr.bf16.mxu0 %v2564
    %2683 = vmatpush1.bf16.msra.mxu0 %v2563
    %2684 = vmatprep.subr.bf16.mxu0 0
    %2685 = vmatpush2.bf16.msra.mxu0 0
    %2686 = vmatprep.subr.bf16.mxu0 0
    %2687 = vmatpush2.bf16.msra.mxu0 0
    %2688 = vmatprep.subr.bf16.mxu0 0
    %2689 = vmatpush2.bf16.msra.mxu0 0
    %2690 = vmatprep.subr.bf16.mxu0 0
    %2691 = vmatpush2.bf16.msra.mxu0 0
    %2692 = vmatprep.subr.bf16.mxu0 0
    %2693 = vmatpush2.bf16.msra.mxu0 0
    %2694 = vmatprep.subr.bf16.mxu0 0
    %2695 = vmatpush2.bf16.msra.mxu0 0
    %2696 = vmatprep.subr.bf16.mxu0 0
    %2697 = vmatpush2.bf16.msra.mxu0 0
    %2698 = vmatprep.subr.bf16.mxu0 0
    %2699 = vmatpush2.bf16.msra.mxu0 0
    %2700 = vmatprep.mubr.bf16.mxu0 0
    %2701 = vmatmul.mubr.bf16.gmra.mxu0 %v2410
    %v2702 = vpop.f32.mrf.mxu0
    %v2703 = vadd.f32 %v2456, %v2702
    %v2704 = vpop.f32.mrf.mxu0
    %v2705 = vadd.f32 %v2460, %v2704
    %v2706 = vpop.f32.mrf.mxu0
    %v2707 = vadd.f32 %v2456, %v2706
    %v2708 = vpop.f32.mrf.mxu0
    %v2709 = vadd.f32 %v2460, %v2708
    %2710 = vdwg.mxu0
    %v2711 = vmul.f32 %v2660, %v2660
    %v2712 = vmul.f32 %v2662, %v2662
    %v2713 = vmul.f32 %v2703, %v2703
    %v2714 = vmul.f32 %v2705, %v2705
    %v2715 = vmul.f32 %v2664, %v2664
    %v2716 = vmul.f32 %v2666, %v2666
    %v2717 = vmul.f32 %v2707, %v2707
    %v2718 = vmul.f32 %v2709, %v2709
    %v2719 = vmul.f32 %v2660, %v2711
    %v2720 = vmul.f32 %v2662, %v2712
    %v2721 = vmul.f32 %v2703, %v2713
    %v2722 = vmul.f32 %v2705, %v2714
    %v2723 = vmul.f32 %v2664, %v2715
    %v2724 = vmul.f32 %v2666, %v2716
    %v2725 = vmul.f32 %v2707, %v2717
    %v2726 = vmul.f32 %v2709, %v2718
    %v2727 = vmul.f32 %v2719, 0.044715
    %v2728 = vmul.f32 %v2720, 0.044715
    %v2729 = vmul.f32 %v2721, 0.044715
    %v2730 = vmul.f32 %v2722, 0.044715
    %v2731 = vmul.f32 %v2723, 0.044715
    %v2732 = vmul.f32 %v2724, 0.044715
    %v2733 = vmul.f32 %v2725, 0.044715
    %v2734 = vmul.f32 %v2726, 0.044715
    %v2735 = vadd.f32 %v2660, %v2727
    %v2736 = vadd.f32 %v2662, %v2728
    %v2737 = vadd.f32 %v2703, %v2729
    %v2738 = vadd.f32 %v2705, %v2730
    %v2739 = vadd.f32 %v2664, %v2731
    %v2740 = vadd.f32 %v2666, %v2732
    %v2741 = vadd.f32 %v2707, %v2733
    %v2742 = vadd.f32 %v2709, %v2734
    %v2743 = vmul.f32 %v2735, 0.7978846
    %v2744 = vmul.f32 %v2736, 0.7978846
    %v2745 = vmul.f32 %v2737, 0.7978846
    %v2746 = vmul.f32 %v2738, 0.7978846
    %v2747 = vmul.f32 %v2739, 0.7978846
    %v2748 = vmul.f32 %v2740, 0.7978846
    %v2749 = vmul.f32 %v2741, 0.7978846
    %v2750 = vmul.f32 %v2742, 0.7978846
    %v2751 = vtanh.pop %v2743
    %v2752 = vtanh.pop %v2744
    %v2753 = vtanh.pop %v2745
    %v2754 = vtanh.pop %v2746
    %v2755 = vtanh.pop %v2747
    %v2756 = vtanh.pop %v2748
    %v2757 = vtanh.pop %v2749
    %v2758 = vtanh.pop %v2750
    %v2759 = vadd.f32 %v2751, 1.0
    %v2760 = vadd.f32 %v2752, 1.0
    %v2761 = vadd.f32 %v2753, 1.0
    %v2762 = vadd.f32 %v2754, 1.0
    %v2763 = vadd.f32 %v2755, 1.0
    %v2764 = vadd.f32 %v2756, 1.0
    %v2765 = vadd.f32 %v2757, 1.0
    %v2766 = vadd.f32 %v2758, 1.0
    %v2767 = vmul.f32 %v2759, 0.5
    %v2768 = vmul.f32 %v2760, 0.5
    %v2769 = vmul.f32 %v2761, 0.5
    %v2770 = vmul.f32 %v2762, 0.5
    %v2771 = vmul.f32 %v2763, 0.5
    %v2772 = vmul.f32 %v2764, 0.5
    %v2773 = vmul.f32 %v2765, 0.5
    %v2774 = vmul.f32 %v2766, 0.5
    %v2775 = vmul.f32 %v2660, %v2767
    %v2776 = vmul.f32 %v2662, %v2768
    %v2777 = vmul.f32 %v2703, %v2769
    %v2778 = vmul.f32 %v2705, %v2770
    %v2779 = vmul.f32 %v2664, %v2771
    %v2780 = vmul.f32 %v2666, %v2772
    %v2781 = vmul.f32 %v2707, %v2773
    %v2782 = vmul.f32 %v2709, %v2774
    %v2783 = vpack.c.bf16 %v2779, %v2775
    %v2784 = vpack.c.bf16 %v2780, %v2776
    %v2785 = vpack.c.bf16 %v2781, %v2777
    %v2786 = vpack.c.bf16 %v2782, %v2778
    %v2787 = vld [vmem:[#allocation11] sm:$0xf]
    %v2788 = vld [vmem:[#allocation11 + $0x4] sm:$0xf]
    %v2789 = vld [vmem:[#allocation11 + $0x8] sm:$0xf]
    %v2790 = vld [vmem:[#allocation11 + $0xc] sm:$0xf]
    %v2791 = vld [vmem:[#allocation11 + $0x10] sm:$0xf]
    %v2792 = vld [vmem:[#allocation11 + $0x14] sm:$0xf]
    %v2793 = vld [vmem:[#allocation11 + $0x18] sm:$0xf]
    %v2794 = vld [vmem:[#allocation11 + $0x1c] sm:$0xf]
    %v2795 = vld [vmem:[#allocation11 + $0x20] sm:$0xf]
    %v2796 = vld [vmem:[#allocation11 + $0x24] sm:$0xf]
    %v2797 = vld [vmem:[#allocation11 + $0x28] sm:$0xf]
    %v2798 = vld [vmem:[#allocation11 + $0x2c] sm:$0xf]
    %v2799 = vld [vmem:[#allocation11 + $0x30] sm:$0xf]
    %v2800 = vld [vmem:[#allocation11 + $0x34] sm:$0xf]
    %v2801 = vld [vmem:[#allocation11 + $0x38] sm:$0xf]
    %v2802 = vld [vmem:[#allocation11 + $0x3c] sm:$0xf]
    %v2803 = vld [vmem:[#allocation11 + $0x40] sm:$0xf]
    %v2804 = vld [vmem:[#allocation11 + $0x44] sm:$0xf]
    %v2805 = vld [vmem:[#allocation11 + $0x48] sm:$0xf]
    %v2806 = vld [vmem:[#allocation11 + $0x4c] sm:$0xf]
    %v2807 = vld [vmem:[#allocation11 + $0x50] sm:$0xf]
    %v2808 = vld [vmem:[#allocation11 + $0x54] sm:$0xf]
    %v2809 = vld [vmem:[#allocation11 + $0x58] sm:$0xf]
    %v2810 = vld [vmem:[#allocation11 + $0x5c] sm:$0xf]
    %v2811 = vld [vmem:[#allocation11 + $0x60] sm:$0xf]
    %v2812 = vld [vmem:[#allocation11 + $0x64] sm:$0xf]
    %v2813 = vld [vmem:[#allocation11 + $0x68] sm:$0xf]
    %v2814 = vld [vmem:[#allocation11 + $0x6c] sm:$0xf]
    %v2815 = vld [vmem:[#allocation11 + $0x70] sm:$0xf]
    %v2816 = vld [vmem:[#allocation11 + $0x74] sm:$0xf]
    %v2817 = vld [vmem:[#allocation11 + $0x78] sm:$0xf]
    %v2818 = vld [vmem:[#allocation11 + $0x7c] sm:$0xf]
    %v2819 = vld [vmem:[#allocation11 + $0x80] sm:$0xf]
    %v2820 = vld [vmem:[#allocation11 + $0x84] sm:$0xf]
    %v2821 = vld [vmem:[#allocation11 + $0x88] sm:$0xf]
    %v2822 = vld [vmem:[#allocation11 + $0x8c] sm:$0xf]
    %v2823 = vld [vmem:[#allocation11 + $0x90] sm:$0xf]
    %v2824 = vld [vmem:[#allocation11 + $0x94] sm:$0xf]
    %v2825 = vld [vmem:[#allocation11 + $0x98] sm:$0xf]
    %v2826 = vld [vmem:[#allocation11 + $0x9c] sm:$0xf]
    %v2827 = vld [vmem:[#allocation11 + $0xa0] sm:$0xf]
    %v2828 = vld [vmem:[#allocation11 + $0xa4] sm:$0xf]
    %v2829 = vld [vmem:[#allocation11 + $0xa8] sm:$0xf]
    %v2830 = vld [vmem:[#allocation11 + $0xac] sm:$0xf]
    %v2831 = vld [vmem:[#allocation11 + $0xb0] sm:$0xf]
    %v2832 = vld [vmem:[#allocation11 + $0xb4] sm:$0xf]
    %v2833 = vld [vmem:[#allocation11 + $0xb8] sm:$0xf]
    %v2834 = vld [vmem:[#allocation11 + $0xbc] sm:$0xf]
    %v2835 = vld [vmem:[#allocation11 + $0xc0] sm:$0xf]
    %v2836 = vld [vmem:[#allocation11 + $0xc4] sm:$0xf]
    %v2837 = vld [vmem:[#allocation11 + $0xc8] sm:$0xf]
    %v2838 = vld [vmem:[#allocation11 + $0xcc] sm:$0xf]
    %v2839 = vld [vmem:[#allocation11 + $0xd0] sm:$0xf]
    %v2840 = vld [vmem:[#allocation11 + $0xd4] sm:$0xf]
    %v2841 = vld [vmem:[#allocation11 + $0xd8] sm:$0xf]
    %v2842 = vld [vmem:[#allocation11 + $0xdc] sm:$0xf]
    %v2843 = vld [vmem:[#allocation11 + $0xe0] sm:$0xf]
    %v2844 = vld [vmem:[#allocation11 + $0xe4] sm:$0xf]
    %v2845 = vld [vmem:[#allocation11 + $0xe8] sm:$0xf]
    %v2846 = vld [vmem:[#allocation11 + $0xec] sm:$0xf]
    %v2847 = vld [vmem:[#allocation11 + $0xf0] sm:$0xf]
    %v2848 = vld [vmem:[#allocation11 + $0xf4] sm:$0xf]
    %v2849 = vld [vmem:[#allocation11 + $0xf8] sm:$0xf]
    %v2850 = vld [vmem:[#allocation11 + $0xfc] sm:$0xf]
    %v2851 = vld [vmem:[%s10] sm:$0x1]
    %v2853 = vlaneseq
    %v2854 = vshrl.u32 %v2853, 7
    %v2855 = vsub.s32 0, %v2854
    %v2856 = vrot.slane %v2851, %v2855
    %v2922 = vunpack.c.l.b16 %v2787
    %v2923 = vunpack.c.l.b16 %v2788
    %v2924 = vunpack.c.l.b16 %v2789
    %v2925 = vunpack.c.l.b16 %v2790
    %v2926 = vunpack.c.l.b16 %v2791
    %v2927 = vunpack.c.l.b16 %v2792
    %v2928 = vunpack.c.l.b16 %v2793
    %v2929 = vunpack.c.l.b16 %v2794
    %v2930 = vunpack.c.l.b16 %v2795
    %v2931 = vunpack.c.l.b16 %v2796
    %v2932 = vunpack.c.l.b16 %v2797
    %v2933 = vunpack.c.l.b16 %v2798
    %v2934 = vunpack.c.l.b16 %v2799
    %v2935 = vunpack.c.l.b16 %v2800
    %v2936 = vunpack.c.l.b16 %v2801
    %v2937 = vunpack.c.l.b16 %v2802
    %v2938 = vunpack.c.l.b16 %v2803
    %v2939 = vunpack.c.l.b16 %v2804
    %v2940 = vunpack.c.l.b16 %v2805
    %v2941 = vunpack.c.l.b16 %v2806
    %v2942 = vunpack.c.l.b16 %v2807
    %v2943 = vunpack.c.l.b16 %v2808
    %v2944 = vunpack.c.l.b16 %v2809
    %v2945 = vunpack.c.l.b16 %v2810
    %v2946 = vunpack.c.l.b16 %v2811
    %v2947 = vunpack.c.l.b16 %v2812
    %v2948 = vunpack.c.l.b16 %v2813
    %v2949 = vunpack.c.l.b16 %v2814
    %v2950 = vunpack.c.l.b16 %v2815
    %v2951 = vunpack.c.l.b16 %v2816
    %v2952 = vunpack.c.l.b16 %v2817
    %v2953 = vunpack.c.l.b16 %v2818
    %v2954 = vunpack.c.l.b16 %v2819
    %v2955 = vunpack.c.l.b16 %v2820
    %v2956 = vunpack.c.l.b16 %v2821
    %v2957 = vunpack.c.l.b16 %v2822
    %v2958 = vunpack.c.l.b16 %v2823
    %v2959 = vunpack.c.l.b16 %v2824
    %v2960 = vunpack.c.l.b16 %v2825
    %v2961 = vunpack.c.l.b16 %v2826
    %v2962 = vunpack.c.l.b16 %v2827
    %v2963 = vunpack.c.l.b16 %v2828
    %v2964 = vunpack.c.l.b16 %v2829
    %v2965 = vunpack.c.l.b16 %v2830
    %v2966 = vunpack.c.l.b16 %v2831
    %v2967 = vunpack.c.l.b16 %v2832
    %v2968 = vunpack.c.l.b16 %v2833
    %v2969 = vunpack.c.l.b16 %v2834
    %v2970 = vunpack.c.l.b16 %v2835
    %v2971 = vunpack.c.l.b16 %v2836
    %v2972 = vunpack.c.l.b16 %v2837
    %v2973 = vunpack.c.l.b16 %v2838
    %v2974 = vunpack.c.l.b16 %v2839
    %v2975 = vunpack.c.l.b16 %v2840
    %v2976 = vunpack.c.l.b16 %v2841
    %v2977 = vunpack.c.l.b16 %v2842
    %v2978 = vunpack.c.l.b16 %v2843
    %v2979 = vunpack.c.l.b16 %v2844
    %v2980 = vunpack.c.l.b16 %v2845
    %v2981 = vunpack.c.l.b16 %v2846
    %v2982 = vunpack.c.l.b16 %v2847
    %v2983 = vunpack.c.l.b16 %v2848
    %v2984 = vunpack.c.l.b16 %v2849
    %v2985 = vunpack.c.l.b16 %v2850
    %v2986 = vpack.c.b16 %v2923, %v2922
    %v2987 = vpack.c.b16 %v2925, %v2924
    %v2988 = vpack.c.b16 %v2927, %v2926
    %v2989 = vpack.c.b16 %v2929, %v2928
    %v2990 = vpack.c.b16 %v2931, %v2930
    %v2991 = vpack.c.b16 %v2933, %v2932
    %v2992 = vpack.c.b16 %v2935, %v2934
    %v2993 = vpack.c.b16 %v2937, %v2936
    %v2994 = vpack.c.b16 %v2939, %v2938
    %v2995 = vpack.c.b16 %v2941, %v2940
    %v2996 = vpack.c.b16 %v2943, %v2942
    %v2997 = vpack.c.b16 %v2945, %v2944
    %v2998 = vpack.c.b16 %v2947, %v2946
    %v2999 = vpack.c.b16 %v2949, %v2948
    %v3000 = vpack.c.b16 %v2951, %v2950
    %v3001 = vpack.c.b16 %v2953, %v2952
    %v3002 = vpack.c.b16 %v2955, %v2954
    %v3003 = vpack.c.b16 %v2957, %v2956
    %v3004 = vpack.c.b16 %v2959, %v2958
    %v3005 = vpack.c.b16 %v2961, %v2960
    %v3006 = vpack.c.b16 %v2963, %v2962
    %v3007 = vpack.c.b16 %v2965, %v2964
    %v3008 = vpack.c.b16 %v2967, %v2966
    %v3009 = vpack.c.b16 %v2969, %v2968
    %v3010 = vpack.c.b16 %v2971, %v2970
    %v3011 = vpack.c.b16 %v2973, %v2972
    %v3012 = vpack.c.b16 %v2975, %v2974
    %v3013 = vpack.c.b16 %v2977, %v2976
    %v3014 = vpack.c.b16 %v2979, %v2978
    %v3015 = vpack.c.b16 %v2981, %v2980
    %v3016 = vpack.c.b16 %v2983, %v2982
    %v3017 = vpack.c.b16 %v2985, %v2984
    %3050 = vmatprep.subr.bf16.mxu0 0
    %3051 = vmatpush1.bf16.msra.mxu0 %v2993
    %3052 = vmatprep.subr.bf16.mxu0 0
    %3053 = vmatpush1.bf16.msra.mxu0 %v2992
    %3054 = vmatprep.subr.bf16.mxu0 0
    %3055 = vmatpush1.bf16.msra.mxu0 %v2991
    %3056 = vmatprep.subr.bf16.mxu0 0
    %3057 = vmatpush1.bf16.msra.mxu0 %v2990
    %3058 = vmatprep.subr.bf16.mxu0 0
    %3059 = vmatpush1.bf16.msra.mxu0 %v2989
    %3060 = vmatprep.subr.bf16.mxu0 0
    %3061 = vmatpush1.bf16.msra.mxu0 %v2988
    %3062 = vmatprep.subr.bf16.mxu0 0
    %3063 = vmatpush1.bf16.msra.mxu0 %v2987
    %3064 = vmatprep.subr.bf16.mxu0 0
    %3065 = vmatpush1.bf16.msra.mxu0 %v2986
    %3066 = vmatprep.subr.bf16.mxu0 0
    %3067 = vmatpush2.bf16.msra.mxu0 %v3001
    %3068 = vmatprep.subr.bf16.mxu0 0
    %3069 = vmatpush2.bf16.msra.mxu0 %v3000
    %3070 = vmatprep.subr.bf16.mxu0 0
    %3071 = vmatpush2.bf16.msra.mxu0 %v2999
    %3072 = vmatprep.subr.bf16.mxu0 0
    %3073 = vmatpush2.bf16.msra.mxu0 %v2998
    %3074 = vmatprep.subr.bf16.mxu0 0
    %3075 = vmatpush2.bf16.msra.mxu0 %v2997
    %3076 = vmatprep.subr.bf16.mxu0 0
    %3077 = vmatpush2.bf16.msra.mxu0 %v2996
    %3078 = vmatprep.subr.bf16.mxu0 0
    %3079 = vmatpush2.bf16.msra.mxu0 %v2995
    %3080 = vmatprep.subr.bf16.mxu0 0
    %3081 = vmatpush2.bf16.msra.mxu0 %v2994
    %3082 = vmatprep.mubr.bf16.mxu0 %v2784
    %3083 = vmatmul.mubr.bf16.gmra.mxu0 %v2783
    %v3084 = vpop.f32.mrf.mxu0
    %v3085 = vadd.f32 %v2856, %v3084
    %v3086 = vpop.f32.mrf.mxu0
    %v3087 = vpop.f32.mrf.mxu0
    %v3088 = vadd.f32 %v2856, %v3087
    %v3089 = vpop.f32.mrf.mxu0
    %3090 = vdwg.mxu0
    %3091 = vmatprep.subr.bf16.mxu0 0
    %3092 = vmatpush1.bf16.msra.mxu0 %v3009
    %3093 = vmatprep.subr.bf16.mxu0 0
    %3094 = vmatpush1.bf16.msra.mxu0 %v3008
    %3095 = vmatprep.subr.bf16.mxu0 0
    %3096 = vmatpush1.bf16.msra.mxu0 %v3007
    %3097 = vmatprep.subr.bf16.mxu0 0
    %3098 = vmatpush1.bf16.msra.mxu0 %v3006
    %3099 = vmatprep.subr.bf16.mxu0 0
    %3100 = vmatpush1.bf16.msra.mxu0 %v3005
    %3101 = vmatprep.subr.bf16.mxu0 0
    %3102 = vmatpush1.bf16.msra.mxu0 %v3004
    %3103 = vmatprep.subr.bf16.mxu0 0
    %3104 = vmatpush1.bf16.msra.mxu0 %v3003
    %3105 = vmatprep.subr.bf16.mxu0 0
    %3106 = vmatpush1.bf16.msra.mxu0 %v3002
    %3107 = vmatprep.subr.bf16.mxu0 0
    %3108 = vmatpush2.bf16.msra.mxu0 %v3017
    %3109 = vmatprep.subr.bf16.mxu0 0
    %3110 = vmatpush2.bf16.msra.mxu0 %v3016
    %3111 = vmatprep.subr.bf16.mxu0 0
    %3112 = vmatpush2.bf16.msra.mxu0 %v3015
    %3113 = vmatprep.subr.bf16.mxu0 0
    %3114 = vmatpush2.bf16.msra.mxu0 %v3014
    %3115 = vmatprep.subr.bf16.mxu0 0
    %3116 = vmatpush2.bf16.msra.mxu0 %v3013
    %3117 = vmatprep.subr.bf16.mxu0 0
    %3118 = vmatpush2.bf16.msra.mxu0 %v3012
    %3119 = vmatprep.subr.bf16.mxu0 0
    %3120 = vmatpush2.bf16.msra.mxu0 %v3011
    %3121 = vmatprep.subr.bf16.mxu0 0
    %3122 = vmatpush2.bf16.msra.mxu0 %v3010
    %3123 = vmatprep.mubr.bf16.mxu0 %v2786
    %3124 = vmatmul.mubr.bf16.gmra.mxu0 %v2785
    %v3125 = vpop.f32.mrf.mxu0
    %v3126 = vadd.f32 %v3085, %v3125
    %v3127 = vpop.f32.mrf.mxu0
    %v3128 = vpop.f32.mrf.mxu0
    %v3129 = vadd.f32 %v3088, %v3128
    %v3130 = vpop.f32.mrf.mxu0
    %3131 = vdwg.mxu0
    %v3132 = vadd.f32 %v3126, %v2408
    %v3133 = vadd.f32 %v3129, %v2409
    %v3134 = vld [vmem:[%s11] sm:$0x1]
    %v3135 = vld [vmem:[%s12] sm:$0x1]
    %3136 = vadd.xlane.f32.xlu0 %v3132
    %v3137 = vpop.xlane.xlu0 %3136
    %3138 = vadd.xlane.f32.xlu0 %v3133
    %v3139 = vpop.xlane.xlu0 %3138
    %v3140 = vmul.f32 %v3137, %v2375
    %v3141 = vmul.f32 %v3139, %v2375
    %v3142 = vsub.f32 %v3132, %v3140
    %v3143 = vsub.f32 %v3133, %v3141
    %v3144 = vmul.f32 %v3142, %v3142
    %v3145 = vmul.f32 %v3143, %v3143
    %3146 = vadd.xlane.f32.xlu0 %v3144
    %v3147 = vpop.xlane.xlu0 %3146
    %3148 = vadd.xlane.f32.xlu0 %v3145
    %v3149 = vpop.xlane.xlu0 %3148
    %v3150 = vmul.f32 %v3147, %v2375
    %v3151 = vmul.f32 %v3149, %v2375
    %v3152 = vadd.f32 %v3150, 1e-05
    %v3153 = vadd.f32 %v3151, 1e-05
    %v3154 = vrsqrt.pop %v3152
    %v3155 = vrsqrt.pop %v3153
    %v3156 = vmul.f32 %v3142, %v3154
    %v3157 = vmul.f32 %v3143, %v3155
    %v3159 = vlaneseq
    %v3160 = vshrl.u32 %v3159, 7
    %v3161 = vsub.s32 0, %v3160
    %v3162 = vrot.slane %v3134, %v3161
    %v3164 = vmul.f32 %v3156, %v3162
    %v3165 = vmul.f32 %v3157, %v3162
    %v3167 = vlaneseq
    %v3168 = vshrl.u32 %v3167, 7
    %v3169 = vsub.s32 0, %v3168
    %v3170 = vrot.slane %v3135, %v3169
    %v3172 = vadd.f32 %v3164, %v3170
    %v3173 = vadd.f32 %v3165, %v3170
    %3174 = vst [vmem:[#allocation13] sm:$0xff] %v3172
    %3175 = vst [vmem:[#allocation13 + $0x8] sm:$0xff] %v3173
    // Predicated region
    $region78: #{tpu_custom_call.1} parent=1 // pred_check
      _
    $region79: #{tpu_custom_call.1} parent=1 // pred_check_branch
      %3177 = sbr.rel (0) target = $region81
    $region80: #{tpu_custom_call.1} parent=1 // pred_region
      %s3179 = ssub.s32 256, 256
      %3180 = vsyncadd [#allocation4], %s3179
      %s3181 = sshll.u32 [#allocation13], 4
      %s3182 = int_to_ptr.vmem [resolvable:$true] %s3181
      %3187 = dma.vmem_to_hbm [thread:$0]  %s3182, 256, %s13, [#allocation4], 128, 128, 8
    $region81: #{tpu_custom_call.1} parent=1 // pred_fallthru
      _
    // Predicated region
    $region82: #{tpu_custom_call.1} parent=1 // pred_check
      _
    $region83: #{tpu_custom_call.1} parent=1 // pred_check_branch
      %3189 = sbr.rel (0) target = $region85
    $region84: #{tpu_custom_call.1} parent=1 // pred_region
      %3190 = dma.done [#allocation4], 256
    $region85: #{tpu_custom_call.1} parent=1 // pred_fallthru
      _
    %3191 = vsyncpa [#allocation3], 1
    %3192 = vsyncpa [#allocation6], 1
    %3193 = vsyncpa [#allocation9], 1
    %3194 = vsyncpa [#allocation12], 1
    %3195 = vsyncpa [#allocation4], 1

</llo_original>
